<compile_context>
chip_gen: v6e
topology: v6e:2x2x1
jax: 0.10.0
libtpu: 0.0.40
codegen_flags: <defaults>
</compile_context>

<pallas_src>
import jax
import jax.numpy as jnp
from jax.experimental import pallas as pl
from jax.experimental.pallas import tpu as pltpu


def _round_up(x, m):
    return (x + m - 1) // m * m


def _pick_tile(s, cap, mult=16):
    """Largest tile <= cap that divides s and is a multiple of `mult`
    (falls back to the full axis, which is always a legal block)."""
    if s <= cap:
        return s
    for t in range(cap, 0, -1):
        if s % t == 0 and t % mult == 0:
            return t
    return s


# ---- optional single-buffering of grid-invariant operands (VMEM headroom) ----
_PIPELINE_MODE_OK = None


def _probe_kernel(x_ref, o_ref):
    o_ref[...] = x_ref[...] + 1.0


def _buffered_supported():
    """True iff this JAX build accepts pipeline_mode=pl.Buffered(n) on a BlockSpec."""
    global _PIPELINE_MODE_OK
    if _PIPELINE_MODE_OK is None:
        try:
            out = pl.pallas_call(
                _probe_kernel,
                out_shape=jax.ShapeDtypeStruct((8, 128), jnp.float32),
                grid=(1,),
                in_specs=[pl.BlockSpec((8, 128), lambda i: (0, 0),
                                       pipeline_mode=pl.Buffered(1))],
                out_specs=pl.BlockSpec((8, 128), lambda i: (0, 0)),
            )(jnp.zeros((8, 128), jnp.float32))
            jax.block_until_ready(out)
            _PIPELINE_MODE_OK = True
        except Exception:
            _PIPELINE_MODE_OK = False
    return _PIPELINE_MODE_OK


def _bspec(shape, index_map, *, buffers=None):
    """BlockSpec; grid-invariant operands request N-deep (here single) buffering."""
    if buffers is not None and _buffered_supported():
        return pl.BlockSpec(shape, index_map, pipeline_mode=pl.Buffered(buffers))
    return pl.BlockSpec(shape, index_map)


def _vmem_limit_bytes():
    """Generation-aware scoped-VMEM limit (v5e/v6e ~110 MiB, v7x ~48 MiB)."""
    try:
        cap = pltpu.get_tpu_info().vmem_capacity_bytes
    except Exception:
        cap = 64 * 1024 * 1024
    return int(max(32 * 1024 * 1024,
                   min(cap - 16 * 1024 * 1024, 110 * 1024 * 1024)))


# ---------------- Kernel 1: fused 1x1-conv projections (theta | phi | g) ----------------
def _proj_kernel(x_ref, w_ref, b_ref, proj_ref):
    # (TM, Cp) @ (Cp, 3*Cip): one wide bf16 MXU pass (f32 accumulate) for all three
    # projections instead of three skinny matmuls.
    x16 = x_ref[0].astype(jnp.bfloat16)
    acc = jnp.dot(x16, w_ref[...], preferred_element_type=jnp.float32) + b_ref[...]
    proj_ref[0] = acc.astype(proj_ref.dtype)


# -------- Kernel 2: embedded-gaussian attention + W_z conv + BN partial sums --------
def _attn_kernel(theta_ref, phi_ref, g_ref, wz_ref, bz_ref, wy_ref, stats_ref):
    theta = theta_ref[0]          # (TQ, Cip) bf16 query tile
    phi = phi_ref[0]              # (S,  Cip) bf16 keys   (resident per batch)
    g = g_ref[0]                  # (S,  Cip) bf16 values (resident per batch)

    # f = theta @ phi^T without materializing a transpose: contract the channel axes.
    f = jax.lax.dot_general(theta, phi, (((1,), (1,)), ((), ())),
                            preferred_element_type=jnp.float32)        # (TQ, S) f32

    # softmax over keys (f32 math; EUP approx reciprocal instead of a VALU divide)
    f = f - jnp.max(f, axis=-1, keepdims=True)
    p = jnp.exp(f)
    inv_den = pl.reciprocal(jnp.sum(p, axis=-1, keepdims=True), approx=True)  # (TQ, 1)

    # normalize AFTER the value matmul: rescale (TQ, Cip) instead of (TQ, S)
    y = jnp.dot(p.astype(jnp.bfloat16), g, preferred_element_type=jnp.float32)
    y = y * inv_den                                                     # (TQ, Cip)

    wy = jnp.dot(y.astype(jnp.bfloat16), wz_ref[...],
                 preferred_element_type=jnp.float32) + bz_ref[...]      # (TQ, Cp)
    wy_ref[0] = wy

    # per-tile BatchNorm partial statistics (row 0: sum, row 1: sum of squares)
    stats_ref[0, 0] = jnp.concatenate(
        [jnp.sum(wy, axis=0, keepdims=True),
         jnp.sum(wy * wy, axis=0, keepdims=True)], axis=0)              # (2, Cp)


# ---------------- Kernel 3: BN apply (precomputed scale/shift) + residual ----------------
def _bn_apply_kernel(wy_ref, x_ref, scale_ref, shift_ref, z_ref):
    z_ref[...] = wy_ref[...] * scale_ref[...] + shift_ref[...] + x_ref[...]


def nl_block_forward(x_bsc, params, *, tq_cap=256):
    """x_bsc: (B, S, C) float32. Returns z in the same (B, S, C) layout."""
    B, S, C = x_bsc.shape
    Ci = params["wt"].shape[1]

    # lane-dense channel padding (zero padding -> identical math on real channels)
    Cp = _round_up(C, 128)
    Cip = _round_up(Ci, 128)

    def pad2(w, r, c):
        return jnp.pad(w, ((0, r - w.shape[0]), (0, c - w.shape[1])))

    xp = jnp.pad(x_bsc, ((0, 0), (0, 0), (0, Cp - C)))
    # fused projection weights: x @ [W_theta | W_phi | W_g] (bf16 weights, f32 bias)
    w_fused = jnp.concatenate(
        [pad2(params["wt"], Cp, Cip),
         pad2(params["wp"], Cp, Cip),
         pad2(params["wg"], Cp, Cip)], axis=1).astype(jnp.bfloat16)      # (Cp, 3*Cip)
    b_fused = jnp.concatenate(
        [pad2(params["bt"], 1, Cip),
         pad2(params["bp"], 1, Cip),
         pad2(params["bg"], 1, Cip)], axis=1)                            # (1, 3*Cip)
    wz = pad2(params["wz"], Cip, Cp).astype(jnp.bfloat16)
    bz = pad2(params["bz"], 1, Cp)

    tq = _pick_tile(S, tq_cap)       # query tile (256 fills the 256-wide MXU on v6e/v7x)
    nq = S // tq
    tm1 = _pick_tile(S, 512)         # projection row tile
    tm3 = _pick_tile(S, 2048)        # BN-apply row tile (pure mem-bound)

    cparams = pltpu.CompilerParams(
        dimension_semantics=("parallel", "parallel"),
        vmem_limit_bytes=_vmem_limit_bytes())

    # ---- Kernel 1: proj = x @ [Wt|Wp|Wg] + b (stored bf16: K2 consumes bf16 anyway) ----
    proj = pl.pallas_call(
        _proj_kernel,
        out_shape=jax.ShapeDtypeStruct((B, S, 3 * Cip), jnp.bfloat16),
        grid_spec=pltpu.PrefetchScalarGridSpec(
            num_scalar_prefetch=0,
            grid=(B, S // tm1),
            in_specs=[
                pl.BlockSpec((1, tm1, Cp), lambda b, i: (b, i, 0)),
                _bspec((Cp, 3 * Cip), lambda b, i: (0, 0), buffers=1),
                _bspec((1, 3 * Cip), lambda b, i: (0, 0), buffers=1),
            ],
            out_specs=pl.BlockSpec((1, tm1, 3 * Cip), lambda b, i: (b, i, 0)),
        ),
        compiler_params=cparams,
    )(xp, w_fused, b_fused)

    # ---- Kernel 2: query-tiled attention + W_z + BN partial sums ----
    wy, stats = pl.pallas_call(
        _attn_kernel,
        out_shape=(
            jax.ShapeDtypeStruct((B, S, Cp), jnp.float32),
            jax.ShapeDtypeStruct((B, nq, 2, Cp), jnp.float32),
        ),
        grid_spec=pltpu.PrefetchScalarGridSpec(
            num_scalar_prefetch=0,
            grid=(B, nq),
            in_specs=[
                pl.BlockSpec((1, tq, Cip), lambda b, q: (b, q, 0)),       # theta tile
                _bspec((1, S, Cip), lambda b, q: (b, 0, 1), buffers=1),   # phi (per-batch)
                _bspec((1, S, Cip), lambda b, q: (b, 0, 2), buffers=1),   # g   (per-batch)
                _bspec((Cip, Cp), lambda b, q: (0, 0), buffers=1),        # W_z
                _bspec((1, Cp), lambda b, q: (0, 0), buffers=1),          # b_z
            ],
            out_specs=(
                pl.BlockSpec((1, tq, Cp), lambda b, q: (b, q, 0)),
                pl.BlockSpec((1, 1, 2, Cp), lambda b, q: (b, q, 0, 0)),
            ),
        ),
        compiler_params=cparams,
    )(proj, proj, proj, wz, bz)

    # ---- tiny reduction of per-tile partials -> per-channel BN scale/shift (plain XLA) ----
    n = jnp.float32(B * S)
    ch_sum = stats[:, :, 0, :].sum(axis=(0, 1))                          # (Cp,)
    ch_sq = stats[:, :, 1, :].sum(axis=(0, 1))                           # (Cp,)
    mean = ch_sum / n
    var = jnp.maximum(ch_sq / n - mean * mean, 0.0)                      # biased (training)
    gamma = jnp.pad(params["gamma"].reshape(-1), (0, Cp - C))
    beta = jnp.pad(params["beta"].reshape(-1), (0, Cp - C))
    inv_std = jax.lax.rsqrt(var + 1e-5)
    scale_c = gamma * inv_std
    shift_c = beta - mean * scale_c
    scale = scale_c.reshape(1, 1, Cp)
    shift = shift_c.reshape(1, 1, Cp)

    # ---- Kernel 3: tiled BN apply + residual; z aliases the wy buffer ----
    z = pl.pallas_call(
        _bn_apply_kernel,
        out_shape=jax.ShapeDtypeStruct((B, S, Cp), jnp.float32),
        grid_spec=pltpu.PrefetchScalarGridSpec(
            num_scalar_prefetch=0,
            grid=(B, S // tm3),
            in_specs=[
                pl.BlockSpec((1, tm3, Cp), lambda b, i: (b, i, 0)),      # wy
                pl.BlockSpec((1, tm3, Cp), lambda b, i: (b, i, 0)),      # x (residual)
                _bspec((1, 1, Cp), lambda b, i: (0, 0, 0), buffers=1),   # scale
                _bspec((1, 1, Cp), lambda b, i: (0, 0, 0), buffers=1),   # shift
            ],
            out_specs=pl.BlockSpec((1, tm3, Cp), lambda b, i: (b, i, 0)),
        ),
        compiler_params=cparams,
        input_output_aliases={0: 0},
    )(wy, xp, scale, shift)

    return z[:, :, :C]


def reference_forward(x_bsc, params):
    """Pure-JAX f32 reference of NLBlockND(mode='embedded', bn_layer=True) (training BN)."""
    with jax.default_matmul_precision("highest"):
        g_x = x_bsc @ params["wg"] + params["bg"]
        theta = x_bsc @ params["wt"] + params["bt"]
        phi = x_bsc @ params["wp"] + params["bp"]
        f = jnp.einsum("bsc,btc->bst", theta, phi)
        f_div_c = jax.nn.softmax(f, axis=-1)
        y = jnp.einsum("bst,btc->bsc", f_div_c, g_x)
        wy = y @ params["wz"] + params["bz"]
        mean = wy.mean(axis=(0, 1), keepdims=True)
        var = ((wy - mean) ** 2).mean(axis=(0, 1), keepdims=True)
        norm = (wy - mean) / jnp.sqrt(var + 1e-5)
        return params["gamma"] * norm + params["beta"] + x_bsc


def make_params(key, in_channels, inter_channels):
    # Scales chosen so the attention is non-degenerate and wy has healthy positional
    # variance at toy sizes (BatchNorm would otherwise amplify tiny bf16 rounding noise).
    ks = jax.random.split(key, 9)
    return {
        "wg": 0.2 * jax.random.normal(ks[0], (in_channels, inter_channels), jnp.float32),
        "bg": 0.02 * jax.random.normal(ks[1], (1, inter_channels), jnp.float32),
        "wt": 0.3 * jax.random.normal(ks[2], (in_channels, inter_channels), jnp.float32),
        "bt": 0.1 * jax.random.normal(ks[3], (1, inter_channels), jnp.float32),
        "wp": 0.3 * jax.random.normal(ks[4], (in_channels, inter_channels), jnp.float32),
        "bp": 0.1 * jax.random.normal(ks[5], (1, inter_channels), jnp.float32),
        "wz": 0.2 * jax.random.normal(ks[6], (inter_channels, in_channels), jnp.float32),
        "bz": 0.1 * jax.random.normal(ks[7], (1, in_channels), jnp.float32),
        # PyTorch __init__ zero-inits BN gamma/beta (z == x at init); use nonzero values
        # here so the whole compute path is exercised.
        "gamma": 1.0 + 0.1 * jax.random.normal(ks[8], (1, 1, in_channels), jnp.float32),
        "beta": jnp.linspace(-0.1, 0.1, in_channels, dtype=jnp.float32).reshape(1, 1, in_channels),
    }


if __name__ == "__main__":
    B, C, H, W = 2, 8, 16, 16        # dimension=2 input: (N, C, H, W)
    Ci = C // 2                      # inter_channels defaults to in_channels // 2
    S = H * W

    key = jax.random.PRNGKey(0)
    kx, kp = jax.random.split(key)
    x_nchw = jax.random.normal(kx, (B, C, H, W), jnp.float32)
    params = make_params(kp, C, Ci)

    # NCHW -> (B, S, C): 1x1 convs become per-position channel matmuls.
    x_bsc = jnp.transpose(x_nchw.reshape(B, C, S), (0, 2, 1))

    _buffered_supported()            # run the pipeline_mode probe once, outside tracing
    fwd = jax.jit(nl_block_forward)
    z_bsc = jax.block_until_ready(fwd(x_bsc, params))
    z_ref = reference_forward(x_bsc, params)

    # Tolerance: bf16 matmul operands + approx softmax reciprocal; BatchNorm normalizes
    # wy's (small, at toy scale) positional variance, which amplifies that rounding noise.
    assert jnp.allclose(z_bsc, z_ref, atol=5e-2, rtol=5e-2), "mismatch vs reference"

    # back to NCHW like the PyTorch module output
    z_nchw = jnp.transpose(z_bsc, (0, 2, 1)).reshape(B, C, H, W)
    jax.block_until_ready(z_nchw)
    print("KERNEL_OK")
</pallas_src>

<mosaic_0001>
module attributes {stable_mosaic.version = 11 : i64} {
  func.func @_probe_kernel(%arg0: i32, %arg1: memref<8x128xf32, #tpu.memory_space<vmem>>, %arg2: memref<8x128xf32, #tpu.memory_space<vmem>>) attributes {dimension_semantics = [#tpu.dimension_semantics<arbitrary>], iteration_bounds = array<i64: 1>, scalar_prefetch = 0 : i64, scratch_operands = 0 : i64, tpu.core_type = #tpu.core_type<tc>, window_params = [{pipeline_mode = #tpu.pipeline_mode<synchronous>, transform_indices = @transform_0, window_bounds = array<i64: 8, 128>}, {pipeline_mode = #tpu.pipeline_mode<synchronous>, transform_indices = @transform_1, window_bounds = array<i64: 8, 128>}]} {
    %c0 = arith.constant 0 : index
    %c0_0 = arith.constant 0 : index
    %0 = vector.load %arg1[%c0, %c0_0] : memref<8x128xf32, #tpu.memory_space<vmem>>, vector<8x128xf32>
    %cst = arith.constant 1.000000e+00 : f32
    %1 = vector.broadcast %cst : f32 to vector<8x128xf32>
    %2 = arith.addf %0, %1 : vector<8x128xf32>
    %c0_1 = arith.constant 0 : index
    %c0_2 = arith.constant 0 : index
    %3 = vector.load %arg2[%c0_1, %c0_2] : memref<8x128xf32, #tpu.memory_space<vmem>>, vector<8x128xf32>
    tpu.vector_store %arg2[%c0_1, %c0_2], %2 {strides = array<i32>} : memref<8x128xf32, #tpu.memory_space<vmem>>, vector<8x128xf32>,
    return
  }
  func.func @transform_0(%arg0: i32) -> (i32, i32) {
    %c0_i32 = arith.constant 0 : i32
    %c0_i32_0 = arith.constant 0 : i32
    %c0_i32_1 = arith.constant 0 : i32
    return %c0_i32, %c0_i32_0 : i32, i32
  }
  func.func @transform_1(%arg0: i32) -> (i32, i32) {
    %c0_i32 = arith.constant 0 : i32
    %c0_i32_0 = arith.constant 0 : i32
    %c0_i32_1 = arith.constant 0 : i32
    return %c0_i32, %c0_i32_0 : i32, i32
  }
}

module attributes {stable_mosaic.version = 11 : i64} {
  func.func @_bn_apply_kernel(%arg0: i32, %arg1: i32, %arg2: memref<1x256x128xf32, #tpu.memory_space<vmem>>, %arg3: memref<1x256x128xf32, #tpu.memory_space<vmem>>, %arg4: memref<1x1x128xf32, #tpu.memory_space<vmem>>, %arg5: memref<1x1x128xf32, #tpu.memory_space<vmem>>, %arg6: memref<1x256x128xf32, #tpu.memory_space<vmem>>) attributes {dimension_semantics = [#tpu.dimension_semantics<parallel>, #tpu.dimension_semantics<parallel>], iteration_bounds = array<i64: 2, 1>, scalar_prefetch = 0 : i64, scratch_operands = 0 : i64, tpu.core_type = #tpu.core_type<tc>, window_params = [{transform_indices = @transform_0, window_bounds = array<i64: 1, 256, 128>}, {transform_indices = @transform_1, window_bounds = array<i64: 1, 256, 128>}, {pipeline_mode = #tpu.pipeline_mode<synchronous>, transform_indices = @transform_2, window_bounds = array<i64: 1, 1, 128>}, {pipeline_mode = #tpu.pipeline_mode<synchronous>, transform_indices = @transform_3, window_bounds = array<i64: 1, 1, 128>}, {transform_indices = @transform_4, window_bounds = array<i64: 1, 256, 128>}]} {
    %c0 = arith.constant 0 : index
    %c0_0 = arith.constant 0 : index
    %c0_1 = arith.constant 0 : index
    %0 = vector.load %arg2[%c0, %c0_0, %c0_1] : memref<1x256x128xf32, #tpu.memory_space<vmem>>, vector<1x256x128xf32>
    %c0_2 = arith.constant 0 : index
    %c0_3 = arith.constant 0 : index
    %c0_4 = arith.constant 0 : index
    %1 = vector.load %arg4[%c0_2, %c0_3, %c0_4] : memref<1x1x128xf32, #tpu.memory_space<vmem>>, vector<1x1x128xf32>
    %2 = vector.broadcast %1 : vector<1x1x128xf32> to vector<1x256x128xf32>
    %3 = arith.mulf %0, %2 : vector<1x256x128xf32>
    %c0_5 = arith.constant 0 : index
    %c0_6 = arith.constant 0 : index
    %c0_7 = arith.constant 0 : index
    %4 = vector.load %arg5[%c0_5, %c0_6, %c0_7] : memref<1x1x128xf32, #tpu.memory_space<vmem>>, vector<1x1x128xf32>
    %5 = vector.broadcast %4 : vector<1x1x128xf32> to vector<1x256x128xf32>
    %6 = arith.addf %3, %5 : vector<1x256x128xf32>
    %c0_8 = arith.constant 0 : index
    %c0_9 = arith.constant 0 : index
    %c0_10 = arith.constant 0 : index
    %7 = vector.load %arg3[%c0_8, %c0_9, %c0_10] : memref<1x256x128xf32, #tpu.memory_space<vmem>>, vector<1x256x128xf32>
    %8 = arith.addf %6, %7 : vector<1x256x128xf32>
    %c0_11 = arith.constant 0 : index
    %c0_12 = arith.constant 0 : index
    %c0_13 = arith.constant 0 : index
    %9 = vector.load %arg6[%c0_11, %c0_12, %c0_13] : memref<1x256x128xf32, #tpu.memory_space<vmem>>, vector<1x256x128xf32>
    tpu.vector_store %arg6[%c0_11, %c0_12, %c0_13], %8 {strides = array<i32>} : memref<1x256x128xf32, #tpu.memory_space<vmem>>, vector<1x256x128xf32>,
    return
  }
  func.func @transform_0(%arg0: i32, %arg1: i32) -> (i32, i32, i32) {
    %c0_i32 = arith.constant 0 : i32
    %c0_i32_0 = arith.constant 0 : i32
    return %arg0, %arg1, %c0_i32 : i32, i32, i32
  }
  func.func @transform_1(%arg0: i32, %arg1: i32) -> (i32, i32, i32) {
    %c0_i32 = arith.constant 0 : i32
    %c0_i32_0 = arith.constant 0 : i32
    return %arg0, %arg1, %c0_i32 : i32, i32, i32
  }
  func.func @transform_2(%arg0: i32, %arg1: i32) -> (i32, i32, i32) {
    %c0_i32 = arith.constant 0 : i32
    %c0_i32_0 = arith.constant 0 : i32
    %c0_i32_1 = arith.constant 0 : i32
    %c0_i32_2 = arith.constant 0 : i32
    return %c0_i32, %c0_i32_0, %c0_i32_1 : i32, i32, i32
  }
  func.func @transform_3(%arg0: i32, %arg1: i32) -> (i32, i32, i32) {
    %c0_i32 = arith.constant 0 : i32
    %c0_i32_0 = arith.constant 0 : i32
    %c0_i32_1 = arith.constant 0 : i32
    %c0_i32_2 = arith.constant 0 : i32
    return %c0_i32, %c0_i32_0, %c0_i32_1 : i32, i32, i32
  }
  func.func @transform_4(%arg0: i32, %arg1: i32) -> (i32, i32, i32) {
    %c0_i32 = arith.constant 0 : i32
    %c0_i32_0 = arith.constant 0 : i32
    return %arg0, %arg1, %c0_i32 : i32, i32, i32
  }
}

module attributes {stable_mosaic.version = 11 : i64} {
  func.func @_proj_kernel(%arg0: i32, %arg1: i32, %arg2: memref<1x256x128xf32, #tpu.memory_space<vmem>>, %arg3: memref<128x384xbf16, #tpu.memory_space<vmem>>, %arg4: memref<1x384xf32, #tpu.memory_space<vmem>>, %arg5: memref<1x256x384xbf16, #tpu.memory_space<vmem>>) attributes {dimension_semantics = [#tpu.dimension_semantics<parallel>, #tpu.dimension_semantics<parallel>], iteration_bounds = array<i64: 2, 1>, scalar_prefetch = 0 : i64, scratch_operands = 0 : i64, tpu.core_type = #tpu.core_type<tc>, window_params = [{transform_indices = @transform_0, window_bounds = array<i64: 1, 256, 128>}, {pipeline_mode = #tpu.pipeline_mode<synchronous>, transform_indices = @transform_1, window_bounds = array<i64: 128, 384>}, {pipeline_mode = #tpu.pipeline_mode<synchronous>, transform_indices = @transform_2, window_bounds = array<i64: 1, 384>}, {transform_indices = @transform_3, window_bounds = array<i64: 1, 256, 384>}]} {
    %c0 = arith.constant 0 : index
    %c0_0 = arith.constant 0 : index
    %c0_1 = arith.constant 0 : index
    %0 = vector.load %arg2[%c0, %c0_0, %c0_1] : memref<1x256x128xf32, #tpu.memory_space<vmem>>, vector<1x256x128xf32>
    %1 = vector.shape_cast %0 : vector<1x256x128xf32> to vector<256x128xf32>
    %2 = arith.truncf %1 : vector<256x128xf32> to vector<256x128xbf16>
    %c0_2 = arith.constant 0 : index
    %c0_3 = arith.constant 0 : index
    %3 = vector.load %arg3[%c0_2, %c0_3] : memref<128x384xbf16, #tpu.memory_space<vmem>>, vector<128x384xbf16>
    %cst = arith.constant dense<0.000000e+00> : vector<256x384xf32>
    %4 = tpu.matmul %2, %3, %cst {dimension_numbers = #tpu.dot_dimension_numbers<[1], [0], [0], [1], [0, 0, 1, 1], [], []>} : vector<256x128xbf16>, vector<128x384xbf16>, vector<256x384xf32> -> vector<256x384xf32>
    %c0_4 = arith.constant 0 : index
    %c0_5 = arith.constant 0 : index
    %5 = vector.load %arg4[%c0_4, %c0_5] : memref<1x384xf32, #tpu.memory_space<vmem>>, vector<1x384xf32>
    %6 = vector.broadcast %5 : vector<1x384xf32> to vector<256x384xf32>
    %7 = arith.addf %4, %6 : vector<256x384xf32>
    %8 = arith.truncf %7 : vector<256x384xf32> to vector<256x384xbf16>
    %c0_6 = arith.constant 0 : index
    %c0_7 = arith.constant 0 : index
    %c0_8 = arith.constant 0 : index
    %9 = vector.load %arg5[%c0_6, %c0_7, %c0_8] : memref<1x256x384xbf16, #tpu.memory_space<vmem>>, vector<1x256x384xbf16>
    %10 = vector.shape_cast %9 : vector<1x256x384xbf16> to vector<256x384xbf16>
    %11 = vector.shape_cast %8 : vector<256x384xbf16> to vector<1x256x384xbf16>
    tpu.vector_store %arg5[%c0_6, %c0_7, %c0_8], %11 {strides = array<i32>} : memref<1x256x384xbf16, #tpu.memory_space<vmem>>, vector<1x256x384xbf16>,
    return
  }
  func.func @transform_0(%arg0: i32, %arg1: i32) -> (i32, i32, i32) {
    %c0_i32 = arith.constant 0 : i32
    %c0_i32_0 = arith.constant 0 : i32
    return %arg0, %arg1, %c0_i32 : i32, i32, i32
  }
  func.func @transform_1(%arg0: i32, %arg1: i32) -> (i32, i32) {
    %c0_i32 = arith.constant 0 : i32
    %c0_i32_0 = arith.constant 0 : i32
    %c0_i32_1 = arith.constant 0 : i32
    return %c0_i32, %c0_i32_0 : i32, i32
  }
  func.func @transform_2(%arg0: i32, %arg1: i32) -> (i32, i32) {
    %c0_i32 = arith.constant 0 : i32
    %c0_i32_0 = arith.constant 0 : i32
    %c0_i32_1 = arith.constant 0 : i32
    return %c0_i32, %c0_i32_0 : i32, i32
  }
  func.func @transform_3(%arg0: i32, %arg1: i32) -> (i32, i32, i32) {
    %c0_i32 = arith.constant 0 : i32
    %c0_i32_0 = arith.constant 0 : i32
    return %arg0, %arg1, %c0_i32 : i32, i32, i32
  }
}

module attributes {stable_mosaic.version = 11 : i64} {
  func.func @_attn_kernel(%arg0: i32, %arg1: i32, %arg2: memref<1x256x128xbf16, #tpu.memory_space<vmem>>, %arg3: memref<1x256x128xbf16, #tpu.memory_space<vmem>>, %arg4: memref<1x256x128xbf16, #tpu.memory_space<vmem>>, %arg5: memref<128x128xbf16, #tpu.memory_space<vmem>>, %arg6: memref<1x128xf32, #tpu.memory_space<vmem>>, %arg7: memref<1x256x128xf32, #tpu.memory_space<vmem>>, %arg8: memref<1x1x2x128xf32, #tpu.memory_space<vmem>>) attributes {dimension_semantics = [#tpu.dimension_semantics<parallel>, #tpu.dimension_semantics<parallel>], iteration_bounds = array<i64: 2, 1>, scalar_prefetch = 0 : i64, scratch_operands = 0 : i64, tpu.core_type = #tpu.core_type<tc>, window_params = [{transform_indices = @transform_0, window_bounds = array<i64: 1, 256, 128>}, {transform_indices = @transform_1, window_bounds = array<i64: 1, 256, 128>}, {transform_indices = @transform_2, window_bounds = array<i64: 1, 256, 128>}, {pipeline_mode = #tpu.pipeline_mode<synchronous>, transform_indices = @transform_3, window_bounds = array<i64: 128, 128>}, {pipeline_mode = #tpu.pipeline_mode<synchronous>, transform_indices = @transform_4, window_bounds = array<i64: 1, 128>}, {transform_indices = @transform_5, window_bounds = array<i64: 1, 256, 128>}, {transform_indices = @transform_6, window_bounds = array<i64: 1, 1, 2, 128>}]} {
    %c0 = arith.constant 0 : index
    %c0_0 = arith.constant 0 : index
    %c0_1 = arith.constant 0 : index
    %0 = vector.load %arg2[%c0, %c0_0, %c0_1] : memref<1x256x128xbf16, #tpu.memory_space<vmem>>, vector<1x256x128xbf16>
    %1 = vector.shape_cast %0 : vector<1x256x128xbf16> to vector<256x128xbf16>
    %c0_2 = arith.constant 0 : index
    %c0_3 = arith.constant 0 : index
    %c0_4 = arith.constant 0 : index
    %2 = vector.load %arg3[%c0_2, %c0_3, %c0_4] : memref<1x256x128xbf16, #tpu.memory_space<vmem>>, vector<1x256x128xbf16>
    %3 = vector.shape_cast %2 : vector<1x256x128xbf16> to vector<256x128xbf16>
    %c0_5 = arith.constant 0 : index
    %c0_6 = arith.constant 0 : index
    %c0_7 = arith.constant 0 : index
    %4 = vector.load %arg4[%c0_5, %c0_6, %c0_7] : memref<1x256x128xbf16, #tpu.memory_space<vmem>>, vector<1x256x128xbf16>
    %5 = vector.shape_cast %4 : vector<1x256x128xbf16> to vector<256x128xbf16>
    %cst = arith.constant dense<0.000000e+00> : vector<256x256xf32>
    %6 = tpu.matmul %1, %3, %cst {dimension_numbers = #tpu.dot_dimension_numbers<[1], [1], [0], [0], [0, 0, 1, 0], [], []>} : vector<256x128xbf16>, vector<256x128xbf16>, vector<256x256xf32> -> vector<256x256xf32>
    %cst_8 = arith.constant dense<0xFF800000> : vector<256xf32>
    %7 = vector.multi_reduction <maximumf>, %6, %cst_8 [1] : vector<256x256xf32> to vector<256xf32>
    %8 = vector.shape_cast %7 : vector<256xf32> to vector<256x1xf32>
    %9 = vector.broadcast %8 : vector<256x1xf32> to vector<256x256xf32>
    %10 = arith.subf %6, %9 : vector<256x256xf32>
    %11 = math.exp %10 : vector<256x256xf32>
    %cst_9 = arith.constant dense<0.000000e+00> : vector<256xf32>
    %12 = vector.multi_reduction <add>, %11, %cst_9 [1] : vector<256x256xf32> to vector<256xf32>
    %13 = vector.shape_cast %12 : vector<256xf32> to vector<256x1xf32>
    %14 = tpu.reciprocal %13 {approx = true} : vector<256x1xf32> -> vector<256x1xf32>
    %15 = arith.truncf %11 : vector<256x256xf32> to vector<256x256xbf16>
    %cst_10 = arith.constant dense<0.000000e+00> : vector<256x128xf32>
    %16 = tpu.matmul %15, %5, %cst_10 {dimension_numbers = #tpu.dot_dimension_numbers<[1], [0], [0], [1], [0, 0, 1, 1], [], []>} : vector<256x256xbf16>, vector<256x128xbf16>, vector<256x128xf32> -> vector<256x128xf32>
    %17 = vector.broadcast %14 : vector<256x1xf32> to vector<256x128xf32>
    %18 = arith.mulf %16, %17 : vector<256x128xf32>
    %19 = arith.truncf %18 : vector<256x128xf32> to vector<256x128xbf16>
    %c0_11 = arith.constant 0 : index
    %c0_12 = arith.constant 0 : index
    %20 = vector.load %arg5[%c0_11, %c0_12] : memref<128x128xbf16, #tpu.memory_space<vmem>>, vector<128x128xbf16>
    %cst_13 = arith.constant dense<0.000000e+00> : vector<256x128xf32>
    %21 = tpu.matmul %19, %20, %cst_13 {dimension_numbers = #tpu.dot_dimension_numbers<[1], [0], [0], [1], [0, 0, 1, 1], [], []>} : vector<256x128xbf16>, vector<128x128xbf16>, vector<256x128xf32> -> vector<256x128xf32>
    %c0_14 = arith.constant 0 : index
    %c0_15 = arith.constant 0 : index
    %22 = vector.load %arg6[%c0_14, %c0_15] : memref<1x128xf32, #tpu.memory_space<vmem>>, vector<1x128xf32>
    %23 = vector.broadcast %22 : vector<1x128xf32> to vector<256x128xf32>
    %24 = arith.addf %21, %23 : vector<256x128xf32>
    %c0_16 = arith.constant 0 : index
    %c0_17 = arith.constant 0 : index
    %c0_18 = arith.constant 0 : index
    %25 = vector.load %arg7[%c0_16, %c0_17, %c0_18] : memref<1x256x128xf32, #tpu.memory_space<vmem>>, vector<1x256x128xf32>
    %26 = vector.shape_cast %25 : vector<1x256x128xf32> to vector<256x128xf32>
    %27 = vector.shape_cast %24 : vector<256x128xf32> to vector<1x256x128xf32>
    tpu.vector_store %arg7[%c0_16, %c0_17, %c0_18], %27 {strides = array<i32>} : memref<1x256x128xf32, #tpu.memory_space<vmem>>, vector<1x256x128xf32>,
    %cst_19 = arith.constant dense<0.000000e+00> : vector<128xf32>
    %28 = vector.multi_reduction <add>, %24, %cst_19 [0] : vector<256x128xf32> to vector<128xf32>
    %29 = vector.shape_cast %28 : vector<128xf32> to vector<1x128xf32>
    %30 = arith.mulf %24, %24 : vector<256x128xf32>
    %cst_20 = arith.constant dense<0.000000e+00> : vector<128xf32>
    %31 = vector.multi_reduction <add>, %30, %cst_20 [0] : vector<256x128xf32> to vector<128xf32>
    %32 = vector.shape_cast %31 : vector<128xf32> to vector<1x128xf32>
    %33 = tpu.concatenate %29, %32 in 0 : vector<1x128xf32>, vector<1x128xf32> -> vector<2x128xf32>
    %c0_21 = arith.constant 0 : index
    %c0_22 = arith.constant 0 : index
    %c0_23 = arith.constant 0 : index
    %c0_24 = arith.constant 0 : index
    %34 = vector.load %arg8[%c0_21, %c0_22, %c0_23, %c0_24] : memref<1x1x2x128xf32, #tpu.memory_space<vmem>>, vector<1x1x2x128xf32>
    %35 = vector.shape_cast %34 : vector<1x1x2x128xf32> to vector<2x128xf32>
    %36 = vector.shape_cast %33 : vector<2x128xf32> to vector<1x1x2x128xf32>
    tpu.vector_store %arg8[%c0_21, %c0_22, %c0_23, %c0_24], %36 {strides = array<i32>} : memref<1x1x2x128xf32, #tpu.memory_space<vmem>>, vector<1x1x2x128xf32>,
    return
  }
  func.func @transform_0(%arg0: i32, %arg1: i32) -> (i32, i32, i32) {
    %c0_i32 = arith.constant 0 : i32
    %c0_i32_0 = arith.constant 0 : i32
    return %arg0, %arg1, %c0_i32 : i32, i32, i32
  }
  func.func @transform_1(%arg0: i32, %arg1: i32) -> (i32, i32, i32) {
    %c0_i32 = arith.constant 0 : i32
    %c1_i32 = arith.constant 1 : i32
    %c0_i32_0 = arith.constant 0 : i32
    return %arg0, %c0_i32, %c1_i32 : i32, i32, i32
  }
  func.func @transform_2(%arg0: i32, %arg1: i32) -> (i32, i32, i32) {
    %c0_i32 = arith.constant 0 : i32
    %c2_i32 = arith.constant 2 : i32
    %c0_i32_0 = arith.constant 0 : i32
    return %arg0, %c0_i32, %c2_i32 : i32, i32, i32
  }
  func.func @transform_3(%arg0: i32, %arg1: i32) -> (i32, i32) {
    %c0_i32 = arith.constant 0 : i32
    %c0_i32_0 = arith.constant 0 : i32
    %c0_i32_1 = arith.constant 0 : i32
    return %c0_i32, %c0_i32_0 : i32, i32
  }
  func.func @transform_4(%arg0: i32, %arg1: i32) -> (i32, i32) {
    %c0_i32 = arith.constant 0 : i32
    %c0_i32_0 = arith.constant 0 : i32
    %c0_i32_1 = arith.constant 0 : i32
    return %c0_i32, %c0_i32_0 : i32, i32
  }
  func.func @transform_5(%arg0: i32, %arg1: i32) -> (i32, i32, i32) {
    %c0_i32 = arith.constant 0 : i32
    %c0_i32_0 = arith.constant 0 : i32
    return %arg0, %arg1, %c0_i32 : i32, i32, i32
  }
  func.func @transform_6(%arg0: i32, %arg1: i32) -> (i32, i32, i32, i32) {
    %c0_i32 = arith.constant 0 : i32
    %c0_i32_0 = arith.constant 0 : i32
    %c0_i32_1 = arith.constant 0 : i32
    return %arg0, %arg1, %c0_i32, %c0_i32_0 : i32, i32, i32, i32
  }
}

</mosaic_0001>

<llo_original>
// kernel: tpu_custom_call.1
$region0: #{tpu_custom_call.1}
  #allocation0 [shape = 'u32[]', space=smem, size = 0x4, offset = 0x4, fixed_abs, tag = 'smem constant byte address 0x4 - core index']
  #allocation1 [shape = 'u32[144,128]{1,0:T(1,128)}', space=vmem, size = 0x12000, scoped, tag = 'internal scratch']
  %s0 = inlined_call_operand.hbm [shape: f32[8,128], index: 0, kind: input, shape index: {}]
  %s1 = inlined_call_operand.hbm [shape: f32[8,128], index: 1, kind: output, shape index: {}]
  %s2 = sld [smem:[#allocation0]]
  $region18: #{tpu_custom_call.1} parent=0
    _
  %s4 = ssub.s32 1, %s2
  %s5 = scalar_select 0, %s4, %s2
  $region1: #{tpu_custom_call.1} parent=0
    #allocation2 [shape = 'u8[4096]{0}', space=vmem, size = 0x1000, scoped, tag = 'input window, operand 0, single buffered']
    #allocation3 [shape = 's32[1]{0}', space=sflag, size = 0x4, scoped, tag = 'scoped memory for tpu_custom_call.1']
    #allocation4 [shape = 's32[1]{0}', space=sflag, size = 0x4, scoped, tag = 'scoped memory for tpu_custom_call.1']
    #allocation5 [shape = 'u8[4096]{0}', space=vmem, size = 0x1000, scoped, tag = 'output window, operand 0, single buffered']
    %6 = vsyncpa [#allocation3], 0
    %7 = vsyncpa [#allocation4], 0
    // Predicated region
    $region2: #{tpu_custom_call.1} parent=1 // pred_check
      _
    $region3: #{tpu_custom_call.1} parent=1 // pred_check_branch
      %9 = sbr.rel (0) target = $region5
    $region4: #{tpu_custom_call.1} parent=1 // pred_region
      %s11 = ssub.s32 128, 128
      %12 = vsyncadd [#allocation3], %s11
      %s14 = sshll.u32 [#allocation2], 4
      %s15 = int_to_ptr.vmem [resolvable:$true] %s14
      %17 = dma.hbm_to_vmem [thread:$0]  %s0, 128, %s15, [#allocation3]
    $region5: #{tpu_custom_call.1} parent=1 // pred_fallthru
      _
    // Predicated region
    $region6: #{tpu_custom_call.1} parent=1 // pred_check
      _
    $region7: #{tpu_custom_call.1} parent=1 // pred_check_branch
      %19 = sbr.rel (0) target = $region9
    $region8: #{tpu_custom_call.1} parent=1 // pred_region
      %20 = dma.done [#allocation3], 128
    $region9: #{tpu_custom_call.1} parent=1 // pred_fallthru
      _
    %v21 = vld [vmem:[#allocation2] sm:$0xff]
    %v22 = vadd.f32 %v21, 1.0
    %23 = vst [vmem:[#allocation5] sm:$0xff] %v22
    // Predicated region
    $region10: #{tpu_custom_call.1} parent=1 // pred_check
      _
    $region11: #{tpu_custom_call.1} parent=1 // pred_check_branch
      %25 = sbr.rel (0) target = $region13
    $region12: #{tpu_custom_call.1} parent=1 // pred_region
      %s27 = ssub.s32 128, 128
      %28 = vsyncadd [#allocation4], %s27
      %s30 = sshll.u32 [#allocation5], 4
      %s31 = int_to_ptr.vmem [resolvable:$true] %s30
      %33 = dma.vmem_to_hbm [thread:$0]  %s31, 128, %s1, [#allocation4]
    $region13: #{tpu_custom_call.1} parent=1 // pred_fallthru
      _
    // Predicated region
    $region14: #{tpu_custom_call.1} parent=1 // pred_check
      _
    $region15: #{tpu_custom_call.1} parent=1 // pred_check_branch
      %35 = sbr.rel (0) target = $region17
    $region16: #{tpu_custom_call.1} parent=1 // pred_region
      %36 = dma.done [#allocation4], 128
    $region17: #{tpu_custom_call.1} parent=1 // pred_fallthru
      _
    %37 = vsyncpa [#allocation3], 1
    %38 = vsyncpa [#allocation4], 1

// kernel: nl_block_forward.5
$region0: #{nl_block_forward.5}
  #allocation0 [shape = 'u32[]', space=smem, size = 0x4, offset = 0x4, fixed_abs, tag = 'smem constant byte address 0x4 - core index']
  #allocation1 [shape = 'u32[144,128]{1,0:T(1,128)}', space=vmem, size = 0x12000, scoped, tag = 'internal scratch']
  %s0 = inlined_call_operand.vmem [shape: f32[2,256,128], index: 0, kind: input, shape index: {}, may-alias: {0,4}]
  %s1 = inlined_call_operand.vmem [shape: f32[2,256,128], index: 1, kind: input, shape index: {}]
  %s2 = inlined_call_operand.vmem [shape: f32[1,1,128], index: 2, kind: input, shape index: {}]
  %s3 = inlined_call_operand.vmem [shape: f32[1,1,128], index: 3, kind: input, shape index: {}]
  %s4 = inlined_call_operand.vmem [shape: f32[2,256,128], index: 4, kind: output, shape index: {}, may-alias: {0,4}]
  %s5 = sld [smem:[#allocation0]]
  $region49: #{nl_block_forward.5} parent=0
    _
  %s7 = ssub.s32 1, %s5
  %s8 = scalar_select 0, %s7, %s5
  loop: start=0, step=1, limit=4
  $region2: #{nl_block_forward.5} parent=0 // loop_pre_header
    _
  $region3: #{nl_block_forward.5} parent=0 // loop_header
    %s10 = sphi 0, %s14
    %p11 = scmp.ge.s32.totalorder %s10, 4
    %s17 = sphi 0, %s29
    %s18 = sphi 0, %s25
    %s19 = sphi 0, %s17
    %s20 = sphi 0, %s18
    %s21 = sphi 0, %s19
    %s22 = sphi 0, %s20
    %s34 = sphi 0, %s36
    %s37 = sphi 0, %s34
    %s38 = sphi 0, %s37
    %s54 = sphi 0, %s38
    %s62 = sphi 0, %s64
    %s65 = sphi 0, %s62
    %s66 = sphi 0, %s65
    %s82 = sphi 0, %s66
    %s86 = sphi 0, %s86
    %s88 = sphi 0, %s86
    %s89 = sphi 0, %s88
    %s103 = sphi 0, %s89
    %s107 = sphi 0, %s107
    %s109 = sphi 0, %s107
    %s110 = sphi 0, %s109
    %s124 = sphi 0, %s110
    %s132 = sphi 0, %s134
    %s135 = sphi 0, %s132
    %s136 = sphi 0, %s135
    %s152 = sphi 0, %s136
  $region4: #{nl_block_forward.5} parent=0 // loop_header_branch
    %13 = sbr.rel (%p11) target = $region8
  $region5: #{nl_block_forward.5} parent=0 // loop_body
    %s15 = ssub.s32 %s10, 1
    %s16 = ssub.s32 %s10, 2
    %s23 = sadd.s32 1, %s18
    %p24 = scmp.ge.s32.totalorder %s23, 1
    %s25 = scalar_select %p24, 0, %s23
    %s26 = sadd.s32 1, %s17
    %s27 = scalar_select %p24, %s26, %s17
    %p28 = scmp.ge.s32.totalorder %s27, 2
    %s29 = scalar_select %p28, 0, %s27
    %s30 = ssub.s32 %s17, %s29
    %s31 = ssub.s32 %s18, %s25
    %s32 = sor.u32 %s30, %s31
    %p33 = scmp.eq.s32.totalorder %s32, 0
    %s35 = sadd.s32 %s34, 1
    %s36 = scalar_select %p33, %s34, %s35
    %p39 = pneg %p33
    %p40 = scmp.eq.s32.totalorder %s10, 1
    %p41 = por %p39, %p40
    %p42 = scmp.ne.s32.totalorder %s34, %s37
    %p43 = scmp.eq.s32.totalorder %s10, 0
    %p44 = por %p42, %p43
    %p45 = scmp.ne.s32.totalorder %s34, %s37
    %p46 = scmp.eq.s32.totalorder %s15, 1
    %p47 = por %p45, %p46
    %p48 = scmp.ne.s32.totalorder %s37, %s38
    %p49 = scmp.eq.s32.totalorder %s15, 0
    %p50 = por %p48, %p49
    %p51 = scmp.ne.s32.totalorder %s37, %s38
    %p52 = scmp.eq.s32.totalorder %s16, 1
    %p53 = por %p51, %p52
    %p55 = scmp.ne.s32.totalorder %s38, %s54
    %p56 = scmp.eq.s32.totalorder %s16, 0
    %p57 = por %p55, %p56
    %s58 = ssub.s32 %s17, %s29
    %s59 = ssub.s32 %s18, %s25
    %s60 = sor.u32 %s58, %s59
    %p61 = scmp.eq.s32.totalorder %s60, 0
    %s63 = sadd.s32 %s62, 1
    %s64 = scalar_select %p61, %s62, %s63
    %p67 = pneg %p61
    %p68 = scmp.eq.s32.totalorder %s10, 1
    %p69 = por %p67, %p68
    %p70 = scmp.ne.s32.totalorder %s62, %s65
    %p71 = scmp.eq.s32.totalorder %s10, 0
    %p72 = por %p70, %p71
    %p73 = scmp.ne.s32.totalorder %s62, %s65
    %p74 = scmp.eq.s32.totalorder %s15, 1
    %p75 = por %p73, %p74
    %p76 = scmp.ne.s32.totalorder %s65, %s66
    %p77 = scmp.eq.s32.totalorder %s15, 0
    %p78 = por %p76, %p77
    %p79 = scmp.ne.s32.totalorder %s65, %s66
    %p80 = scmp.eq.s32.totalorder %s16, 1
    %p81 = por %p79, %p80
    %p83 = scmp.ne.s32.totalorder %s66, %s82
    %p84 = scmp.eq.s32.totalorder %s16, 0
    %p85 = por %p83, %p84
    %s87 = sadd.s32 %s86, 1
    %p90 = scmp.eq.s32.totalorder %s10, 1
    %p91 = scmp.ne.s32.totalorder %s86, %s88
    %p92 = scmp.eq.s32.totalorder %s10, 0
    %p93 = por %p91, %p92
    %p94 = scmp.ne.s32.totalorder %s86, %s88
    %p95 = scmp.eq.s32.totalorder %s15, 1
    %p96 = por %p94, %p95
    %p97 = scmp.ne.s32.totalorder %s88, %s89
    %p98 = scmp.eq.s32.totalorder %s15, 0
    %p99 = por %p97, %p98
    %p100 = scmp.ne.s32.totalorder %s88, %s89
    %p101 = scmp.eq.s32.totalorder %s16, 1
    %p102 = por %p100, %p101
    %p104 = scmp.ne.s32.totalorder %s89, %s103
    %p105 = scmp.eq.s32.totalorder %s16, 0
    %p106 = por %p104, %p105
    %s108 = sadd.s32 %s107, 1
    %p111 = scmp.eq.s32.totalorder %s10, 1
    %p112 = scmp.ne.s32.totalorder %s107, %s109
    %p113 = scmp.eq.s32.totalorder %s10, 0
    %p114 = por %p112, %p113
    %p115 = scmp.ne.s32.totalorder %s107, %s109
    %p116 = scmp.eq.s32.totalorder %s15, 1
    %p117 = por %p115, %p116
    %p118 = scmp.ne.s32.totalorder %s109, %s110
    %p119 = scmp.eq.s32.totalorder %s15, 0
    %p120 = por %p118, %p119
    %p121 = scmp.ne.s32.totalorder %s109, %s110
    %p122 = scmp.eq.s32.totalorder %s16, 1
    %p123 = por %p121, %p122
    %p125 = scmp.ne.s32.totalorder %s110, %s124
    %p126 = scmp.eq.s32.totalorder %s16, 0
    %p127 = por %p125, %p126
    %s128 = ssub.s32 %s17, %s29
    %s129 = ssub.s32 %s18, %s25
    %s130 = sor.u32 %s128, %s129
    %p131 = scmp.eq.s32.totalorder %s130, 0
    %s133 = sadd.s32 %s132, 1
    %s134 = scalar_select %p131, %s132, %s133
    %p137 = pneg %p131
    %p138 = scmp.eq.s32.totalorder %s10, 1
    %p139 = por %p137, %p138
    %p140 = scmp.ne.s32.totalorder %s132, %s135
    %p141 = scmp.eq.s32.totalorder %s10, 0
    %p142 = por %p140, %p141
    %p143 = scmp.ne.s32.totalorder %s132, %s135
    %p144 = scmp.eq.s32.totalorder %s15, 1
    %p145 = por %p143, %p144
    %p146 = scmp.ne.s32.totalorder %s135, %s136
    %p147 = scmp.eq.s32.totalorder %s15, 0
    %p148 = por %p146, %p147
    %p149 = scmp.ne.s32.totalorder %s135, %s136
    %p150 = scmp.eq.s32.totalorder %s16, 1
    %p151 = por %p149, %p150
    %p153 = scmp.ne.s32.totalorder %s136, %s152
    %p154 = scmp.eq.s32.totalorder %s16, 0
    %p155 = por %p153, %p154
    %p156 = scmp.le.s32.totalorder 1, %s10
    %p157 = scmp.lt.s32.totalorder %s10, 3
    %p158 = pnand %p156, %p157
    %p159 = pneg %p158
    // Predicated region
    $region9: #{nl_block_forward.5} parent=5 // pred_check
      _
    $region10: #{nl_block_forward.5} parent=5 // pred_check_branch
      %161 = sbr.rel (%p158) target = $region12
    $region11: #{nl_block_forward.5} parent=5 // pred_region
      %s162 = ssub.s32 %s10, 1
      // Predicated region
      $region13: #{nl_block_forward.5} parent=11 // pred_check
        %p163 = pneg %p99
      $region14: #{nl_block_forward.5} parent=11 // pred_check_branch
        %165 = sbr.rel (%p163) target = $region16
      $region15: #{nl_block_forward.5} parent=11 // pred_region
        _
      $region16: #{nl_block_forward.5} parent=11 // pred_fallthru
        _
      // Predicated region
      $region17: #{nl_block_forward.5} parent=11 // pred_check
        %p166 = pneg %p120
      $region18: #{nl_block_forward.5} parent=11 // pred_check_branch
        %168 = sbr.rel (%p166) target = $region20
      $region19: #{nl_block_forward.5} parent=11 // pred_region
        _
      $region20: #{nl_block_forward.5} parent=11 // pred_fallthru
        _
    $region12: #{nl_block_forward.5} parent=5 // pred_fallthru
      _
    %p169 = scmp.lt.s32.totalorder %s10, 2
    // Predicated region
    $region21: #{nl_block_forward.5} parent=5 // pred_check
      %p170 = pneg %p169
    $region22: #{nl_block_forward.5} parent=5 // pred_check_branch
      %172 = sbr.rel (%p170) target = $region24
    $region23: #{nl_block_forward.5} parent=5 // pred_region
      // Predicated region
      $region25: #{nl_block_forward.5} parent=23 // pred_check
        %p173 = pneg %p44
      $region26: #{nl_block_forward.5} parent=23 // pred_check_branch
        %175 = sbr.rel (%p173) target = $region28
      $region27: #{nl_block_forward.5} parent=23 // pred_region
        %s176 = smul.u32 32, %s18
        %p177 = scmp.lt.s32.totalorder %s17, 1
        %s178 = scalar_select %p177, %s17, 1
        %p179 = scmp.lt.s32.totalorder %s176, 31
        %s180 = scalar_select %p179, %s176, 31
        %s181 = smul.addr %s178, 32
        %s182 = sadd.s32 %s180, %s181
        %s183 = smul.addr %s182, 8
        %s184 = scalar_lea.vmem %s0, %s183
        %s185 = smul.u32 32, %s18
      $region28: #{nl_block_forward.5} parent=23 // pred_fallthru
        _
      // Predicated region
      $region29: #{nl_block_forward.5} parent=23 // pred_check
        %p186 = pneg %p72
      $region30: #{nl_block_forward.5} parent=23 // pred_check_branch
        %188 = sbr.rel (%p186) target = $region32
      $region31: #{nl_block_forward.5} parent=23 // pred_region
        %s189 = smul.u32 32, %s18
        %p190 = scmp.lt.s32.totalorder %s17, 1
        %s191 = scalar_select %p190, %s17, 1
        %p192 = scmp.lt.s32.totalorder %s189, 31
        %s193 = scalar_select %p192, %s189, 31
        %s194 = smul.addr %s191, 32
        %s195 = sadd.s32 %s193, %s194
        %s196 = smul.addr %s195, 8
        %s197 = scalar_lea.vmem %s1, %s196
        %s198 = smul.u32 32, %s18
      $region32: #{nl_block_forward.5} parent=23 // pred_fallthru
        _
    $region24: #{nl_block_forward.5} parent=5 // pred_fallthru
      _
    %p199 = scmp.le.s32.totalorder 1, %s10
    %p200 = scmp.lt.s32.totalorder %s10, 3
    %p201 = pnand %p199, %p200
    %p202 = pneg %p201
    // Predicated region
    $region33: #{nl_block_forward.5} parent=5 // pred_check
      _
    $region34: #{nl_block_forward.5} parent=5 // pred_check_branch
      %204 = sbr.rel (%p201) target = $region36
    $region35: #{nl_block_forward.5} parent=5 // pred_region
      %s205 = ssub.s32 %s10, 1
      %s206 = smul.u32 32, %s20
      %p207 = scmp.lt.s32.totalorder %s19, 1
      %s208 = scalar_select %p207, %s19, 1
      %p209 = scmp.lt.s32.totalorder %s206, 31
      %s210 = scalar_select %p209, %s206, 31
      %s211 = smul.addr %s208, 32
      %s212 = sadd.s32 %s210, %s211
      %s213 = smul.addr %s212, 8
      %s214 = scalar_lea.vmem %s0, %s213
      %p215 = pneg %p50
      %p216 = pneg %p47
      %s217 = smul.u32 32, %s20
      %p218 = scmp.lt.s32.totalorder %s19, 1
      %s219 = scalar_select %p218, %s19, 1
      %p220 = scmp.lt.s32.totalorder %s217, 31
      %s221 = scalar_select %p220, %s217, 31
      %s222 = smul.addr %s219, 32
      %s223 = sadd.s32 %s221, %s222
      %s224 = smul.addr %s223, 8
      %s225 = scalar_lea.vmem %s1, %s224
      %p226 = pneg %p78
      %p227 = pneg %p75
      %p228 = pneg %p99
      %p229 = pneg %p96
      %p230 = pneg %p120
      %p231 = pneg %p117
      %p232 = pneg %p148
      %p233 = pneg %p145
      %s234 = smul.u32 32, %s20
      %p235 = scmp.lt.s32.totalorder %s19, 1
      %s236 = scalar_select %p235, %s19, 1
      %p237 = scmp.lt.s32.totalorder %s234, 31
      %s238 = scalar_select %p237, %s234, 31
      %s239 = smul.addr %s236, 32
      %s240 = sadd.s32 %s238, %s239
      %s241 = smul.addr %s240, 8
      %s242 = scalar_lea.vmem %s4, %s241
      %s243 = smul.u32 32, %s20
      %p244 = scmp.lt.s32.totalorder %s19, 1
      %s245 = scalar_select %p244, %s19, 1
      %p246 = scmp.lt.s32.totalorder %s243, 31
      %s247 = scalar_select %p246, %s243, 31
      %s248 = smul.addr %s245, 32
      %s249 = sadd.s32 %s247, %s248
      %s250 = smul.addr %s249, 8
      %s251 = scalar_lea.vmem %s0, %s250
      %s252 = smul.u32 32, %s20
      %s253 = smul.u32 32, %s20
      %p254 = scmp.lt.s32.totalorder %s19, 1
      %s255 = scalar_select %p254, %s19, 1
      %p256 = scmp.lt.s32.totalorder %s253, 31
      %s257 = scalar_select %p256, %s253, 31
      %s258 = smul.addr %s255, 32
      %s259 = sadd.s32 %s257, %s258
      %s260 = smul.addr %s259, 8
      %s261 = scalar_lea.vmem %s1, %s260
      %s262 = smul.u32 32, %s20
      %s263 = smul.u32 32, %s20
      %p264 = scmp.lt.s32.totalorder %s19, 1
      %s265 = scalar_select %p264, %s19, 1
      %p266 = scmp.lt.s32.totalorder %s263, 31
      %s267 = scalar_select %p266, %s263, 31
      %s268 = smul.addr %s265, 32
      %s269 = sadd.s32 %s267, %s268
      %s270 = smul.addr %s269, 8
      %s271 = scalar_lea.vmem %s4, %s270
      %s272 = smul.u32 32, %s20
      %v273 = vld [vmem:[%s251] sm:$0xff]
      %v274 = vld [vmem:[%s251 + $0x8] sm:$0xff]
      %v275 = vld [vmem:[%s251 + $0x10] sm:$0xff]
      %v276 = vld [vmem:[%s251 + $0x18] sm:$0xff]
      %v277 = vld [vmem:[%s251 + $0x20] sm:$0xff]
      %v278 = vld [vmem:[%s251 + $0x28] sm:$0xff]
      %v279 = vld [vmem:[%s251 + $0x30] sm:$0xff]
      %v280 = vld [vmem:[%s251 + $0x38] sm:$0xff]
      %v281 = vld [vmem:[%s251 + $0x40] sm:$0xff]
      %v282 = vld [vmem:[%s251 + $0x48] sm:$0xff]
      %v283 = vld [vmem:[%s251 + $0x50] sm:$0xff]
      %v284 = vld [vmem:[%s251 + $0x58] sm:$0xff]
      %v285 = vld [vmem:[%s251 + $0x60] sm:$0xff]
      %v286 = vld [vmem:[%s251 + $0x68] sm:$0xff]
      %v287 = vld [vmem:[%s251 + $0x70] sm:$0xff]
      %v288 = vld [vmem:[%s251 + $0x78] sm:$0xff]
      %v289 = vld [vmem:[%s251 + $0x80] sm:$0xff]
      %v290 = vld [vmem:[%s251 + $0x88] sm:$0xff]
      %v291 = vld [vmem:[%s251 + $0x90] sm:$0xff]
      %v292 = vld [vmem:[%s251 + $0x98] sm:$0xff]
      %v293 = vld [vmem:[%s251 + $0xa0] sm:$0xff]
      %v294 = vld [vmem:[%s251 + $0xa8] sm:$0xff]
      %v295 = vld [vmem:[%s251 + $0xb0] sm:$0xff]
      %v296 = vld [vmem:[%s251 + $0xb8] sm:$0xff]
      %v297 = vld [vmem:[%s251 + $0xc0] sm:$0xff]
      %v298 = vld [vmem:[%s251 + $0xc8] sm:$0xff]
      %v299 = vld [vmem:[%s251 + $0xd0] sm:$0xff]
      %v300 = vld [vmem:[%s251 + $0xd8] sm:$0xff]
      %v301 = vld [vmem:[%s251 + $0xe0] sm:$0xff]
      %v302 = vld [vmem:[%s251 + $0xe8] sm:$0xff]
      %v303 = vld [vmem:[%s251 + $0xf0] sm:$0xff]
      %v304 = vld [vmem:[%s251 + $0xf8] sm:$0xff]
      %v305 = vld [vmem:[%s2] sm:$0x1]
      %v307 = vlaneseq
      %v308 = vshrl.u32 %v307, 7
      %v309 = vsub.s32 0, %v308
      %v310 = vrot.slane %v305, %v309
      %v312 = vmul.f32 %v273, %v310
      %v313 = vmul.f32 %v274, %v310
      %v314 = vmul.f32 %v275, %v310
      %v315 = vmul.f32 %v276, %v310
      %v316 = vmul.f32 %v277, %v310
      %v317 = vmul.f32 %v278, %v310
      %v318 = vmul.f32 %v279, %v310
      %v319 = vmul.f32 %v280, %v310
      %v320 = vmul.f32 %v281, %v310
      %v321 = vmul.f32 %v282, %v310
      %v322 = vmul.f32 %v283, %v310
      %v323 = vmul.f32 %v284, %v310
      %v324 = vmul.f32 %v285, %v310
      %v325 = vmul.f32 %v286, %v310
      %v326 = vmul.f32 %v287, %v310
      %v327 = vmul.f32 %v288, %v310
      %v328 = vmul.f32 %v289, %v310
      %v329 = vmul.f32 %v290, %v310
      %v330 = vmul.f32 %v291, %v310
      %v331 = vmul.f32 %v292, %v310
      %v332 = vmul.f32 %v293, %v310
      %v333 = vmul.f32 %v294, %v310
      %v334 = vmul.f32 %v295, %v310
      %v335 = vmul.f32 %v296, %v310
      %v336 = vmul.f32 %v297, %v310
      %v337 = vmul.f32 %v298, %v310
      %v338 = vmul.f32 %v299, %v310
      %v339 = vmul.f32 %v300, %v310
      %v340 = vmul.f32 %v301, %v310
      %v341 = vmul.f32 %v302, %v310
      %v342 = vmul.f32 %v303, %v310
      %v343 = vmul.f32 %v304, %v310
      %v344 = vld [vmem:[%s3] sm:$0x1]
      %v346 = vlaneseq
      %v347 = vshrl.u32 %v346, 7
      %v348 = vsub.s32 0, %v347
      %v349 = vrot.slane %v344, %v348
      %v351 = vadd.f32 %v312, %v349
      %v352 = vadd.f32 %v313, %v349
      %v353 = vadd.f32 %v314, %v349
      %v354 = vadd.f32 %v315, %v349
      %v355 = vadd.f32 %v316, %v349
      %v356 = vadd.f32 %v317, %v349
      %v357 = vadd.f32 %v318, %v349
      %v358 = vadd.f32 %v319, %v349
      %v359 = vadd.f32 %v320, %v349
      %v360 = vadd.f32 %v321, %v349
      %v361 = vadd.f32 %v322, %v349
      %v362 = vadd.f32 %v323, %v349
      %v363 = vadd.f32 %v324, %v349
      %v364 = vadd.f32 %v325, %v349
      %v365 = vadd.f32 %v326, %v349
      %v366 = vadd.f32 %v327, %v349
      %v367 = vadd.f32 %v328, %v349
      %v368 = vadd.f32 %v329, %v349
      %v369 = vadd.f32 %v330, %v349
      %v370 = vadd.f32 %v331, %v349
      %v371 = vadd.f32 %v332, %v349
      %v372 = vadd.f32 %v333, %v349
      %v373 = vadd.f32 %v334, %v349
      %v374 = vadd.f32 %v335, %v349
      %v375 = vadd.f32 %v336, %v349
      %v376 = vadd.f32 %v337, %v349
      %v377 = vadd.f32 %v338, %v349
      %v378 = vadd.f32 %v339, %v349
      %v379 = vadd.f32 %v340, %v349
      %v380 = vadd.f32 %v341, %v349
      %v381 = vadd.f32 %v342, %v349
      %v382 = vadd.f32 %v343, %v349
      %v383 = vld [vmem:[%s261] sm:$0xff]
      %v384 = vld [vmem:[%s261 + $0x8] sm:$0xff]
      %v385 = vld [vmem:[%s261 + $0x10] sm:$0xff]
      %v386 = vld [vmem:[%s261 + $0x18] sm:$0xff]
      %v387 = vld [vmem:[%s261 + $0x20] sm:$0xff]
      %v388 = vld [vmem:[%s261 + $0x28] sm:$0xff]
      %v389 = vld [vmem:[%s261 + $0x30] sm:$0xff]
      %v390 = vld [vmem:[%s261 + $0x38] sm:$0xff]
      %v391 = vld [vmem:[%s261 + $0x40] sm:$0xff]
      %v392 = vld [vmem:[%s261 + $0x48] sm:$0xff]
      %v393 = vld [vmem:[%s261 + $0x50] sm:$0xff]
      %v394 = vld [vmem:[%s261 + $0x58] sm:$0xff]
      %v395 = vld [vmem:[%s261 + $0x60] sm:$0xff]
      %v396 = vld [vmem:[%s261 + $0x68] sm:$0xff]
      %v397 = vld [vmem:[%s261 + $0x70] sm:$0xff]
      %v398 = vld [vmem:[%s261 + $0x78] sm:$0xff]
      %v399 = vld [vmem:[%s261 + $0x80] sm:$0xff]
      %v400 = vld [vmem:[%s261 + $0x88] sm:$0xff]
      %v401 = vld [vmem:[%s261 + $0x90] sm:$0xff]
      %v402 = vld [vmem:[%s261 + $0x98] sm:$0xff]
      %v403 = vld [vmem:[%s261 + $0xa0] sm:$0xff]
      %v404 = vld [vmem:[%s261 + $0xa8] sm:$0xff]
      %v405 = vld [vmem:[%s261 + $0xb0] sm:$0xff]
      %v406 = vld [vmem:[%s261 + $0xb8] sm:$0xff]
      %v407 = vld [vmem:[%s261 + $0xc0] sm:$0xff]
      %v408 = vld [vmem:[%s261 + $0xc8] sm:$0xff]
      %v409 = vld [vmem:[%s261 + $0xd0] sm:$0xff]
      %v410 = vld [vmem:[%s261 + $0xd8] sm:$0xff]
      %v411 = vld [vmem:[%s261 + $0xe0] sm:$0xff]
      %v412 = vld [vmem:[%s261 + $0xe8] sm:$0xff]
      %v413 = vld [vmem:[%s261 + $0xf0] sm:$0xff]
      %v414 = vld [vmem:[%s261 + $0xf8] sm:$0xff]
      %v415 = vadd.f32 %v351, %v383
      %v416 = vadd.f32 %v352, %v384
      %v417 = vadd.f32 %v353, %v385
      %v418 = vadd.f32 %v354, %v386
      %v419 = vadd.f32 %v355, %v387
      %v420 = vadd.f32 %v356, %v388
      %v421 = vadd.f32 %v357, %v389
      %v422 = vadd.f32 %v358, %v390
      %v423 = vadd.f32 %v359, %v391
      %v424 = vadd.f32 %v360, %v392
      %v425 = vadd.f32 %v361, %v393
      %v426 = vadd.f32 %v362, %v394
      %v427 = vadd.f32 %v363, %v395
      %v428 = vadd.f32 %v364, %v396
      %v429 = vadd.f32 %v365, %v397
      %v430 = vadd.f32 %v366, %v398
      %v431 = vadd.f32 %v367, %v399
      %v432 = vadd.f32 %v368, %v400
      %v433 = vadd.f32 %v369, %v401
      %v434 = vadd.f32 %v370, %v402
      %v435 = vadd.f32 %v371, %v403
      %v436 = vadd.f32 %v372, %v404
      %v437 = vadd.f32 %v373, %v405
      %v438 = vadd.f32 %v374, %v406
      %v439 = vadd.f32 %v375, %v407
      %v440 = vadd.f32 %v376, %v408
      %v441 = vadd.f32 %v377, %v409
      %v442 = vadd.f32 %v378, %v410
      %v443 = vadd.f32 %v379, %v411
      %v444 = vadd.f32 %v380, %v412
      %v445 = vadd.f32 %v381, %v413
      %v446 = vadd.f32 %v382, %v414
      %447 = vst [vmem:[%s271] sm:$0xff] %v415
      %448 = vst [vmem:[%s271 + $0x8] sm:$0xff] %v416
      %449 = vst [vmem:[%s271 + $0x10] sm:$0xff] %v417
      %450 = vst [vmem:[%s271 + $0x18] sm:$0xff] %v418
      %451 = vst [vmem:[%s271 + $0x20] sm:$0xff] %v419
      %452 = vst [vmem:[%s271 + $0x28] sm:$0xff] %v420
      %453 = vst [vmem:[%s271 + $0x30] sm:$0xff] %v421
      %454 = vst [vmem:[%s271 + $0x38] sm:$0xff] %v422
      %455 = vst [vmem:[%s271 + $0x40] sm:$0xff] %v423
      %456 = vst [vmem:[%s271 + $0x48] sm:$0xff] %v424
      %457 = vst [vmem:[%s271 + $0x50] sm:$0xff] %v425
      %458 = vst [vmem:[%s271 + $0x58] sm:$0xff] %v426
      %459 = vst [vmem:[%s271 + $0x60] sm:$0xff] %v427
      %460 = vst [vmem:[%s271 + $0x68] sm:$0xff] %v428
      %461 = vst [vmem:[%s271 + $0x70] sm:$0xff] %v429
      %462 = vst [vmem:[%s271 + $0x78] sm:$0xff] %v430
      %463 = vst [vmem:[%s271 + $0x80] sm:$0xff] %v431
      %464 = vst [vmem:[%s271 + $0x88] sm:$0xff] %v432
      %465 = vst [vmem:[%s271 + $0x90] sm:$0xff] %v433
      %466 = vst [vmem:[%s271 + $0x98] sm:$0xff] %v434
      %467 = vst [vmem:[%s271 + $0xa0] sm:$0xff] %v435
      %468 = vst [vmem:[%s271 + $0xa8] sm:$0xff] %v436
      %469 = vst [vmem:[%s271 + $0xb0] sm:$0xff] %v437
      %470 = vst [vmem:[%s271 + $0xb8] sm:$0xff] %v438
      %471 = vst [vmem:[%s271 + $0xc0] sm:$0xff] %v439
      %472 = vst [vmem:[%s271 + $0xc8] sm:$0xff] %v440
      %473 = vst [vmem:[%s271 + $0xd0] sm:$0xff] %v441
      %474 = vst [vmem:[%s271 + $0xd8] sm:$0xff] %v442
      %475 = vst [vmem:[%s271 + $0xe0] sm:$0xff] %v443
      %476 = vst [vmem:[%s271 + $0xe8] sm:$0xff] %v444
      %477 = vst [vmem:[%s271 + $0xf0] sm:$0xff] %v445
      %478 = vst [vmem:[%s271 + $0xf8] sm:$0xff] %v446
      %s479 = smul.u32 32, %s20
      %p480 = scmp.lt.s32.totalorder %s19, 1
      %s481 = scalar_select %p480, %s19, 1
      %p482 = scmp.lt.s32.totalorder %s479, 31
      %s483 = scalar_select %p482, %s479, 31
      %s484 = smul.addr %s481, 32
      %s485 = sadd.s32 %s483, %s484
      %s486 = smul.addr %s485, 8
      %s487 = scalar_lea.vmem %s4, %s486
      // Predicated region
      $region37: #{nl_block_forward.5} parent=35 // pred_check
        %p488 = pneg %p145
      $region38: #{nl_block_forward.5} parent=35 // pred_check_branch
        %490 = sbr.rel (%p488) target = $region40
      $region39: #{nl_block_forward.5} parent=35 // pred_region
        %s491 = smul.u32 32, %s20
      $region40: #{nl_block_forward.5} parent=35 // pred_fallthru
        _
    $region36: #{nl_block_forward.5} parent=5 // pred_fallthru
      _
    %p492 = scmp.le.s32.totalorder 2, %s10
    // Predicated region
    $region41: #{nl_block_forward.5} parent=5 // pred_check
      %p493 = pneg %p492
    $region42: #{nl_block_forward.5} parent=5 // pred_check_branch
      %495 = sbr.rel (%p493) target = $region44
    $region43: #{nl_block_forward.5} parent=5 // pred_region
      %s496 = ssub.s32 %s10, 2
      // Predicated region
      $region45: #{nl_block_forward.5} parent=43 // pred_check
        %p497 = pneg %p151
      $region46: #{nl_block_forward.5} parent=43 // pred_check_branch
        %499 = sbr.rel (%p497) target = $region48
      $region47: #{nl_block_forward.5} parent=43 // pred_region
        %s500 = smul.u32 32, %s22
        %p501 = scmp.lt.s32.totalorder %s21, 1
        %s502 = scalar_select %p501, %s21, 1
        %p503 = scmp.lt.s32.totalorder %s500, 31
        %s504 = scalar_select %p503, %s500, 31
        %s505 = smul.addr %s502, 32
        %s506 = sadd.s32 %s504, %s505
        %s507 = smul.addr %s506, 8
        %s508 = scalar_lea.vmem %s4, %s507
      $region48: #{nl_block_forward.5} parent=43 // pred_fallthru
        _
    $region44: #{nl_block_forward.5} parent=5 // pred_fallthru
      _
  $region6: #{nl_block_forward.5} parent=0 // loop_footer
    %s14 = sadd.s32 1, %s10
  $region7: #{nl_block_forward.5} parent=0 // loop_footer_branch
    %9 = sbr.rel target = $region3
  $region8: #{nl_block_forward.5} parent=0 // loop_exit
    _

// kernel: nl_block_forward.3
$region0: #{nl_block_forward.3}
  #allocation0 [shape = 'u32[]', space=smem, size = 0x4, offset = 0x4, fixed_abs, tag = 'smem constant byte address 0x4 - core index']
  #allocation1 [shape = 'u32[144,128]{1,0:T(1,128)}', space=vmem, size = 0x12000, scoped, tag = 'internal scratch']
  %s0 = inlined_call_operand.vmem [shape: f32[2,256,128], index: 0, kind: input, shape index: {}]
  %s1 = inlined_call_operand.vmem [shape: bf16[128,384], index: 1, kind: input, shape index: {}]
  %s2 = inlined_call_operand.vmem [shape: f32[1,384], index: 2, kind: input, shape index: {}]
  %s3 = inlined_call_operand.vmem [shape: bf16[2,256,384], index: 3, kind: output, shape index: {}]
  %s4 = sld [smem:[#allocation0]]
  $region45: #{nl_block_forward.3} parent=0
    _
  %s6 = ssub.s32 1, %s4
  %s7 = scalar_select 0, %s6, %s4
  loop: start=0, step=1, limit=4
  $region2: #{nl_block_forward.3} parent=0 // loop_pre_header
    _
  $region3: #{nl_block_forward.3} parent=0 // loop_header
    %s9 = sphi 0, %s13
    %p10 = scmp.ge.s32.totalorder %s9, 4
    %s16 = sphi 0, %s28
    %s17 = sphi 0, %s24
    %s18 = sphi 0, %s16
    %s19 = sphi 0, %s17
    %s20 = sphi 0, %s18
    %s21 = sphi 0, %s19
    %s33 = sphi 0, %s35
    %s36 = sphi 0, %s33
    %s37 = sphi 0, %s36
    %s53 = sphi 0, %s37
    %s57 = sphi 0, %s57
    %s59 = sphi 0, %s57
    %s60 = sphi 0, %s59
    %s74 = sphi 0, %s60
    %s78 = sphi 0, %s78
    %s80 = sphi 0, %s78
    %s81 = sphi 0, %s80
    %s95 = sphi 0, %s81
    %s103 = sphi 0, %s105
    %s106 = sphi 0, %s103
    %s107 = sphi 0, %s106
    %s123 = sphi 0, %s107
  $region4: #{nl_block_forward.3} parent=0 // loop_header_branch
    %12 = sbr.rel (%p10) target = $region8
  $region5: #{nl_block_forward.3} parent=0 // loop_body
    %s14 = ssub.s32 %s9, 1
    %s15 = ssub.s32 %s9, 2
    %s22 = sadd.s32 1, %s17
    %p23 = scmp.ge.s32.totalorder %s22, 1
    %s24 = scalar_select %p23, 0, %s22
    %s25 = sadd.s32 1, %s16
    %s26 = scalar_select %p23, %s25, %s16
    %p27 = scmp.ge.s32.totalorder %s26, 2
    %s28 = scalar_select %p27, 0, %s26
    %s29 = ssub.s32 %s16, %s28
    %s30 = ssub.s32 %s17, %s24
    %s31 = sor.u32 %s29, %s30
    %p32 = scmp.eq.s32.totalorder %s31, 0
    %s34 = sadd.s32 %s33, 1
    %s35 = scalar_select %p32, %s33, %s34
    %p38 = pneg %p32
    %p39 = scmp.eq.s32.totalorder %s9, 1
    %p40 = por %p38, %p39
    %p41 = scmp.ne.s32.totalorder %s33, %s36
    %p42 = scmp.eq.s32.totalorder %s9, 0
    %p43 = por %p41, %p42
    %p44 = scmp.ne.s32.totalorder %s33, %s36
    %p45 = scmp.eq.s32.totalorder %s14, 1
    %p46 = por %p44, %p45
    %p47 = scmp.ne.s32.totalorder %s36, %s37
    %p48 = scmp.eq.s32.totalorder %s14, 0
    %p49 = por %p47, %p48
    %p50 = scmp.ne.s32.totalorder %s36, %s37
    %p51 = scmp.eq.s32.totalorder %s15, 1
    %p52 = por %p50, %p51
    %p54 = scmp.ne.s32.totalorder %s37, %s53
    %p55 = scmp.eq.s32.totalorder %s15, 0
    %p56 = por %p54, %p55
    %s58 = sadd.s32 %s57, 1
    %p61 = scmp.eq.s32.totalorder %s9, 1
    %p62 = scmp.ne.s32.totalorder %s57, %s59
    %p63 = scmp.eq.s32.totalorder %s9, 0
    %p64 = por %p62, %p63
    %p65 = scmp.ne.s32.totalorder %s57, %s59
    %p66 = scmp.eq.s32.totalorder %s14, 1
    %p67 = por %p65, %p66
    %p68 = scmp.ne.s32.totalorder %s59, %s60
    %p69 = scmp.eq.s32.totalorder %s14, 0
    %p70 = por %p68, %p69
    %p71 = scmp.ne.s32.totalorder %s59, %s60
    %p72 = scmp.eq.s32.totalorder %s15, 1
    %p73 = por %p71, %p72
    %p75 = scmp.ne.s32.totalorder %s60, %s74
    %p76 = scmp.eq.s32.totalorder %s15, 0
    %p77 = por %p75, %p76
    %s79 = sadd.s32 %s78, 1
    %p82 = scmp.eq.s32.totalorder %s9, 1
    %p83 = scmp.ne.s32.totalorder %s78, %s80
    %p84 = scmp.eq.s32.totalorder %s9, 0
    %p85 = por %p83, %p84
    %p86 = scmp.ne.s32.totalorder %s78, %s80
    %p87 = scmp.eq.s32.totalorder %s14, 1
    %p88 = por %p86, %p87
    %p89 = scmp.ne.s32.totalorder %s80, %s81
    %p90 = scmp.eq.s32.totalorder %s14, 0
    %p91 = por %p89, %p90
    %p92 = scmp.ne.s32.totalorder %s80, %s81
    %p93 = scmp.eq.s32.totalorder %s15, 1
    %p94 = por %p92, %p93
    %p96 = scmp.ne.s32.totalorder %s81, %s95
    %p97 = scmp.eq.s32.totalorder %s15, 0
    %p98 = por %p96, %p97
    %s99 = ssub.s32 %s16, %s28
    %s100 = ssub.s32 %s17, %s24
    %s101 = sor.u32 %s99, %s100
    %p102 = scmp.eq.s32.totalorder %s101, 0
    %s104 = sadd.s32 %s103, 1
    %s105 = scalar_select %p102, %s103, %s104
    %p108 = pneg %p102
    %p109 = scmp.eq.s32.totalorder %s9, 1
    %p110 = por %p108, %p109
    %p111 = scmp.ne.s32.totalorder %s103, %s106
    %p112 = scmp.eq.s32.totalorder %s9, 0
    %p113 = por %p111, %p112
    %p114 = scmp.ne.s32.totalorder %s103, %s106
    %p115 = scmp.eq.s32.totalorder %s14, 1
    %p116 = por %p114, %p115
    %p117 = scmp.ne.s32.totalorder %s106, %s107
    %p118 = scmp.eq.s32.totalorder %s14, 0
    %p119 = por %p117, %p118
    %p120 = scmp.ne.s32.totalorder %s106, %s107
    %p121 = scmp.eq.s32.totalorder %s15, 1
    %p122 = por %p120, %p121
    %p124 = scmp.ne.s32.totalorder %s107, %s123
    %p125 = scmp.eq.s32.totalorder %s15, 0
    %p126 = por %p124, %p125
    %p127 = scmp.le.s32.totalorder 1, %s9
    %p128 = scmp.lt.s32.totalorder %s9, 3
    %p129 = pnand %p127, %p128
    %p130 = pneg %p129
    // Predicated region
    $region9: #{nl_block_forward.3} parent=5 // pred_check
      _
    $region10: #{nl_block_forward.3} parent=5 // pred_check_branch
      %132 = sbr.rel (%p129) target = $region12
    $region11: #{nl_block_forward.3} parent=5 // pred_region
      %s133 = ssub.s32 %s9, 1
      // Predicated region
      $region13: #{nl_block_forward.3} parent=11 // pred_check
        %p134 = pneg %p70
      $region14: #{nl_block_forward.3} parent=11 // pred_check_branch
        %136 = sbr.rel (%p134) target = $region16
      $region15: #{nl_block_forward.3} parent=11 // pred_region
        _
      $region16: #{nl_block_forward.3} parent=11 // pred_fallthru
        _
      // Predicated region
      $region17: #{nl_block_forward.3} parent=11 // pred_check
        %p137 = pneg %p91
      $region18: #{nl_block_forward.3} parent=11 // pred_check_branch
        %139 = sbr.rel (%p137) target = $region20
      $region19: #{nl_block_forward.3} parent=11 // pred_region
        _
      $region20: #{nl_block_forward.3} parent=11 // pred_fallthru
        _
    $region12: #{nl_block_forward.3} parent=5 // pred_fallthru
      _
    %p140 = scmp.lt.s32.totalorder %s9, 2
    // Predicated region
    $region21: #{nl_block_forward.3} parent=5 // pred_check
      %p141 = pneg %p140
    $region22: #{nl_block_forward.3} parent=5 // pred_check_branch
      %143 = sbr.rel (%p141) target = $region24
    $region23: #{nl_block_forward.3} parent=5 // pred_region
      // Predicated region
      $region25: #{nl_block_forward.3} parent=23 // pred_check
        %p144 = pneg %p43
      $region26: #{nl_block_forward.3} parent=23 // pred_check_branch
        %146 = sbr.rel (%p144) target = $region28
      $region27: #{nl_block_forward.3} parent=23 // pred_region
        %s147 = smul.u32 32, %s17
        %p148 = scmp.lt.s32.totalorder %s16, 1
        %s149 = scalar_select %p148, %s16, 1
        %p150 = scmp.lt.s32.totalorder %s147, 31
        %s151 = scalar_select %p150, %s147, 31
        %s152 = smul.addr %s149, 32
        %s153 = sadd.s32 %s151, %s152
        %s154 = smul.addr %s153, 8
        %s155 = scalar_lea.vmem %s0, %s154
        %s156 = smul.u32 32, %s17
      $region28: #{nl_block_forward.3} parent=23 // pred_fallthru
        _
    $region24: #{nl_block_forward.3} parent=5 // pred_fallthru
      _
    %p157 = scmp.le.s32.totalorder 1, %s9
    %p158 = scmp.lt.s32.totalorder %s9, 3
    %p159 = pnand %p157, %p158
    %p160 = pneg %p159
    // Predicated region
    $region29: #{nl_block_forward.3} parent=5 // pred_check
      _
    $region30: #{nl_block_forward.3} parent=5 // pred_check_branch
      %162 = sbr.rel (%p159) target = $region32
    $region31: #{nl_block_forward.3} parent=5 // pred_region
      %s163 = ssub.s32 %s9, 1
      %s164 = smul.u32 32, %s19
      %p165 = scmp.lt.s32.totalorder %s18, 1
      %s166 = scalar_select %p165, %s18, 1
      %p167 = scmp.lt.s32.totalorder %s164, 31
      %s168 = scalar_select %p167, %s164, 31
      %s169 = smul.addr %s166, 32
      %s170 = sadd.s32 %s168, %s169
      %s171 = smul.addr %s170, 8
      %s172 = scalar_lea.vmem %s0, %s171
      %p173 = pneg %p49
      %p174 = pneg %p46
      %p175 = pneg %p70
      %p176 = pneg %p67
      %p177 = pneg %p91
      %p178 = pneg %p88
      %p179 = pneg %p119
      %p180 = pneg %p116
      %s181 = smul.u32 32, %s19
      %p182 = scmp.lt.s32.totalorder %s18, 1
      %s183 = scalar_select %p182, %s18, 1
      %p184 = scmp.lt.s32.totalorder %s181, 31
      %s185 = scalar_select %p184, %s181, 31
      %s186 = smul.addr %s185, 3
      %s187 = smul.addr %s183, 96
      %s188 = sadd.s32 %s186, %s187
      %s189 = smul.addr %s188, 4
      %s190 = scalar_lea.vmem %s3, %s189
      %s191 = smul.u32 32, %s19
      %p192 = scmp.lt.s32.totalorder %s18, 1
      %s193 = scalar_select %p192, %s18, 1
      %p194 = scmp.lt.s32.totalorder %s191, 31
      %s195 = scalar_select %p194, %s191, 31
      %s196 = smul.addr %s193, 32
      %s197 = sadd.s32 %s195, %s196
      %s198 = smul.addr %s197, 8
      %s199 = scalar_lea.vmem %s0, %s198
      %s200 = smul.u32 32, %s19
      %s201 = smul.u32 32, %s19
      %p202 = scmp.lt.s32.totalorder %s18, 1
      %s203 = scalar_select %p202, %s18, 1
      %p204 = scmp.lt.s32.totalorder %s201, 31
      %s205 = scalar_select %p204, %s201, 31
      %s206 = smul.addr %s205, 3
      %s207 = smul.addr %s203, 96
      %s208 = sadd.s32 %s206, %s207
      %s209 = smul.addr %s208, 4
      %s210 = scalar_lea.vmem %s3, %s209
      %s211 = smul.u32 32, %s19
      %v213 = vld [vmem:[%s199] sm:$0xff]
      %v214 = vld [vmem:[%s199 + $0x8] sm:$0xff]
      %v215 = vld [vmem:[%s199 + $0x10] sm:$0xff]
      %v216 = vld [vmem:[%s199 + $0x18] sm:$0xff]
      %v217 = vld [vmem:[%s199 + $0x20] sm:$0xff]
      %v218 = vld [vmem:[%s199 + $0x28] sm:$0xff]
      %v219 = vld [vmem:[%s199 + $0x30] sm:$0xff]
      %v220 = vld [vmem:[%s199 + $0x38] sm:$0xff]
      %v221 = vld [vmem:[%s199 + $0x40] sm:$0xff]
      %v222 = vld [vmem:[%s199 + $0x48] sm:$0xff]
      %v223 = vld [vmem:[%s199 + $0x50] sm:$0xff]
      %v224 = vld [vmem:[%s199 + $0x58] sm:$0xff]
      %v225 = vld [vmem:[%s199 + $0x60] sm:$0xff]
      %v226 = vld [vmem:[%s199 + $0x68] sm:$0xff]
      %v227 = vld [vmem:[%s199 + $0x70] sm:$0xff]
      %v228 = vld [vmem:[%s199 + $0x78] sm:$0xff]
      %v229 = vld [vmem:[%s199 + $0x80] sm:$0xff]
      %v230 = vld [vmem:[%s199 + $0x88] sm:$0xff]
      %v231 = vld [vmem:[%s199 + $0x90] sm:$0xff]
      %v232 = vld [vmem:[%s199 + $0x98] sm:$0xff]
      %v233 = vld [vmem:[%s199 + $0xa0] sm:$0xff]
      %v234 = vld [vmem:[%s199 + $0xa8] sm:$0xff]
      %v235 = vld [vmem:[%s199 + $0xb0] sm:$0xff]
      %v236 = vld [vmem:[%s199 + $0xb8] sm:$0xff]
      %v237 = vld [vmem:[%s199 + $0xc0] sm:$0xff]
      %v238 = vld [vmem:[%s199 + $0xc8] sm:$0xff]
      %v239 = vld [vmem:[%s199 + $0xd0] sm:$0xff]
      %v240 = vld [vmem:[%s199 + $0xd8] sm:$0xff]
      %v241 = vld [vmem:[%s199 + $0xe0] sm:$0xff]
      %v242 = vld [vmem:[%s199 + $0xe8] sm:$0xff]
      %v243 = vld [vmem:[%s199 + $0xf0] sm:$0xff]
      %v244 = vld [vmem:[%s199 + $0xf8] sm:$0xff]
      %v245 = vpack.c.bf16 %v214, %v213
      %v246 = vpack.c.bf16 %v216, %v215
      %v247 = vpack.c.bf16 %v218, %v217
      %v248 = vpack.c.bf16 %v220, %v219
      %v249 = vpack.c.bf16 %v222, %v221
      %v250 = vpack.c.bf16 %v224, %v223
      %v251 = vpack.c.bf16 %v226, %v225
      %v252 = vpack.c.bf16 %v228, %v227
      %v253 = vpack.c.bf16 %v230, %v229
      %v254 = vpack.c.bf16 %v232, %v231
      %v255 = vpack.c.bf16 %v234, %v233
      %v256 = vpack.c.bf16 %v236, %v235
      %v257 = vpack.c.bf16 %v238, %v237
      %v258 = vpack.c.bf16 %v240, %v239
      %v259 = vpack.c.bf16 %v242, %v241
      %v260 = vpack.c.bf16 %v244, %v243
      %v261 = vld [vmem:[%s1] sm:$0xff]
      %v262 = vld [vmem:[%s1 + $0x8] sm:$0xf]
      %v263 = vld [vmem:[%s1 + $0xc] sm:$0xff]
      %v264 = vld [vmem:[%s1 + $0x14] sm:$0xf]
      %v265 = vld [vmem:[%s1 + $0x18] sm:$0xff]
      %v266 = vld [vmem:[%s1 + $0x20] sm:$0xf]
      %v267 = vld [vmem:[%s1 + $0x24] sm:$0xff]
      %v268 = vld [vmem:[%s1 + $0x2c] sm:$0xf]
      %v269 = vld [vmem:[%s1 + $0x30] sm:$0xff]
      %v270 = vld [vmem:[%s1 + $0x38] sm:$0xf]
      %v271 = vld [vmem:[%s1 + $0x3c] sm:$0xff]
      %v272 = vld [vmem:[%s1 + $0x44] sm:$0xf]
      %v273 = vld [vmem:[%s1 + $0x48] sm:$0xff]
      %v274 = vld [vmem:[%s1 + $0x50] sm:$0xf]
      %v275 = vld [vmem:[%s1 + $0x54] sm:$0xff]
      %v276 = vld [vmem:[%s1 + $0x5c] sm:$0xf]
      %v277 = vld [vmem:[%s1 + $0x60] sm:$0xff]
      %v278 = vld [vmem:[%s1 + $0x68] sm:$0xf]
      %v279 = vld [vmem:[%s1 + $0x6c] sm:$0xff]
      %v280 = vld [vmem:[%s1 + $0x74] sm:$0xf]
      %v281 = vld [vmem:[%s1 + $0x78] sm:$0xff]
      %v282 = vld [vmem:[%s1 + $0x80] sm:$0xf]
      %v283 = vld [vmem:[%s1 + $0x84] sm:$0xff]
      %v284 = vld [vmem:[%s1 + $0x8c] sm:$0xf]
      %v285 = vld [vmem:[%s1 + $0x90] sm:$0xff]
      %v286 = vld [vmem:[%s1 + $0x98] sm:$0xf]
      %v287 = vld [vmem:[%s1 + $0x9c] sm:$0xff]
      %v288 = vld [vmem:[%s1 + $0xa4] sm:$0xf]
      %v289 = vld [vmem:[%s1 + $0xa8] sm:$0xff]
      %v290 = vld [vmem:[%s1 + $0xb0] sm:$0xf]
      %v291 = vld [vmem:[%s1 + $0xb4] sm:$0xff]
      %v292 = vld [vmem:[%s1 + $0xbc] sm:$0xf]
      %v293 = vld [vmem:[%s2] sm:$0x7]
      %v295 = vlaneseq
      %v296 = vshrl.u32 %v295, 7
      %v297 = vsub.s32 0, %v296
      %v298 = vrot.slane %v293, %v297
      %v299 = vlaneseq
      %v300 = vshrl.u32 %v299, 7
      %v301 = vsub.s32 1, %v300
      %v302 = vrot.slane %v293, %v301
      %v303 = vlaneseq
      %v304 = vshrl.u32 %v303, 7
      %v305 = vsub.s32 2, %v304
      %v306 = vrot.slane %v293, %v305
      %v342 = vunpack.c.l.b16 %v261
      %v343 = vunpack.c.h.b16 %v261
      %v344 = vunpack.c.l.b16 %v262
      %v345 = vunpack.c.l.b16 %v263
      %v346 = vunpack.c.h.b16 %v263
      %v347 = vunpack.c.l.b16 %v264
      %v348 = vunpack.c.l.b16 %v265
      %v349 = vunpack.c.h.b16 %v265
      %v350 = vunpack.c.l.b16 %v266
      %v351 = vunpack.c.l.b16 %v267
      %v352 = vunpack.c.h.b16 %v267
      %v353 = vunpack.c.l.b16 %v268
      %v354 = vunpack.c.l.b16 %v269
      %v355 = vunpack.c.h.b16 %v269
      %v356 = vunpack.c.l.b16 %v270
      %v357 = vunpack.c.l.b16 %v271
      %v358 = vunpack.c.h.b16 %v271
      %v359 = vunpack.c.l.b16 %v272
      %v360 = vunpack.c.l.b16 %v273
      %v361 = vunpack.c.h.b16 %v273
      %v362 = vunpack.c.l.b16 %v274
      %v363 = vunpack.c.l.b16 %v275
      %v364 = vunpack.c.h.b16 %v275
      %v365 = vunpack.c.l.b16 %v276
      %v366 = vunpack.c.l.b16 %v277
      %v367 = vunpack.c.h.b16 %v277
      %v368 = vunpack.c.l.b16 %v278
      %v369 = vunpack.c.l.b16 %v279
      %v370 = vunpack.c.h.b16 %v279
      %v371 = vunpack.c.l.b16 %v280
      %v372 = vunpack.c.l.b16 %v281
      %v373 = vunpack.c.h.b16 %v281
      %v374 = vunpack.c.l.b16 %v282
      %v375 = vunpack.c.l.b16 %v283
      %v376 = vunpack.c.h.b16 %v283
      %v377 = vunpack.c.l.b16 %v284
      %v378 = vunpack.c.l.b16 %v285
      %v379 = vunpack.c.h.b16 %v285
      %v380 = vunpack.c.l.b16 %v286
      %v381 = vunpack.c.l.b16 %v287
      %v382 = vunpack.c.h.b16 %v287
      %v383 = vunpack.c.l.b16 %v288
      %v384 = vunpack.c.l.b16 %v289
      %v385 = vunpack.c.h.b16 %v289
      %v386 = vunpack.c.l.b16 %v290
      %v387 = vunpack.c.l.b16 %v291
      %v388 = vunpack.c.h.b16 %v291
      %v389 = vunpack.c.l.b16 %v292
      %v390 = vpack.c.b16 %v345, %v342
      %v391 = vpack.c.b16 %v346, %v343
      %v392 = vpack.c.b16 %v347, %v344
      %v393 = vpack.c.b16 %v351, %v348
      %v394 = vpack.c.b16 %v352, %v349
      %v395 = vpack.c.b16 %v353, %v350
      %v396 = vpack.c.b16 %v357, %v354
      %v397 = vpack.c.b16 %v358, %v355
      %v398 = vpack.c.b16 %v359, %v356
      %v399 = vpack.c.b16 %v363, %v360
      %v400 = vpack.c.b16 %v364, %v361
      %v401 = vpack.c.b16 %v365, %v362
      %v402 = vpack.c.b16 %v369, %v366
      %v403 = vpack.c.b16 %v370, %v367
      %v404 = vpack.c.b16 %v371, %v368
      %v405 = vpack.c.b16 %v375, %v372
      %v406 = vpack.c.b16 %v376, %v373
      %v407 = vpack.c.b16 %v377, %v374
      %v408 = vpack.c.b16 %v381, %v378
      %v409 = vpack.c.b16 %v382, %v379
      %v410 = vpack.c.b16 %v383, %v380
      %v411 = vpack.c.b16 %v387, %v384
      %v412 = vpack.c.b16 %v388, %v385
      %v413 = vpack.c.b16 %v389, %v386
      %438 = vmatprep.subr.bf16.mxu0 %v412
      %439 = vmatpush1.bf16.msra.mxu0 %v411
      %440 = vmatprep.subr.bf16.mxu0 %v409
      %441 = vmatpush1.bf16.msra.mxu0 %v408
      %442 = vmatprep.subr.bf16.mxu0 %v406
      %443 = vmatpush1.bf16.msra.mxu0 %v405
      %444 = vmatprep.subr.bf16.mxu0 %v403
      %445 = vmatpush1.bf16.msra.mxu0 %v402
      %446 = vmatprep.subr.bf16.mxu0 %v400
      %447 = vmatpush1.bf16.msra.mxu0 %v399
      %448 = vmatprep.subr.bf16.mxu0 %v397
      %449 = vmatpush1.bf16.msra.mxu0 %v396
      %450 = vmatprep.subr.bf16.mxu0 %v394
      %451 = vmatpush1.bf16.msra.mxu0 %v393
      %452 = vmatprep.subr.bf16.mxu0 %v391
      %453 = vmatpush1.bf16.msra.mxu0 %v390
      %454 = vmatprep.subr.bf16.mxu0 0
      %455 = vmatpush2.bf16.msra.mxu0 0
      %456 = vmatprep.subr.bf16.mxu0 0
      %457 = vmatpush2.bf16.msra.mxu0 0
      %458 = vmatprep.subr.bf16.mxu0 0
      %459 = vmatpush2.bf16.msra.mxu0 0
      %460 = vmatprep.subr.bf16.mxu0 0
      %461 = vmatpush2.bf16.msra.mxu0 0
      %462 = vmatprep.subr.bf16.mxu0 0
      %463 = vmatpush2.bf16.msra.mxu0 0
      %464 = vmatprep.subr.bf16.mxu0 0
      %465 = vmatpush2.bf16.msra.mxu0 0
      %466 = vmatprep.subr.bf16.mxu0 0
      %467 = vmatpush2.bf16.msra.mxu0 0
      %468 = vmatprep.subr.bf16.mxu0 0
      %469 = vmatpush2.bf16.msra.mxu0 0
      %470 = vmatprep.mubr.bf16.mxu0 0
      %471 = vmatmul.mubr.bf16.gmra.mxu0 %v245
      %v472 = vpop.f32.mrf.mxu0
      %v473 = vadd.f32 %v298, %v472
      %v474 = vpop.f32.mrf.mxu0
      %v475 = vadd.f32 %v302, %v474
      %v476 = vpop.f32.mrf.mxu0
      %v477 = vadd.f32 %v298, %v476
      %v478 = vpop.f32.mrf.mxu0
      %v479 = vadd.f32 %v302, %v478
      %480 = vmatprep.mubr.bf16.mxu0 0
      %481 = vmatmul.mubr.bf16.gmra.mxu0 %v246
      %v482 = vpop.f32.mrf.mxu0
      %v483 = vadd.f32 %v298, %v482
      %v484 = vpop.f32.mrf.mxu0
      %v485 = vadd.f32 %v302, %v484
      %v486 = vpop.f32.mrf.mxu0
      %v487 = vadd.f32 %v298, %v486
      %v488 = vpop.f32.mrf.mxu0
      %v489 = vadd.f32 %v302, %v488
      %490 = vmatprep.mubr.bf16.mxu0 0
      %491 = vmatmul.mubr.bf16.gmra.mxu0 %v247
      %v492 = vpop.f32.mrf.mxu0
      %v493 = vadd.f32 %v298, %v492
      %v494 = vpop.f32.mrf.mxu0
      %v495 = vadd.f32 %v302, %v494
      %v496 = vpop.f32.mrf.mxu0
      %v497 = vadd.f32 %v298, %v496
      %v498 = vpop.f32.mrf.mxu0
      %v499 = vadd.f32 %v302, %v498
      %500 = vmatprep.mubr.bf16.mxu0 0
      %501 = vmatmul.mubr.bf16.gmra.mxu0 %v248
      %v502 = vpop.f32.mrf.mxu0
      %v503 = vadd.f32 %v298, %v502
      %v504 = vpop.f32.mrf.mxu0
      %v505 = vadd.f32 %v302, %v504
      %v506 = vpop.f32.mrf.mxu0
      %v507 = vadd.f32 %v298, %v506
      %v508 = vpop.f32.mrf.mxu0
      %v509 = vadd.f32 %v302, %v508
      %510 = vmatprep.mubr.bf16.mxu0 0
      %511 = vmatmul.mubr.bf16.gmra.mxu0 %v249
      %v512 = vpop.f32.mrf.mxu0
      %v513 = vadd.f32 %v298, %v512
      %v514 = vpop.f32.mrf.mxu0
      %v515 = vadd.f32 %v302, %v514
      %v516 = vpop.f32.mrf.mxu0
      %v517 = vadd.f32 %v298, %v516
      %v518 = vpop.f32.mrf.mxu0
      %v519 = vadd.f32 %v302, %v518
      %520 = vmatprep.mubr.bf16.mxu0 0
      %521 = vmatmul.mubr.bf16.gmra.mxu0 %v250
      %v522 = vpop.f32.mrf.mxu0
      %v523 = vadd.f32 %v298, %v522
      %v524 = vpop.f32.mrf.mxu0
      %v525 = vadd.f32 %v302, %v524
      %v526 = vpop.f32.mrf.mxu0
      %v527 = vadd.f32 %v298, %v526
      %v528 = vpop.f32.mrf.mxu0
      %v529 = vadd.f32 %v302, %v528
      %530 = vmatprep.mubr.bf16.mxu0 0
      %531 = vmatmul.mubr.bf16.gmra.mxu0 %v251
      %v532 = vpop.f32.mrf.mxu0
      %v533 = vadd.f32 %v298, %v532
      %v534 = vpop.f32.mrf.mxu0
      %v535 = vadd.f32 %v302, %v534
      %v536 = vpop.f32.mrf.mxu0
      %v537 = vadd.f32 %v298, %v536
      %v538 = vpop.f32.mrf.mxu0
      %v539 = vadd.f32 %v302, %v538
      %540 = vmatprep.mubr.bf16.mxu0 0
      %541 = vmatmul.mubr.bf16.gmra.mxu0 %v252
      %v542 = vpop.f32.mrf.mxu0
      %v543 = vadd.f32 %v298, %v542
      %v544 = vpop.f32.mrf.mxu0
      %v545 = vadd.f32 %v302, %v544
      %v546 = vpop.f32.mrf.mxu0
      %v547 = vadd.f32 %v298, %v546
      %v548 = vpop.f32.mrf.mxu0
      %v549 = vadd.f32 %v302, %v548
      %550 = vmatprep.mubr.bf16.mxu0 0
      %551 = vmatmul.mubr.bf16.gmra.mxu0 %v253
      %v552 = vpop.f32.mrf.mxu0
      %v553 = vadd.f32 %v298, %v552
      %v554 = vpop.f32.mrf.mxu0
      %v555 = vadd.f32 %v302, %v554
      %v556 = vpop.f32.mrf.mxu0
      %v557 = vadd.f32 %v298, %v556
      %v558 = vpop.f32.mrf.mxu0
      %v559 = vadd.f32 %v302, %v558
      %560 = vmatprep.mubr.bf16.mxu0 0
      %561 = vmatmul.mubr.bf16.gmra.mxu0 %v254
      %v562 = vpop.f32.mrf.mxu0
      %v563 = vadd.f32 %v298, %v562
      %v564 = vpop.f32.mrf.mxu0
      %v565 = vadd.f32 %v302, %v564
      %v566 = vpop.f32.mrf.mxu0
      %v567 = vadd.f32 %v298, %v566
      %v568 = vpop.f32.mrf.mxu0
      %v569 = vadd.f32 %v302, %v568
      %570 = vmatprep.mubr.bf16.mxu0 0
      %571 = vmatmul.mubr.bf16.gmra.mxu0 %v255
      %v572 = vpop.f32.mrf.mxu0
      %v573 = vadd.f32 %v298, %v572
      %v574 = vpop.f32.mrf.mxu0
      %v575 = vadd.f32 %v302, %v574
      %v576 = vpop.f32.mrf.mxu0
      %v577 = vadd.f32 %v298, %v576
      %v578 = vpop.f32.mrf.mxu0
      %v579 = vadd.f32 %v302, %v578
      %580 = vmatprep.mubr.bf16.mxu0 0
      %581 = vmatmul.mubr.bf16.gmra.mxu0 %v256
      %v582 = vpop.f32.mrf.mxu0
      %v583 = vadd.f32 %v298, %v582
      %v584 = vpop.f32.mrf.mxu0
      %v585 = vadd.f32 %v302, %v584
      %v586 = vpop.f32.mrf.mxu0
      %v587 = vadd.f32 %v298, %v586
      %v588 = vpop.f32.mrf.mxu0
      %v589 = vadd.f32 %v302, %v588
      %590 = vmatprep.mubr.bf16.mxu0 0
      %591 = vmatmul.mubr.bf16.gmra.mxu0 %v257
      %v592 = vpop.f32.mrf.mxu0
      %v593 = vadd.f32 %v298, %v592
      %v594 = vpop.f32.mrf.mxu0
      %v595 = vadd.f32 %v302, %v594
      %v596 = vpop.f32.mrf.mxu0
      %v597 = vadd.f32 %v298, %v596
      %v598 = vpop.f32.mrf.mxu0
      %v599 = vadd.f32 %v302, %v598
      %600 = vmatprep.mubr.bf16.mxu0 0
      %601 = vmatmul.mubr.bf16.gmra.mxu0 %v258
      %v602 = vpop.f32.mrf.mxu0
      %v603 = vadd.f32 %v298, %v602
      %v604 = vpop.f32.mrf.mxu0
      %v605 = vadd.f32 %v302, %v604
      %v606 = vpop.f32.mrf.mxu0
      %v607 = vadd.f32 %v298, %v606
      %v608 = vpop.f32.mrf.mxu0
      %v609 = vadd.f32 %v302, %v608
      %610 = vmatprep.mubr.bf16.mxu0 0
      %611 = vmatmul.mubr.bf16.gmra.mxu0 %v259
      %v612 = vpop.f32.mrf.mxu0
      %v613 = vadd.f32 %v298, %v612
      %v614 = vpop.f32.mrf.mxu0
      %v615 = vadd.f32 %v302, %v614
      %v616 = vpop.f32.mrf.mxu0
      %v617 = vadd.f32 %v298, %v616
      %v618 = vpop.f32.mrf.mxu0
      %v619 = vadd.f32 %v302, %v618
      %620 = vmatprep.mubr.bf16.mxu0 0
      %621 = vmatmul.mubr.bf16.gmra.mxu0 %v260
      %v622 = vpop.f32.mrf.mxu0
      %v623 = vadd.f32 %v298, %v622
      %v624 = vpop.f32.mrf.mxu0
      %v625 = vadd.f32 %v302, %v624
      %v626 = vpop.f32.mrf.mxu0
      %v627 = vadd.f32 %v298, %v626
      %v628 = vpop.f32.mrf.mxu0
      %v629 = vadd.f32 %v302, %v628
      %630 = vdwg.mxu0
      %631 = vmatprep.subr.bf16.mxu0 0
      %632 = vmatpush1.bf16.msra.mxu0 %v413
      %633 = vmatprep.subr.bf16.mxu0 0
      %634 = vmatpush1.bf16.msra.mxu0 %v410
      %635 = vmatprep.subr.bf16.mxu0 0
      %636 = vmatpush1.bf16.msra.mxu0 %v407
      %637 = vmatprep.subr.bf16.mxu0 0
      %638 = vmatpush1.bf16.msra.mxu0 %v404
      %639 = vmatprep.subr.bf16.mxu0 0
      %640 = vmatpush1.bf16.msra.mxu0 %v401
      %641 = vmatprep.subr.bf16.mxu0 0
      %642 = vmatpush1.bf16.msra.mxu0 %v398
      %643 = vmatprep.subr.bf16.mxu0 0
      %644 = vmatpush1.bf16.msra.mxu0 %v395
      %645 = vmatprep.subr.bf16.mxu0 0
      %646 = vmatpush1.bf16.msra.mxu0 %v392
      %647 = vmatprep.subr.bf16.mxu0 0
      %648 = vmatpush2.bf16.msra.mxu0 0
      %649 = vmatprep.subr.bf16.mxu0 0
      %650 = vmatpush2.bf16.msra.mxu0 0
      %651 = vmatprep.subr.bf16.mxu0 0
      %652 = vmatpush2.bf16.msra.mxu0 0
      %653 = vmatprep.subr.bf16.mxu0 0
      %654 = vmatpush2.bf16.msra.mxu0 0
      %655 = vmatprep.subr.bf16.mxu0 0
      %656 = vmatpush2.bf16.msra.mxu0 0
      %657 = vmatprep.subr.bf16.mxu0 0
      %658 = vmatpush2.bf16.msra.mxu0 0
      %659 = vmatprep.subr.bf16.mxu0 0
      %660 = vmatpush2.bf16.msra.mxu0 0
      %661 = vmatprep.subr.bf16.mxu0 0
      %662 = vmatpush2.bf16.msra.mxu0 0
      %663 = vmatprep.mubr.bf16.mxu0 0
      %664 = vmatmul.mubr.bf16.gmra.mxu0 %v245
      %v665 = vpop.f32.mrf.mxu0
      %v666 = vadd.f32 %v306, %v665
      %v667 = vpop.f32.mrf.mxu0
      %v668 = vpop.f32.mrf.mxu0
      %v669 = vadd.f32 %v306, %v668
      %v670 = vpop.f32.mrf.mxu0
      %671 = vmatprep.mubr.bf16.mxu0 0
      %672 = vmatmul.mubr.bf16.gmra.mxu0 %v246
      %v673 = vpop.f32.mrf.mxu0
      %v674 = vadd.f32 %v306, %v673
      %v675 = vpop.f32.mrf.mxu0
      %v676 = vpop.f32.mrf.mxu0
      %v677 = vadd.f32 %v306, %v676
      %v678 = vpop.f32.mrf.mxu0
      %679 = vmatprep.mubr.bf16.mxu0 0
      %680 = vmatmul.mubr.bf16.gmra.mxu0 %v247
      %v681 = vpop.f32.mrf.mxu0
      %v682 = vadd.f32 %v306, %v681
      %v683 = vpop.f32.mrf.mxu0
      %v684 = vpop.f32.mrf.mxu0
      %v685 = vadd.f32 %v306, %v684
      %v686 = vpop.f32.mrf.mxu0
      %687 = vmatprep.mubr.bf16.mxu0 0
      %688 = vmatmul.mubr.bf16.gmra.mxu0 %v248
      %v689 = vpop.f32.mrf.mxu0
      %v690 = vadd.f32 %v306, %v689
      %v691 = vpop.f32.mrf.mxu0
      %v692 = vpop.f32.mrf.mxu0
      %v693 = vadd.f32 %v306, %v692
      %v694 = vpop.f32.mrf.mxu0
      %695 = vmatprep.mubr.bf16.mxu0 0
      %696 = vmatmul.mubr.bf16.gmra.mxu0 %v249
      %v697 = vpop.f32.mrf.mxu0
      %v698 = vadd.f32 %v306, %v697
      %v699 = vpop.f32.mrf.mxu0
      %v700 = vpop.f32.mrf.mxu0
      %v701 = vadd.f32 %v306, %v700
      %v702 = vpop.f32.mrf.mxu0
      %703 = vmatprep.mubr.bf16.mxu0 0
      %704 = vmatmul.mubr.bf16.gmra.mxu0 %v250
      %v705 = vpop.f32.mrf.mxu0
      %v706 = vadd.f32 %v306, %v705
      %v707 = vpop.f32.mrf.mxu0
      %v708 = vpop.f32.mrf.mxu0
      %v709 = vadd.f32 %v306, %v708
      %v710 = vpop.f32.mrf.mxu0
      %711 = vmatprep.mubr.bf16.mxu0 0
      %712 = vmatmul.mubr.bf16.gmra.mxu0 %v251
      %v713 = vpop.f32.mrf.mxu0
      %v714 = vadd.f32 %v306, %v713
      %v715 = vpop.f32.mrf.mxu0
      %v716 = vpop.f32.mrf.mxu0
      %v717 = vadd.f32 %v306, %v716
      %v718 = vpop.f32.mrf.mxu0
      %719 = vmatprep.mubr.bf16.mxu0 0
      %720 = vmatmul.mubr.bf16.gmra.mxu0 %v252
      %v721 = vpop.f32.mrf.mxu0
      %v722 = vadd.f32 %v306, %v721
      %v723 = vpop.f32.mrf.mxu0
      %v724 = vpop.f32.mrf.mxu0
      %v725 = vadd.f32 %v306, %v724
      %v726 = vpop.f32.mrf.mxu0
      %727 = vmatprep.mubr.bf16.mxu0 0
      %728 = vmatmul.mubr.bf16.gmra.mxu0 %v253
      %v729 = vpop.f32.mrf.mxu0
      %v730 = vadd.f32 %v306, %v729
      %v731 = vpop.f32.mrf.mxu0
      %v732 = vpop.f32.mrf.mxu0
      %v733 = vadd.f32 %v306, %v732
      %v734 = vpop.f32.mrf.mxu0
      %735 = vmatprep.mubr.bf16.mxu0 0
      %736 = vmatmul.mubr.bf16.gmra.mxu0 %v254
      %v737 = vpop.f32.mrf.mxu0
      %v738 = vadd.f32 %v306, %v737
      %v739 = vpop.f32.mrf.mxu0
      %v740 = vpop.f32.mrf.mxu0
      %v741 = vadd.f32 %v306, %v740
      %v742 = vpop.f32.mrf.mxu0
      %743 = vmatprep.mubr.bf16.mxu0 0
      %744 = vmatmul.mubr.bf16.gmra.mxu0 %v255
      %v745 = vpop.f32.mrf.mxu0
      %v746 = vadd.f32 %v306, %v745
      %v747 = vpop.f32.mrf.mxu0
      %v748 = vpop.f32.mrf.mxu0
      %v749 = vadd.f32 %v306, %v748
      %v750 = vpop.f32.mrf.mxu0
      %751 = vmatprep.mubr.bf16.mxu0 0
      %752 = vmatmul.mubr.bf16.gmra.mxu0 %v256
      %v753 = vpop.f32.mrf.mxu0
      %v754 = vadd.f32 %v306, %v753
      %v755 = vpop.f32.mrf.mxu0
      %v756 = vpop.f32.mrf.mxu0
      %v757 = vadd.f32 %v306, %v756
      %v758 = vpop.f32.mrf.mxu0
      %759 = vmatprep.mubr.bf16.mxu0 0
      %760 = vmatmul.mubr.bf16.gmra.mxu0 %v257
      %v761 = vpop.f32.mrf.mxu0
      %v762 = vadd.f32 %v306, %v761
      %v763 = vpop.f32.mrf.mxu0
      %v764 = vpop.f32.mrf.mxu0
      %v765 = vadd.f32 %v306, %v764
      %v766 = vpop.f32.mrf.mxu0
      %767 = vmatprep.mubr.bf16.mxu0 0
      %768 = vmatmul.mubr.bf16.gmra.mxu0 %v258
      %v769 = vpop.f32.mrf.mxu0
      %v770 = vadd.f32 %v306, %v769
      %v771 = vpop.f32.mrf.mxu0
      %v772 = vpop.f32.mrf.mxu0
      %v773 = vadd.f32 %v306, %v772
      %v774 = vpop.f32.mrf.mxu0
      %775 = vmatprep.mubr.bf16.mxu0 0
      %776 = vmatmul.mubr.bf16.gmra.mxu0 %v259
      %v777 = vpop.f32.mrf.mxu0
      %v778 = vadd.f32 %v306, %v777
      %v779 = vpop.f32.mrf.mxu0
      %v780 = vpop.f32.mrf.mxu0
      %v781 = vadd.f32 %v306, %v780
      %v782 = vpop.f32.mrf.mxu0
      %783 = vmatprep.mubr.bf16.mxu0 0
      %784 = vmatmul.mubr.bf16.gmra.mxu0 %v260
      %v785 = vpop.f32.mrf.mxu0
      %v786 = vadd.f32 %v306, %v785
      %v787 = vpop.f32.mrf.mxu0
      %v788 = vpop.f32.mrf.mxu0
      %v789 = vadd.f32 %v306, %v788
      %v790 = vpop.f32.mrf.mxu0
      %791 = vdwg.mxu0
      %v792 = vpack.c.bf16 %v477, %v473
      %v793 = vpack.c.bf16 %v479, %v475
      %v794 = vpack.c.bf16 %v669, %v666
      %v795 = vpack.c.bf16 %v487, %v483
      %v796 = vpack.c.bf16 %v489, %v485
      %v797 = vpack.c.bf16 %v677, %v674
      %v798 = vpack.c.bf16 %v497, %v493
      %v799 = vpack.c.bf16 %v499, %v495
      %v800 = vpack.c.bf16 %v685, %v682
      %v801 = vpack.c.bf16 %v507, %v503
      %v802 = vpack.c.bf16 %v509, %v505
      %v803 = vpack.c.bf16 %v693, %v690
      %v804 = vpack.c.bf16 %v517, %v513
      %v805 = vpack.c.bf16 %v519, %v515
      %v806 = vpack.c.bf16 %v701, %v698
      %v807 = vpack.c.bf16 %v527, %v523
      %v808 = vpack.c.bf16 %v529, %v525
      %v809 = vpack.c.bf16 %v709, %v706
      %v810 = vpack.c.bf16 %v537, %v533
      %v811 = vpack.c.bf16 %v539, %v535
      %v812 = vpack.c.bf16 %v717, %v714
      %v813 = vpack.c.bf16 %v547, %v543
      %v814 = vpack.c.bf16 %v549, %v545
      %v815 = vpack.c.bf16 %v725, %v722
      %v816 = vpack.c.bf16 %v557, %v553
      %v817 = vpack.c.bf16 %v559, %v555
      %v818 = vpack.c.bf16 %v733, %v730
      %v819 = vpack.c.bf16 %v567, %v563
      %v820 = vpack.c.bf16 %v569, %v565
      %v821 = vpack.c.bf16 %v741, %v738
      %v822 = vpack.c.bf16 %v577, %v573
      %v823 = vpack.c.bf16 %v579, %v575
      %v824 = vpack.c.bf16 %v749, %v746
      %v825 = vpack.c.bf16 %v587, %v583
      %v826 = vpack.c.bf16 %v589, %v585
      %v827 = vpack.c.bf16 %v757, %v754
      %v828 = vpack.c.bf16 %v597, %v593
      %v829 = vpack.c.bf16 %v599, %v595
      %v830 = vpack.c.bf16 %v765, %v762
      %v831 = vpack.c.bf16 %v607, %v603
      %v832 = vpack.c.bf16 %v609, %v605
      %v833 = vpack.c.bf16 %v773, %v770
      %v834 = vpack.c.bf16 %v617, %v613
      %v835 = vpack.c.bf16 %v619, %v615
      %v836 = vpack.c.bf16 %v781, %v778
      %v837 = vpack.c.bf16 %v627, %v623
      %v838 = vpack.c.bf16 %v629, %v625
      %v839 = vpack.c.bf16 %v789, %v786
      %v888 = vunpack.c.l.b16 %v792
      %v889 = vunpack.c.l.b16 %v793
      %v890 = vunpack.c.l.b16 %v794
      %v891 = vunpack.c.h.b16 %v792
      %v892 = vunpack.c.h.b16 %v793
      %v893 = vunpack.c.h.b16 %v794
      %v894 = vunpack.c.l.b16 %v795
      %v895 = vunpack.c.l.b16 %v796
      %v896 = vunpack.c.l.b16 %v797
      %v897 = vunpack.c.h.b16 %v795
      %v898 = vunpack.c.h.b16 %v796
      %v899 = vunpack.c.h.b16 %v797
      %v900 = vunpack.c.l.b16 %v798
      %v901 = vunpack.c.l.b16 %v799
      %v902 = vunpack.c.l.b16 %v800
      %v903 = vunpack.c.h.b16 %v798
      %v904 = vunpack.c.h.b16 %v799
      %v905 = vunpack.c.h.b16 %v800
      %v906 = vunpack.c.l.b16 %v801
      %v907 = vunpack.c.l.b16 %v802
      %v908 = vunpack.c.l.b16 %v803
      %v909 = vunpack.c.h.b16 %v801
      %v910 = vunpack.c.h.b16 %v802
      %v911 = vunpack.c.h.b16 %v803
      %v912 = vunpack.c.l.b16 %v804
      %v913 = vunpack.c.l.b16 %v805
      %v914 = vunpack.c.l.b16 %v806
      %v915 = vunpack.c.h.b16 %v804
      %v916 = vunpack.c.h.b16 %v805
      %v917 = vunpack.c.h.b16 %v806
      %v918 = vunpack.c.l.b16 %v807
      %v919 = vunpack.c.l.b16 %v808
      %v920 = vunpack.c.l.b16 %v809
      %v921 = vunpack.c.h.b16 %v807
      %v922 = vunpack.c.h.b16 %v808
      %v923 = vunpack.c.h.b16 %v809
      %v924 = vunpack.c.l.b16 %v810
      %v925 = vunpack.c.l.b16 %v811
      %v926 = vunpack.c.l.b16 %v812
      %v927 = vunpack.c.h.b16 %v810
      %v928 = vunpack.c.h.b16 %v811
      %v929 = vunpack.c.h.b16 %v812
      %v930 = vunpack.c.l.b16 %v813
      %v931 = vunpack.c.l.b16 %v814
      %v932 = vunpack.c.l.b16 %v815
      %v933 = vunpack.c.h.b16 %v813
      %v934 = vunpack.c.h.b16 %v814
      %v935 = vunpack.c.h.b16 %v815
      %v936 = vunpack.c.l.b16 %v816
      %v937 = vunpack.c.l.b16 %v817
      %v938 = vunpack.c.l.b16 %v818
      %v939 = vunpack.c.h.b16 %v816
      %v940 = vunpack.c.h.b16 %v817
      %v941 = vunpack.c.h.b16 %v818
      %v942 = vunpack.c.l.b16 %v819
      %v943 = vunpack.c.l.b16 %v820
      %v944 = vunpack.c.l.b16 %v821
      %v945 = vunpack.c.h.b16 %v819
      %v946 = vunpack.c.h.b16 %v820
      %v947 = vunpack.c.h.b16 %v821
      %v948 = vunpack.c.l.b16 %v822
      %v949 = vunpack.c.l.b16 %v823
      %v950 = vunpack.c.l.b16 %v824
      %v951 = vunpack.c.h.b16 %v822
      %v952 = vunpack.c.h.b16 %v823
      %v953 = vunpack.c.h.b16 %v824
      %v954 = vunpack.c.l.b16 %v825
      %v955 = vunpack.c.l.b16 %v826
      %v956 = vunpack.c.l.b16 %v827
      %v957 = vunpack.c.h.b16 %v825
      %v958 = vunpack.c.h.b16 %v826
      %v959 = vunpack.c.h.b16 %v827
      %v960 = vunpack.c.l.b16 %v828
      %v961 = vunpack.c.l.b16 %v829
      %v962 = vunpack.c.l.b16 %v830
      %v963 = vunpack.c.h.b16 %v828
      %v964 = vunpack.c.h.b16 %v829
      %v965 = vunpack.c.h.b16 %v830
      %v966 = vunpack.c.l.b16 %v831
      %v967 = vunpack.c.l.b16 %v832
      %v968 = vunpack.c.l.b16 %v833
      %v969 = vunpack.c.h.b16 %v831
      %v970 = vunpack.c.h.b16 %v832
      %v971 = vunpack.c.h.b16 %v833
      %v972 = vunpack.c.l.b16 %v834
      %v973 = vunpack.c.l.b16 %v835
      %v974 = vunpack.c.l.b16 %v836
      %v975 = vunpack.c.h.b16 %v834
      %v976 = vunpack.c.h.b16 %v835
      %v977 = vunpack.c.h.b16 %v836
      %v978 = vunpack.c.l.b16 %v837
      %v979 = vunpack.c.l.b16 %v838
      %v980 = vunpack.c.l.b16 %v839
      %v981 = vunpack.c.h.b16 %v837
      %v982 = vunpack.c.h.b16 %v838
      %v983 = vunpack.c.h.b16 %v839
      %v984 = vpack.c.b16 %v889, %v888
      %v985 = vpack.c.b16 %v890, %v890
      %v986 = vpack.c.b16 %v892, %v891
      %v987 = vpack.c.b16 %v893, %v893
      %v988 = vpack.c.b16 %v895, %v894
      %v989 = vpack.c.b16 %v896, %v896
      %v990 = vpack.c.b16 %v898, %v897
      %v991 = vpack.c.b16 %v899, %v899
      %v992 = vpack.c.b16 %v901, %v900
      %v993 = vpack.c.b16 %v902, %v902
      %v994 = vpack.c.b16 %v904, %v903
      %v995 = vpack.c.b16 %v905, %v905
      %v996 = vpack.c.b16 %v907, %v906
      %v997 = vpack.c.b16 %v908, %v908
      %v998 = vpack.c.b16 %v910, %v909
      %v999 = vpack.c.b16 %v911, %v911
      %v1000 = vpack.c.b16 %v913, %v912
      %v1001 = vpack.c.b16 %v914, %v914
      %v1002 = vpack.c.b16 %v916, %v915
      %v1003 = vpack.c.b16 %v917, %v917
      %v1004 = vpack.c.b16 %v919, %v918
      %v1005 = vpack.c.b16 %v920, %v920
      %v1006 = vpack.c.b16 %v922, %v921
      %v1007 = vpack.c.b16 %v923, %v923
      %v1008 = vpack.c.b16 %v925, %v924
      %v1009 = vpack.c.b16 %v926, %v926
      %v1010 = vpack.c.b16 %v928, %v927
      %v1011 = vpack.c.b16 %v929, %v929
      %v1012 = vpack.c.b16 %v931, %v930
      %v1013 = vpack.c.b16 %v932, %v932
      %v1014 = vpack.c.b16 %v934, %v933
      %v1015 = vpack.c.b16 %v935, %v935
      %v1016 = vpack.c.b16 %v937, %v936
      %v1017 = vpack.c.b16 %v938, %v938
      %v1018 = vpack.c.b16 %v940, %v939
      %v1019 = vpack.c.b16 %v941, %v941
      %v1020 = vpack.c.b16 %v943, %v942
      %v1021 = vpack.c.b16 %v944, %v944
      %v1022 = vpack.c.b16 %v946, %v945
      %v1023 = vpack.c.b16 %v947, %v947
      %v1024 = vpack.c.b16 %v949, %v948
      %v1025 = vpack.c.b16 %v950, %v950
      %v1026 = vpack.c.b16 %v952, %v951
      %v1027 = vpack.c.b16 %v953, %v953
      %v1028 = vpack.c.b16 %v955, %v954
      %v1029 = vpack.c.b16 %v956, %v956
      %v1030 = vpack.c.b16 %v958, %v957
      %v1031 = vpack.c.b16 %v959, %v959
      %v1032 = vpack.c.b16 %v961, %v960
      %v1033 = vpack.c.b16 %v962, %v962
      %v1034 = vpack.c.b16 %v964, %v963
      %v1035 = vpack.c.b16 %v965, %v965
      %v1036 = vpack.c.b16 %v967, %v966
      %v1037 = vpack.c.b16 %v968, %v968
      %v1038 = vpack.c.b16 %v970, %v969
      %v1039 = vpack.c.b16 %v971, %v971
      %v1040 = vpack.c.b16 %v973, %v972
      %v1041 = vpack.c.b16 %v974, %v974
      %v1042 = vpack.c.b16 %v976, %v975
      %v1043 = vpack.c.b16 %v977, %v977
      %v1044 = vpack.c.b16 %v979, %v978
      %v1045 = vpack.c.b16 %v980, %v980
      %v1046 = vpack.c.b16 %v982, %v981
      %v1047 = vpack.c.b16 %v983, %v983
      %1112 = vst [vmem:[%s210] sm:$0xff] %v984
      %1113 = vst [vmem:[%s210 + $0x8] sm:$0xf] %v985
      %1114 = vst [vmem:[%s210 + $0xc] sm:$0xff] %v986
      %1115 = vst [vmem:[%s210 + $0x14] sm:$0xf] %v987
      %1116 = vst [vmem:[%s210 + $0x18] sm:$0xff] %v988
      %1117 = vst [vmem:[%s210 + $0x20] sm:$0xf] %v989
      %1118 = vst [vmem:[%s210 + $0x24] sm:$0xff] %v990
      %1119 = vst [vmem:[%s210 + $0x2c] sm:$0xf] %v991
      %1120 = vst [vmem:[%s210 + $0x30] sm:$0xff] %v992
      %1121 = vst [vmem:[%s210 + $0x38] sm:$0xf] %v993
      %1122 = vst [vmem:[%s210 + $0x3c] sm:$0xff] %v994
      %1123 = vst [vmem:[%s210 + $0x44] sm:$0xf] %v995
      %1124 = vst [vmem:[%s210 + $0x48] sm:$0xff] %v996
      %1125 = vst [vmem:[%s210 + $0x50] sm:$0xf] %v997
      %1126 = vst [vmem:[%s210 + $0x54] sm:$0xff] %v998
      %1127 = vst [vmem:[%s210 + $0x5c] sm:$0xf] %v999
      %1128 = vst [vmem:[%s210 + $0x60] sm:$0xff] %v1000
      %1129 = vst [vmem:[%s210 + $0x68] sm:$0xf] %v1001
      %1130 = vst [vmem:[%s210 + $0x6c] sm:$0xff] %v1002
      %1131 = vst [vmem:[%s210 + $0x74] sm:$0xf] %v1003
      %1132 = vst [vmem:[%s210 + $0x78] sm:$0xff] %v1004
      %1133 = vst [vmem:[%s210 + $0x80] sm:$0xf] %v1005
      %1134 = vst [vmem:[%s210 + $0x84] sm:$0xff] %v1006
      %1135 = vst [vmem:[%s210 + $0x8c] sm:$0xf] %v1007
      %1136 = vst [vmem:[%s210 + $0x90] sm:$0xff] %v1008
      %1137 = vst [vmem:[%s210 + $0x98] sm:$0xf] %v1009
      %1138 = vst [vmem:[%s210 + $0x9c] sm:$0xff] %v1010
      %1139 = vst [vmem:[%s210 + $0xa4] sm:$0xf] %v1011
      %1140 = vst [vmem:[%s210 + $0xa8] sm:$0xff] %v1012
      %1141 = vst [vmem:[%s210 + $0xb0] sm:$0xf] %v1013
      %1142 = vst [vmem:[%s210 + $0xb4] sm:$0xff] %v1014
      %1143 = vst [vmem:[%s210 + $0xbc] sm:$0xf] %v1015
      %1144 = vst [vmem:[%s210 + $0xc0] sm:$0xff] %v1016
      %1145 = vst [vmem:[%s210 + $0xc8] sm:$0xf] %v1017
      %1146 = vst [vmem:[%s210 + $0xcc] sm:$0xff] %v1018
      %1147 = vst [vmem:[%s210 + $0xd4] sm:$0xf] %v1019
      %1148 = vst [vmem:[%s210 + $0xd8] sm:$0xff] %v1020
      %1149 = vst [vmem:[%s210 + $0xe0] sm:$0xf] %v1021
      %1150 = vst [vmem:[%s210 + $0xe4] sm:$0xff] %v1022
      %1151 = vst [vmem:[%s210 + $0xec] sm:$0xf] %v1023
      %1152 = vst [vmem:[%s210 + $0xf0] sm:$0xff] %v1024
      %1153 = vst [vmem:[%s210 + $0xf8] sm:$0xf] %v1025
      %1154 = vst [vmem:[%s210 + $0xfc] sm:$0xff] %v1026
      %1155 = vst [vmem:[%s210 + $0x104] sm:$0xf] %v1027
      %1156 = vst [vmem:[%s210 + $0x108] sm:$0xff] %v1028
      %1157 = vst [vmem:[%s210 + $0x110] sm:$0xf] %v1029
      %1158 = vst [vmem:[%s210 + $0x114] sm:$0xff] %v1030
      %1159 = vst [vmem:[%s210 + $0x11c] sm:$0xf] %v1031
      %1160 = vst [vmem:[%s210 + $0x120] sm:$0xff] %v1032
      %1161 = vst [vmem:[%s210 + $0x128] sm:$0xf] %v1033
      %1162 = vst [vmem:[%s210 + $0x12c] sm:$0xff] %v1034
      %1163 = vst [vmem:[%s210 + $0x134] sm:$0xf] %v1035
      %1164 = vst [vmem:[%s210 + $0x138] sm:$0xff] %v1036
      %1165 = vst [vmem:[%s210 + $0x140] sm:$0xf] %v1037
      %1166 = vst [vmem:[%s210 + $0x144] sm:$0xff] %v1038
      %1167 = vst [vmem:[%s210 + $0x14c] sm:$0xf] %v1039
      %1168 = vst [vmem:[%s210 + $0x150] sm:$0xff] %v1040
      %1169 = vst [vmem:[%s210 + $0x158] sm:$0xf] %v1041
      %1170 = vst [vmem:[%s210 + $0x15c] sm:$0xff] %v1042
      %1171 = vst [vmem:[%s210 + $0x164] sm:$0xf] %v1043
      %1172 = vst [vmem:[%s210 + $0x168] sm:$0xff] %v1044
      %1173 = vst [vmem:[%s210 + $0x170] sm:$0xf] %v1045
      %1174 = vst [vmem:[%s210 + $0x174] sm:$0xff] %v1046
      %1175 = vst [vmem:[%s210 + $0x17c] sm:$0xf] %v1047
      %s1176 = smul.u32 32, %s19
      %p1177 = scmp.lt.s32.totalorder %s18, 1
      %s1178 = scalar_select %p1177, %s18, 1
      %p1179 = scmp.lt.s32.totalorder %s1176, 31
      %s1180 = scalar_select %p1179, %s1176, 31
      %s1181 = smul.addr %s1180, 3
      %s1182 = smul.addr %s1178, 96
      %s1183 = sadd.s32 %s1181, %s1182
      %s1184 = smul.addr %s1183, 4
      %s1185 = scalar_lea.vmem %s3, %s1184
      // Predicated region
      $region33: #{nl_block_forward.3} parent=31 // pred_check
        %p1186 = pneg %p116
      $region34: #{nl_block_forward.3} parent=31 // pred_check_branch
        %1188 = sbr.rel (%p1186) target = $region36
      $region35: #{nl_block_forward.3} parent=31 // pred_region
        %s1189 = smul.u32 32, %s19
      $region36: #{nl_block_forward.3} parent=31 // pred_fallthru
        _
    $region32: #{nl_block_forward.3} parent=5 // pred_fallthru
      _
    %p1190 = scmp.le.s32.totalorder 2, %s9
    // Predicated region
    $region37: #{nl_block_forward.3} parent=5 // pred_check
      %p1191 = pneg %p1190
    $region38: #{nl_block_forward.3} parent=5 // pred_check_branch
      %1193 = sbr.rel (%p1191) target = $region40
    $region39: #{nl_block_forward.3} parent=5 // pred_region
      %s1194 = ssub.s32 %s9, 2
      // Predicated region
      $region41: #{nl_block_forward.3} parent=39 // pred_check
        %p1195 = pneg %p122
      $region42: #{nl_block_forward.3} parent=39 // pred_check_branch
        %1197 = sbr.rel (%p1195) target = $region44
      $region43: #{nl_block_forward.3} parent=39 // pred_region
        %s1198 = smul.u32 32, %s21
        %p1199 = scmp.lt.s32.totalorder %s20, 1
        %s1200 = scalar_select %p1199, %s20, 1
        %p1201 = scmp.lt.s32.totalorder %s1198, 31
        %s1202 = scalar_select %p1201, %s1198, 31
        %s1203 = smul.addr %s1202, 3
        %s1204 = smul.addr %s1200, 96
        %s1205 = sadd.s32 %s1203, %s1204
        %s1206 = smul.addr %s1205, 4
        %s1207 = scalar_lea.vmem %s3, %s1206
      $region44: #{nl_block_forward.3} parent=39 // pred_fallthru
        _
    $region40: #{nl_block_forward.3} parent=5 // pred_fallthru
      _
  $region6: #{nl_block_forward.3} parent=0 // loop_footer
    %s13 = sadd.s32 1, %s9
  $region7: #{nl_block_forward.3} parent=0 // loop_footer_branch
    %8 = sbr.rel target = $region3
  $region8: #{nl_block_forward.3} parent=0 // loop_exit
    _

// kernel: nl_block_forward.4
$region0: #{nl_block_forward.4}
  #allocation0 [shape = 'u32[]', space=smem, size = 0x4, offset = 0x4, fixed_abs, tag = 'smem constant byte address 0x4 - core index']
  #allocation1 [shape = 'u32[144,128]{1,0:T(1,128)}', space=vmem, size = 0x12000, scoped, tag = 'internal scratch']
  %s0 = inlined_call_operand.vmem [shape: bf16[2,256,384], index: 0, kind: input, shape index: {}, may-alias: {0,1,2}]
  %s1 = inlined_call_operand.vmem [shape: bf16[2,256,384], index: 1, kind: input, shape index: {}, may-alias: {0,1,2}]
  %s2 = inlined_call_operand.vmem [shape: bf16[2,256,384], index: 2, kind: input, shape index: {}, may-alias: {0,1,2}]
  %s3 = inlined_call_operand.vmem [shape: bf16[128,128], index: 3, kind: input, shape index: {}]
  %s4 = inlined_call_operand.vmem [shape: f32[1,128], index: 4, kind: input, shape index: {}]
  %s5 = inlined_call_operand.vmem [shape: f32[2,256,128], index: 5, kind: output, shape index: {0}]
  %s6 = inlined_call_operand.vmem [shape: f32[2,1,2,128], index: 6, kind: output, shape index: {1}]
  %7 = xla_tuple %s5, %s6
  %s8 = sld [smem:[#allocation0]]
  $region184: #{nl_block_forward.4} parent=0
    _
  %s10 = ssub.s32 1, %s8
  %s11 = scalar_select 0, %s10, %s8
  $region1: #{nl_block_forward.4} parent=0
    #allocation2 [shape = 'u8[131072]{0}', space=vmem, size = 0x20000, scoped, tag = 'input window, operand 0']
    #allocation3 [shape = 'u8[131072]{0}', space=vmem, size = 0x20000, scoped, tag = 'input window, operand 1']
    #allocation4 [shape = 'u8[131072]{0}', space=vmem, size = 0x20000, scoped, tag = 'input window, operand 2']
    loop: start=0, step=1, limit=4
    $region2: #{nl_block_forward.4} parent=1 // loop_pre_header
      _
    $region3: #{nl_block_forward.4} parent=1 // loop_header
      %s13 = sphi 0, %s17
      %p14 = scmp.ge.s32.totalorder %s13, 4
      %s20 = sphi 0, %s32
      %s21 = sphi 0, %s28
      %s22 = sphi 0, %s20
      %s23 = sphi 0, %s21
      %s24 = sphi 0, %s22
      %s25 = sphi 0, %s23
      %s37 = sphi 0, %s39
      %s40 = sphi 0, %s37
      %s41 = sphi 0, %s40
      %s57 = sphi 0, %s41
      %s63 = sphi 0, %s65
      %s66 = sphi 0, %s63
      %s67 = sphi 0, %s66
      %s83 = sphi 0, %s67
      %s89 = sphi 0, %s91
      %s92 = sphi 0, %s89
      %s93 = sphi 0, %s92
      %s109 = sphi 0, %s93
      %s113 = sphi 0, %s113
      %s115 = sphi 0, %s113
      %s116 = sphi 0, %s115
      %s130 = sphi 0, %s116
      %s134 = sphi 0, %s134
      %s136 = sphi 0, %s134
      %s137 = sphi 0, %s136
      %s151 = sphi 0, %s137
      %s159 = sphi 0, %s161
      %s162 = sphi 0, %s159
      %s163 = sphi 0, %s162
      %s179 = sphi 0, %s163
      %s187 = sphi 0, %s189
      %s190 = sphi 0, %s187
      %s191 = sphi 0, %s190
      %s207 = sphi 0, %s191
    $region4: #{nl_block_forward.4} parent=1 // loop_header_branch
      %16 = sbr.rel (%p14) target = $region8
    $region5: #{nl_block_forward.4} parent=1 // loop_body
      %s18 = ssub.s32 %s13, 1
      %s19 = ssub.s32 %s13, 2
      %s26 = sadd.s32 1, %s21
      %p27 = scmp.ge.s32.totalorder %s26, 1
      %s28 = scalar_select %p27, 0, %s26
      %s29 = sadd.s32 1, %s20
      %s30 = scalar_select %p27, %s29, %s20
      %p31 = scmp.ge.s32.totalorder %s30, 2
      %s32 = scalar_select %p31, 0, %s30
      %s33 = ssub.s32 %s20, %s32
      %s34 = ssub.s32 %s21, %s28
      %s35 = sor.u32 %s33, %s34
      %p36 = scmp.eq.s32.totalorder %s35, 0
      %s38 = sadd.s32 %s37, 1
      %s39 = scalar_select %p36, %s37, %s38
      %p42 = pneg %p36
      %p43 = scmp.eq.s32.totalorder %s13, 1
      %p44 = por %p42, %p43
      %p45 = scmp.ne.s32.totalorder %s37, %s40
      %p46 = scmp.eq.s32.totalorder %s13, 0
      %p47 = por %p45, %p46
      %p48 = scmp.ne.s32.totalorder %s37, %s40
      %p49 = scmp.eq.s32.totalorder %s18, 1
      %p50 = por %p48, %p49
      %p51 = scmp.ne.s32.totalorder %s40, %s41
      %p52 = scmp.eq.s32.totalorder %s18, 0
      %p53 = por %p51, %p52
      %p54 = scmp.ne.s32.totalorder %s40, %s41
      %p55 = scmp.eq.s32.totalorder %s19, 1
      %p56 = por %p54, %p55
      %p58 = scmp.ne.s32.totalorder %s41, %s57
      %p59 = scmp.eq.s32.totalorder %s19, 0
      %p60 = por %p58, %p59
      %s61 = ssub.s32 %s20, %s32
      %p62 = scmp.eq.s32.totalorder %s61, 0
      %s64 = sadd.s32 %s63, 1
      %s65 = scalar_select %p62, %s63, %s64
      %p68 = pneg %p62
      %p69 = scmp.eq.s32.totalorder %s13, 1
      %p70 = por %p68, %p69
      %p71 = scmp.ne.s32.totalorder %s63, %s66
      %p72 = scmp.eq.s32.totalorder %s13, 0
      %p73 = por %p71, %p72
      %p74 = scmp.ne.s32.totalorder %s63, %s66
      %p75 = scmp.eq.s32.totalorder %s18, 1
      %p76 = por %p74, %p75
      %p77 = scmp.ne.s32.totalorder %s66, %s67
      %p78 = scmp.eq.s32.totalorder %s18, 0
      %p79 = por %p77, %p78
      %p80 = scmp.ne.s32.totalorder %s66, %s67
      %p81 = scmp.eq.s32.totalorder %s19, 1
      %p82 = por %p80, %p81
      %p84 = scmp.ne.s32.totalorder %s67, %s83
      %p85 = scmp.eq.s32.totalorder %s19, 0
      %p86 = por %p84, %p85
      %s87 = ssub.s32 %s20, %s32
      %p88 = scmp.eq.s32.totalorder %s87, 0
      %s90 = sadd.s32 %s89, 1
      %s91 = scalar_select %p88, %s89, %s90
      %p94 = pneg %p88
      %p95 = scmp.eq.s32.totalorder %s13, 1
      %p96 = por %p94, %p95
      %p97 = scmp.ne.s32.totalorder %s89, %s92
      %p98 = scmp.eq.s32.totalorder %s13, 0
      %p99 = por %p97, %p98
      %p100 = scmp.ne.s32.totalorder %s89, %s92
      %p101 = scmp.eq.s32.totalorder %s18, 1
      %p102 = por %p100, %p101
      %p103 = scmp.ne.s32.totalorder %s92, %s93
      %p104 = scmp.eq.s32.totalorder %s18, 0
      %p105 = por %p103, %p104
      %p106 = scmp.ne.s32.totalorder %s92, %s93
      %p107 = scmp.eq.s32.totalorder %s19, 1
      %p108 = por %p106, %p107
      %p110 = scmp.ne.s32.totalorder %s93, %s109
      %p111 = scmp.eq.s32.totalorder %s19, 0
      %p112 = por %p110, %p111
      %s114 = sadd.s32 %s113, 1
      %p117 = scmp.eq.s32.totalorder %s13, 1
      %p118 = scmp.ne.s32.totalorder %s113, %s115
      %p119 = scmp.eq.s32.totalorder %s13, 0
      %p120 = por %p118, %p119
      %p121 = scmp.ne.s32.totalorder %s113, %s115
      %p122 = scmp.eq.s32.totalorder %s18, 1
      %p123 = por %p121, %p122
      %p124 = scmp.ne.s32.totalorder %s115, %s116
      %p125 = scmp.eq.s32.totalorder %s18, 0
      %p126 = por %p124, %p125
      %p127 = scmp.ne.s32.totalorder %s115, %s116
      %p128 = scmp.eq.s32.totalorder %s19, 1
      %p129 = por %p127, %p128
      %p131 = scmp.ne.s32.totalorder %s116, %s130
      %p132 = scmp.eq.s32.totalorder %s19, 0
      %p133 = por %p131, %p132
      %s135 = sadd.s32 %s134, 1
      %p138 = scmp.eq.s32.totalorder %s13, 1
      %p139 = scmp.ne.s32.totalorder %s134, %s136
      %p140 = scmp.eq.s32.totalorder %s13, 0
      %p141 = por %p139, %p140
      %p142 = scmp.ne.s32.totalorder %s134, %s136
      %p143 = scmp.eq.s32.totalorder %s18, 1
      %p144 = por %p142, %p143
      %p145 = scmp.ne.s32.totalorder %s136, %s137
      %p146 = scmp.eq.s32.totalorder %s18, 0
      %p147 = por %p145, %p146
      %p148 = scmp.ne.s32.totalorder %s136, %s137
      %p149 = scmp.eq.s32.totalorder %s19, 1
      %p150 = por %p148, %p149
      %p152 = scmp.ne.s32.totalorder %s137, %s151
      %p153 = scmp.eq.s32.totalorder %s19, 0
      %p154 = por %p152, %p153
      %s155 = ssub.s32 %s20, %s32
      %s156 = ssub.s32 %s21, %s28
      %s157 = sor.u32 %s155, %s156
      %p158 = scmp.eq.s32.totalorder %s157, 0
      %s160 = sadd.s32 %s159, 1
      %s161 = scalar_select %p158, %s159, %s160
      %p164 = pneg %p158
      %p165 = scmp.eq.s32.totalorder %s13, 1
      %p166 = por %p164, %p165
      %p167 = scmp.ne.s32.totalorder %s159, %s162
      %p168 = scmp.eq.s32.totalorder %s13, 0
      %p169 = por %p167, %p168
      %p170 = scmp.ne.s32.totalorder %s159, %s162
      %p171 = scmp.eq.s32.totalorder %s18, 1
      %p172 = por %p170, %p171
      %p173 = scmp.ne.s32.totalorder %s162, %s163
      %p174 = scmp.eq.s32.totalorder %s18, 0
      %p175 = por %p173, %p174
      %p176 = scmp.ne.s32.totalorder %s162, %s163
      %p177 = scmp.eq.s32.totalorder %s19, 1
      %p178 = por %p176, %p177
      %p180 = scmp.ne.s32.totalorder %s163, %s179
      %p181 = scmp.eq.s32.totalorder %s19, 0
      %p182 = por %p180, %p181
      %s183 = ssub.s32 %s20, %s32
      %s184 = ssub.s32 %s21, %s28
      %s185 = sor.u32 %s183, %s184
      %p186 = scmp.eq.s32.totalorder %s185, 0
      %s188 = sadd.s32 %s187, 1
      %s189 = scalar_select %p186, %s187, %s188
      %p192 = pneg %p186
      %p193 = scmp.eq.s32.totalorder %s13, 1
      %p194 = por %p192, %p193
      %p195 = scmp.ne.s32.totalorder %s187, %s190
      %p196 = scmp.eq.s32.totalorder %s13, 0
      %p197 = por %p195, %p196
      %p198 = scmp.ne.s32.totalorder %s187, %s190
      %p199 = scmp.eq.s32.totalorder %s18, 1
      %p200 = por %p198, %p199
      %p201 = scmp.ne.s32.totalorder %s190, %s191
      %p202 = scmp.eq.s32.totalorder %s18, 0
      %p203 = por %p201, %p202
      %p204 = scmp.ne.s32.totalorder %s190, %s191
      %p205 = scmp.eq.s32.totalorder %s19, 1
      %p206 = por %p204, %p205
      %p208 = scmp.ne.s32.totalorder %s191, %s207
      %p209 = scmp.eq.s32.totalorder %s19, 0
      %p210 = por %p208, %p209
      %p211 = scmp.le.s32.totalorder 1, %s13
      %p212 = scmp.lt.s32.totalorder %s13, 3
      %p213 = pnand %p211, %p212
      %p214 = pneg %p213
      // Predicated region
      $region9: #{nl_block_forward.4} parent=5 // pred_check
        _
      $region10: #{nl_block_forward.4} parent=5 // pred_check_branch
        %216 = sbr.rel (%p213) target = $region12
      $region11: #{nl_block_forward.4} parent=5 // pred_region
        %s217 = ssub.s32 %s13, 1
        // Predicated region
        $region13: #{nl_block_forward.4} parent=11 // pred_check
          %p218 = pneg %p126
        $region14: #{nl_block_forward.4} parent=11 // pred_check_branch
          %220 = sbr.rel (%p218) target = $region16
        $region15: #{nl_block_forward.4} parent=11 // pred_region
          _
        $region16: #{nl_block_forward.4} parent=11 // pred_fallthru
          _
        // Predicated region
        $region17: #{nl_block_forward.4} parent=11 // pred_check
          %p221 = pneg %p147
        $region18: #{nl_block_forward.4} parent=11 // pred_check_branch
          %223 = sbr.rel (%p221) target = $region20
        $region19: #{nl_block_forward.4} parent=11 // pred_region
          _
        $region20: #{nl_block_forward.4} parent=11 // pred_fallthru
          _
      $region12: #{nl_block_forward.4} parent=5 // pred_fallthru
        _
      %p224 = scmp.lt.s32.totalorder %s13, 2
      // Predicated region
      $region21: #{nl_block_forward.4} parent=5 // pred_check
        %p225 = pneg %p224
      $region22: #{nl_block_forward.4} parent=5 // pred_check_branch
        %227 = sbr.rel (%p225) target = $region24
      $region23: #{nl_block_forward.4} parent=5 // pred_region
        // Predicated region
        $region25: #{nl_block_forward.4} parent=23 // pred_check
          %p228 = pneg %p47
        $region26: #{nl_block_forward.4} parent=23 // pred_check_branch
          %230 = sbr.rel (%p228) target = $region28
        $region27: #{nl_block_forward.4} parent=23 // pred_region
          %s231 = sand.u32 %s37, 1
          %s232 = sand.u32 %s37, 1
          %s233 = smul.addr %s232, 128
          %s234 = scalar_lea.vmem [#allocation2], %s233
          %s235 = smul.u32 32, %s21
          %s236 = smul.addr %s235, 3
          %s237 = smul.addr %s20, 96
          %s238 = sadd.s32 %s236, %s237
          %s239 = smul.addr %s238, 4
          %s240 = scalar_lea.vmem %s0, %s239
          // Predicated region
          $region29: #{nl_block_forward.4} parent=27 // pred_check
            _
          $region30: #{nl_block_forward.4} parent=27 // pred_check_branch
            %242 = sbr.rel (0) target = $region32
          $region31: #{nl_block_forward.4} parent=27 // pred_region
            // Predicated region
            $region33: #{nl_block_forward.4} parent=31 // pred_check
              _
            $region34: #{nl_block_forward.4} parent=31 // pred_check_branch
              %244 = sbr.rel target = $region36
            $region35: #{nl_block_forward.4} parent=31 // pred_region
              // Predicated region
              $region48: #{nl_block_forward.4} parent=35 // pred_check
                _
              $region49: #{nl_block_forward.4} parent=35 // pred_check_branch
                %322 = sbr.rel (0) target = $region51
              $region50: #{nl_block_forward.4} parent=35 // pred_region
                loop: start=0, step=1, limit=1
                $region52: #{nl_block_forward.4} parent=50 // loop_pre_header
                  _
                $region53: #{nl_block_forward.4} parent=50 // loop_header
                  %s324 = sphi 0, %s328
                  %p325 = scmp.ge.s32.totalorder %s324, 1
                  %s329 = sphi %s240, %s240
                  %s330 = sphi %s234, %s234
                $region54: #{nl_block_forward.4} parent=50 // loop_header_branch
                  %327 = sbr.rel (%p325) target = $region58
                $region55: #{nl_block_forward.4} parent=50 // loop_body
                  _
                $region56: #{nl_block_forward.4} parent=50 // loop_footer
                  %s328 = sadd.s32 1, %s324
                $region57: #{nl_block_forward.4} parent=50 // loop_footer_branch
                  %323 = sbr.rel target = $region53
                $region58: #{nl_block_forward.4} parent=50 // loop_exit
                  _
                %s332 = ssub.s32 16, 1
                loop: start=0, step=1, limit=1
                $region59: #{nl_block_forward.4} parent=50 // loop_pre_header
                  _
                $region60: #{nl_block_forward.4} parent=50 // loop_header
                  %s334 = sphi 0, %s338
                  %p335 = scmp.ge.s32.totalorder %s334, 1
                  %s339 = sphi %s240, %s240
                  %s340 = sphi %s234, %s234
                $region61: #{nl_block_forward.4} parent=50 // loop_header_branch
                  %337 = sbr.rel (%p335) target = $region65
                $region62: #{nl_block_forward.4} parent=50 // loop_body
                  %v341 = vld [vmem:[%s339] sm:%s332]
                  %342 = vst [vmem:[%s340] sm:%s332] %v341
                  %v343 = vld [vmem:[%s339 + $0xc] sm:%s332]
                  %344 = vst [vmem:[%s340 + $0x4] sm:%s332] %v343
                  %v345 = vld [vmem:[%s339 + $0x18] sm:%s332]
                  %346 = vst [vmem:[%s340 + $0x8] sm:%s332] %v345
                  %v347 = vld [vmem:[%s339 + $0x24] sm:%s332]
                  %348 = vst [vmem:[%s340 + $0xc] sm:%s332] %v347
                  %v349 = vld [vmem:[%s339 + $0x30] sm:%s332]
                  %350 = vst [vmem:[%s340 + $0x10] sm:%s332] %v349
                  %v351 = vld [vmem:[%s339 + $0x3c] sm:%s332]
                  %352 = vst [vmem:[%s340 + $0x14] sm:%s332] %v351
                  %v353 = vld [vmem:[%s339 + $0x48] sm:%s332]
                  %354 = vst [vmem:[%s340 + $0x18] sm:%s332] %v353
                  %v355 = vld [vmem:[%s339 + $0x54] sm:%s332]
                  %356 = vst [vmem:[%s340 + $0x1c] sm:%s332] %v355
                  %v357 = vld [vmem:[%s339 + $0x60] sm:%s332]
                  %358 = vst [vmem:[%s340 + $0x20] sm:%s332] %v357
                  %v359 = vld [vmem:[%s339 + $0x6c] sm:%s332]
                  %360 = vst [vmem:[%s340 + $0x24] sm:%s332] %v359
                  %v361 = vld [vmem:[%s339 + $0x78] sm:%s332]
                  %362 = vst [vmem:[%s340 + $0x28] sm:%s332] %v361
                  %v363 = vld [vmem:[%s339 + $0x84] sm:%s332]
                  %364 = vst [vmem:[%s340 + $0x2c] sm:%s332] %v363
                  %v365 = vld [vmem:[%s339 + $0x90] sm:%s332]
                  %366 = vst [vmem:[%s340 + $0x30] sm:%s332] %v365
                  %v367 = vld [vmem:[%s339 + $0x9c] sm:%s332]
                  %368 = vst [vmem:[%s340 + $0x34] sm:%s332] %v367
                  %v369 = vld [vmem:[%s339 + $0xa8] sm:%s332]
                  %370 = vst [vmem:[%s340 + $0x38] sm:%s332] %v369
                  %v371 = vld [vmem:[%s339 + $0xb4] sm:%s332]
                  %372 = vst [vmem:[%s340 + $0x3c] sm:%s332] %v371
                  %v373 = vld [vmem:[%s339 + $0xc0] sm:%s332]
                  %374 = vst [vmem:[%s340 + $0x40] sm:%s332] %v373
                  %v375 = vld [vmem:[%s339 + $0xcc] sm:%s332]
                  %376 = vst [vmem:[%s340 + $0x44] sm:%s332] %v375
                  %v377 = vld [vmem:[%s339 + $0xd8] sm:%s332]
                  %378 = vst [vmem:[%s340 + $0x48] sm:%s332] %v377
                  %v379 = vld [vmem:[%s339 + $0xe4] sm:%s332]
                  %380 = vst [vmem:[%s340 + $0x4c] sm:%s332] %v379
                  %v381 = vld [vmem:[%s339 + $0xf0] sm:%s332]
                  %382 = vst [vmem:[%s340 + $0x50] sm:%s332] %v381
                  %v383 = vld [vmem:[%s339 + $0xfc] sm:%s332]
                  %384 = vst [vmem:[%s340 + $0x54] sm:%s332] %v383
                  %v385 = vld [vmem:[%s339 + $0x108] sm:%s332]
                  %386 = vst [vmem:[%s340 + $0x58] sm:%s332] %v385
                  %v387 = vld [vmem:[%s339 + $0x114] sm:%s332]
                  %388 = vst [vmem:[%s340 + $0x5c] sm:%s332] %v387
                  %v389 = vld [vmem:[%s339 + $0x120] sm:%s332]
                  %390 = vst [vmem:[%s340 + $0x60] sm:%s332] %v389
                  %v391 = vld [vmem:[%s339 + $0x12c] sm:%s332]
                  %392 = vst [vmem:[%s340 + $0x64] sm:%s332] %v391
                  %v393 = vld [vmem:[%s339 + $0x138] sm:%s332]
                  %394 = vst [vmem:[%s340 + $0x68] sm:%s332] %v393
                  %v395 = vld [vmem:[%s339 + $0x144] sm:%s332]
                  %396 = vst [vmem:[%s340 + $0x6c] sm:%s332] %v395
                  %v397 = vld [vmem:[%s339 + $0x150] sm:%s332]
                  %398 = vst [vmem:[%s340 + $0x70] sm:%s332] %v397
                  %v399 = vld [vmem:[%s339 + $0x15c] sm:%s332]
                  %400 = vst [vmem:[%s340 + $0x74] sm:%s332] %v399
                  %v401 = vld [vmem:[%s339 + $0x168] sm:%s332]
                  %402 = vst [vmem:[%s340 + $0x78] sm:%s332] %v401
                  %v403 = vld [vmem:[%s339 + $0x174] sm:%s332]
                  %404 = vst [vmem:[%s340 + $0x7c] sm:%s332] %v403
                $region63: #{nl_block_forward.4} parent=50 // loop_footer
                  %s338 = sadd.s32 1, %s334
                $region64: #{nl_block_forward.4} parent=50 // loop_footer_branch
                  %333 = sbr.rel target = $region60
                $region65: #{nl_block_forward.4} parent=50 // loop_exit
                  _
              $region51: #{nl_block_forward.4} parent=35 // pred_fallthru
                _
            $region36: #{nl_block_forward.4} parent=31 // pred_fallthru
              _
            // Predicated region
            $region37: #{nl_block_forward.4} parent=31 // pred_check
              _
            $region38: #{nl_block_forward.4} parent=31 // pred_check_branch
              %246 = sbr.rel (0) target = $region40
            $region39: #{nl_block_forward.4} parent=31 // pred_region
              %s248 = ssub.s32 16, 1
              loop: start=0, step=1, limit=1
              $region41: #{nl_block_forward.4} parent=39 // loop_pre_header
                _
              $region42: #{nl_block_forward.4} parent=39 // loop_header
                %s250 = sphi 0, %s254
                %p251 = scmp.ge.s32.totalorder %s250, 1
                %s255 = sphi %s240, %s240
                %s256 = sphi %s234, %s234
              $region43: #{nl_block_forward.4} parent=39 // loop_header_branch
                %253 = sbr.rel (%p251) target = $region47
              $region44: #{nl_block_forward.4} parent=39 // loop_body
                %v257 = vld [vmem:[%s255] sm:%s248]
                %258 = vst [vmem:[%s256] sm:%s248] %v257
                %v259 = vld [vmem:[%s255 + $0xc] sm:%s248]
                %260 = vst [vmem:[%s256 + $0x4] sm:%s248] %v259
                %v261 = vld [vmem:[%s255 + $0x18] sm:%s248]
                %262 = vst [vmem:[%s256 + $0x8] sm:%s248] %v261
                %v263 = vld [vmem:[%s255 + $0x24] sm:%s248]
                %264 = vst [vmem:[%s256 + $0xc] sm:%s248] %v263
                %v265 = vld [vmem:[%s255 + $0x30] sm:%s248]
                %266 = vst [vmem:[%s256 + $0x10] sm:%s248] %v265
                %v267 = vld [vmem:[%s255 + $0x3c] sm:%s248]
                %268 = vst [vmem:[%s256 + $0x14] sm:%s248] %v267
                %v269 = vld [vmem:[%s255 + $0x48] sm:%s248]
                %270 = vst [vmem:[%s256 + $0x18] sm:%s248] %v269
                %v271 = vld [vmem:[%s255 + $0x54] sm:%s248]
                %272 = vst [vmem:[%s256 + $0x1c] sm:%s248] %v271
                %v273 = vld [vmem:[%s255 + $0x60] sm:%s248]
                %274 = vst [vmem:[%s256 + $0x20] sm:%s248] %v273
                %v275 = vld [vmem:[%s255 + $0x6c] sm:%s248]
                %276 = vst [vmem:[%s256 + $0x24] sm:%s248] %v275
                %v277 = vld [vmem:[%s255 + $0x78] sm:%s248]
                %278 = vst [vmem:[%s256 + $0x28] sm:%s248] %v277
                %v279 = vld [vmem:[%s255 + $0x84] sm:%s248]
                %280 = vst [vmem:[%s256 + $0x2c] sm:%s248] %v279
                %v281 = vld [vmem:[%s255 + $0x90] sm:%s248]
                %282 = vst [vmem:[%s256 + $0x30] sm:%s248] %v281
                %v283 = vld [vmem:[%s255 + $0x9c] sm:%s248]
                %284 = vst [vmem:[%s256 + $0x34] sm:%s248] %v283
                %v285 = vld [vmem:[%s255 + $0xa8] sm:%s248]
                %286 = vst [vmem:[%s256 + $0x38] sm:%s248] %v285
                %v287 = vld [vmem:[%s255 + $0xb4] sm:%s248]
                %288 = vst [vmem:[%s256 + $0x3c] sm:%s248] %v287
                %v289 = vld [vmem:[%s255 + $0xc0] sm:%s248]
                %290 = vst [vmem:[%s256 + $0x40] sm:%s248] %v289
                %v291 = vld [vmem:[%s255 + $0xcc] sm:%s248]
                %292 = vst [vmem:[%s256 + $0x44] sm:%s248] %v291
                %v293 = vld [vmem:[%s255 + $0xd8] sm:%s248]
                %294 = vst [vmem:[%s256 + $0x48] sm:%s248] %v293
                %v295 = vld [vmem:[%s255 + $0xe4] sm:%s248]
                %296 = vst [vmem:[%s256 + $0x4c] sm:%s248] %v295
                %v297 = vld [vmem:[%s255 + $0xf0] sm:%s248]
                %298 = vst [vmem:[%s256 + $0x50] sm:%s248] %v297
                %v299 = vld [vmem:[%s255 + $0xfc] sm:%s248]
                %300 = vst [vmem:[%s256 + $0x54] sm:%s248] %v299
                %v301 = vld [vmem:[%s255 + $0x108] sm:%s248]
                %302 = vst [vmem:[%s256 + $0x58] sm:%s248] %v301
                %v303 = vld [vmem:[%s255 + $0x114] sm:%s248]
                %304 = vst [vmem:[%s256 + $0x5c] sm:%s248] %v303
                %v305 = vld [vmem:[%s255 + $0x120] sm:%s248]
                %306 = vst [vmem:[%s256 + $0x60] sm:%s248] %v305
                %v307 = vld [vmem:[%s255 + $0x12c] sm:%s248]
                %308 = vst [vmem:[%s256 + $0x64] sm:%s248] %v307
                %v309 = vld [vmem:[%s255 + $0x138] sm:%s248]
                %310 = vst [vmem:[%s256 + $0x68] sm:%s248] %v309
                %v311 = vld [vmem:[%s255 + $0x144] sm:%s248]
                %312 = vst [vmem:[%s256 + $0x6c] sm:%s248] %v311
                %v313 = vld [vmem:[%s255 + $0x150] sm:%s248]
                %314 = vst [vmem:[%s256 + $0x70] sm:%s248] %v313
                %v315 = vld [vmem:[%s255 + $0x15c] sm:%s248]
                %316 = vst [vmem:[%s256 + $0x74] sm:%s248] %v315
                %v317 = vld [vmem:[%s255 + $0x168] sm:%s248]
                %318 = vst [vmem:[%s256 + $0x78] sm:%s248] %v317
                %v319 = vld [vmem:[%s255 + $0x174] sm:%s248]
                %320 = vst [vmem:[%s256 + $0x7c] sm:%s248] %v319
              $region45: #{nl_block_forward.4} parent=39 // loop_footer
                %s254 = sadd.s32 1, %s250
              $region46: #{nl_block_forward.4} parent=39 // loop_footer_branch
                %249 = sbr.rel target = $region42
              $region47: #{nl_block_forward.4} parent=39 // loop_exit
                _
            $region40: #{nl_block_forward.4} parent=31 // pred_fallthru
              _
          $region32: #{nl_block_forward.4} parent=27 // pred_fallthru
            _
          %405 = vnop
        $region28: #{nl_block_forward.4} parent=23 // pred_fallthru
          _
        // Predicated region
        $region66: #{nl_block_forward.4} parent=23 // pred_check
          %p406 = pneg %p73
        $region67: #{nl_block_forward.4} parent=23 // pred_check_branch
          %408 = sbr.rel (%p406) target = $region69
        $region68: #{nl_block_forward.4} parent=23 // pred_region
          %s409 = sand.u32 %s63, 1
          %s410 = sand.u32 %s63, 1
          %s411 = smul.addr %s410, 128
          %s412 = scalar_lea.vmem [#allocation3], %s411
          %s413 = smul.addr %s20, 96
          %s414 = sadd.s32 1, %s413
          %s415 = smul.addr %s414, 4
          %s416 = scalar_lea.vmem %s1, %s415
          // Predicated region
          $region70: #{nl_block_forward.4} parent=68 // pred_check
            _
          $region71: #{nl_block_forward.4} parent=68 // pred_check_branch
            %418 = sbr.rel (0) target = $region73
          $region72: #{nl_block_forward.4} parent=68 // pred_region
            // Predicated region
            $region74: #{nl_block_forward.4} parent=72 // pred_check
              _
            $region75: #{nl_block_forward.4} parent=72 // pred_check_branch
              %420 = sbr.rel target = $region77
            $region76: #{nl_block_forward.4} parent=72 // pred_region
              // Predicated region
              $region89: #{nl_block_forward.4} parent=76 // pred_check
                _
              $region90: #{nl_block_forward.4} parent=76 // pred_check_branch
                %498 = sbr.rel (0) target = $region92
              $region91: #{nl_block_forward.4} parent=76 // pred_region
                loop: start=0, step=1, limit=1
                $region93: #{nl_block_forward.4} parent=91 // loop_pre_header
                  _
                $region94: #{nl_block_forward.4} parent=91 // loop_header
                  %s500 = sphi 0, %s504
                  %p501 = scmp.ge.s32.totalorder %s500, 1
                  %s505 = sphi %s416, %s416
                  %s506 = sphi %s412, %s412
                $region95: #{nl_block_forward.4} parent=91 // loop_header_branch
                  %503 = sbr.rel (%p501) target = $region99
                $region96: #{nl_block_forward.4} parent=91 // loop_body
                  _
                $region97: #{nl_block_forward.4} parent=91 // loop_footer
                  %s504 = sadd.s32 1, %s500
                $region98: #{nl_block_forward.4} parent=91 // loop_footer_branch
                  %499 = sbr.rel target = $region94
                $region99: #{nl_block_forward.4} parent=91 // loop_exit
                  _
                %s508 = ssub.s32 16, 1
                loop: start=0, step=1, limit=1
                $region100: #{nl_block_forward.4} parent=91 // loop_pre_header
                  _
                $region101: #{nl_block_forward.4} parent=91 // loop_header
                  %s510 = sphi 0, %s514
                  %p511 = scmp.ge.s32.totalorder %s510, 1
                  %s515 = sphi %s416, %s416
                  %s516 = sphi %s412, %s412
                $region102: #{nl_block_forward.4} parent=91 // loop_header_branch
                  %513 = sbr.rel (%p511) target = $region106
                $region103: #{nl_block_forward.4} parent=91 // loop_body
                  %v517 = vld [vmem:[%s515] sm:%s508]
                  %518 = vst [vmem:[%s516] sm:%s508] %v517
                  %v519 = vld [vmem:[%s515 + $0xc] sm:%s508]
                  %520 = vst [vmem:[%s516 + $0x4] sm:%s508] %v519
                  %v521 = vld [vmem:[%s515 + $0x18] sm:%s508]
                  %522 = vst [vmem:[%s516 + $0x8] sm:%s508] %v521
                  %v523 = vld [vmem:[%s515 + $0x24] sm:%s508]
                  %524 = vst [vmem:[%s516 + $0xc] sm:%s508] %v523
                  %v525 = vld [vmem:[%s515 + $0x30] sm:%s508]
                  %526 = vst [vmem:[%s516 + $0x10] sm:%s508] %v525
                  %v527 = vld [vmem:[%s515 + $0x3c] sm:%s508]
                  %528 = vst [vmem:[%s516 + $0x14] sm:%s508] %v527
                  %v529 = vld [vmem:[%s515 + $0x48] sm:%s508]
                  %530 = vst [vmem:[%s516 + $0x18] sm:%s508] %v529
                  %v531 = vld [vmem:[%s515 + $0x54] sm:%s508]
                  %532 = vst [vmem:[%s516 + $0x1c] sm:%s508] %v531
                  %v533 = vld [vmem:[%s515 + $0x60] sm:%s508]
                  %534 = vst [vmem:[%s516 + $0x20] sm:%s508] %v533
                  %v535 = vld [vmem:[%s515 + $0x6c] sm:%s508]
                  %536 = vst [vmem:[%s516 + $0x24] sm:%s508] %v535
                  %v537 = vld [vmem:[%s515 + $0x78] sm:%s508]
                  %538 = vst [vmem:[%s516 + $0x28] sm:%s508] %v537
                  %v539 = vld [vmem:[%s515 + $0x84] sm:%s508]
                  %540 = vst [vmem:[%s516 + $0x2c] sm:%s508] %v539
                  %v541 = vld [vmem:[%s515 + $0x90] sm:%s508]
                  %542 = vst [vmem:[%s516 + $0x30] sm:%s508] %v541
                  %v543 = vld [vmem:[%s515 + $0x9c] sm:%s508]
                  %544 = vst [vmem:[%s516 + $0x34] sm:%s508] %v543
                  %v545 = vld [vmem:[%s515 + $0xa8] sm:%s508]
                  %546 = vst [vmem:[%s516 + $0x38] sm:%s508] %v545
                  %v547 = vld [vmem:[%s515 + $0xb4] sm:%s508]
                  %548 = vst [vmem:[%s516 + $0x3c] sm:%s508] %v547
                  %v549 = vld [vmem:[%s515 + $0xc0] sm:%s508]
                  %550 = vst [vmem:[%s516 + $0x40] sm:%s508] %v549
                  %v551 = vld [vmem:[%s515 + $0xcc] sm:%s508]
                  %552 = vst [vmem:[%s516 + $0x44] sm:%s508] %v551
                  %v553 = vld [vmem:[%s515 + $0xd8] sm:%s508]
                  %554 = vst [vmem:[%s516 + $0x48] sm:%s508] %v553
                  %v555 = vld [vmem:[%s515 + $0xe4] sm:%s508]
                  %556 = vst [vmem:[%s516 + $0x4c] sm:%s508] %v555
                  %v557 = vld [vmem:[%s515 + $0xf0] sm:%s508]
                  %558 = vst [vmem:[%s516 + $0x50] sm:%s508] %v557
                  %v559 = vld [vmem:[%s515 + $0xfc] sm:%s508]
                  %560 = vst [vmem:[%s516 + $0x54] sm:%s508] %v559
                  %v561 = vld [vmem:[%s515 + $0x108] sm:%s508]
                  %562 = vst [vmem:[%s516 + $0x58] sm:%s508] %v561
                  %v563 = vld [vmem:[%s515 + $0x114] sm:%s508]
                  %564 = vst [vmem:[%s516 + $0x5c] sm:%s508] %v563
                  %v565 = vld [vmem:[%s515 + $0x120] sm:%s508]
                  %566 = vst [vmem:[%s516 + $0x60] sm:%s508] %v565
                  %v567 = vld [vmem:[%s515 + $0x12c] sm:%s508]
                  %568 = vst [vmem:[%s516 + $0x64] sm:%s508] %v567
                  %v569 = vld [vmem:[%s515 + $0x138] sm:%s508]
                  %570 = vst [vmem:[%s516 + $0x68] sm:%s508] %v569
                  %v571 = vld [vmem:[%s515 + $0x144] sm:%s508]
                  %572 = vst [vmem:[%s516 + $0x6c] sm:%s508] %v571
                  %v573 = vld [vmem:[%s515 + $0x150] sm:%s508]
                  %574 = vst [vmem:[%s516 + $0x70] sm:%s508] %v573
                  %v575 = vld [vmem:[%s515 + $0x15c] sm:%s508]
                  %576 = vst [vmem:[%s516 + $0x74] sm:%s508] %v575
                  %v577 = vld [vmem:[%s515 + $0x168] sm:%s508]
                  %578 = vst [vmem:[%s516 + $0x78] sm:%s508] %v577
                  %v579 = vld [vmem:[%s515 + $0x174] sm:%s508]
                  %580 = vst [vmem:[%s516 + $0x7c] sm:%s508] %v579
                $region104: #{nl_block_forward.4} parent=91 // loop_footer
                  %s514 = sadd.s32 1, %s510
                $region105: #{nl_block_forward.4} parent=91 // loop_footer_branch
                  %509 = sbr.rel target = $region101
                $region106: #{nl_block_forward.4} parent=91 // loop_exit
                  _
              $region92: #{nl_block_forward.4} parent=76 // pred_fallthru
                _
            $region77: #{nl_block_forward.4} parent=72 // pred_fallthru
              _
            // Predicated region
            $region78: #{nl_block_forward.4} parent=72 // pred_check
              _
            $region79: #{nl_block_forward.4} parent=72 // pred_check_branch
              %422 = sbr.rel (0) target = $region81
            $region80: #{nl_block_forward.4} parent=72 // pred_region
              %s424 = ssub.s32 16, 1
              loop: start=0, step=1, limit=1
              $region82: #{nl_block_forward.4} parent=80 // loop_pre_header
                _
              $region83: #{nl_block_forward.4} parent=80 // loop_header
                %s426 = sphi 0, %s430
                %p427 = scmp.ge.s32.totalorder %s426, 1
                %s431 = sphi %s416, %s416
                %s432 = sphi %s412, %s412
              $region84: #{nl_block_forward.4} parent=80 // loop_header_branch
                %429 = sbr.rel (%p427) target = $region88
              $region85: #{nl_block_forward.4} parent=80 // loop_body
                %v433 = vld [vmem:[%s431] sm:%s424]
                %434 = vst [vmem:[%s432] sm:%s424] %v433
                %v435 = vld [vmem:[%s431 + $0xc] sm:%s424]
                %436 = vst [vmem:[%s432 + $0x4] sm:%s424] %v435
                %v437 = vld [vmem:[%s431 + $0x18] sm:%s424]
                %438 = vst [vmem:[%s432 + $0x8] sm:%s424] %v437
                %v439 = vld [vmem:[%s431 + $0x24] sm:%s424]
                %440 = vst [vmem:[%s432 + $0xc] sm:%s424] %v439
                %v441 = vld [vmem:[%s431 + $0x30] sm:%s424]
                %442 = vst [vmem:[%s432 + $0x10] sm:%s424] %v441
                %v443 = vld [vmem:[%s431 + $0x3c] sm:%s424]
                %444 = vst [vmem:[%s432 + $0x14] sm:%s424] %v443
                %v445 = vld [vmem:[%s431 + $0x48] sm:%s424]
                %446 = vst [vmem:[%s432 + $0x18] sm:%s424] %v445
                %v447 = vld [vmem:[%s431 + $0x54] sm:%s424]
                %448 = vst [vmem:[%s432 + $0x1c] sm:%s424] %v447
                %v449 = vld [vmem:[%s431 + $0x60] sm:%s424]
                %450 = vst [vmem:[%s432 + $0x20] sm:%s424] %v449
                %v451 = vld [vmem:[%s431 + $0x6c] sm:%s424]
                %452 = vst [vmem:[%s432 + $0x24] sm:%s424] %v451
                %v453 = vld [vmem:[%s431 + $0x78] sm:%s424]
                %454 = vst [vmem:[%s432 + $0x28] sm:%s424] %v453
                %v455 = vld [vmem:[%s431 + $0x84] sm:%s424]
                %456 = vst [vmem:[%s432 + $0x2c] sm:%s424] %v455
                %v457 = vld [vmem:[%s431 + $0x90] sm:%s424]
                %458 = vst [vmem:[%s432 + $0x30] sm:%s424] %v457
                %v459 = vld [vmem:[%s431 + $0x9c] sm:%s424]
                %460 = vst [vmem:[%s432 + $0x34] sm:%s424] %v459
                %v461 = vld [vmem:[%s431 + $0xa8] sm:%s424]
                %462 = vst [vmem:[%s432 + $0x38] sm:%s424] %v461
                %v463 = vld [vmem:[%s431 + $0xb4] sm:%s424]
                %464 = vst [vmem:[%s432 + $0x3c] sm:%s424] %v463
                %v465 = vld [vmem:[%s431 + $0xc0] sm:%s424]
                %466 = vst [vmem:[%s432 + $0x40] sm:%s424] %v465
                %v467 = vld [vmem:[%s431 + $0xcc] sm:%s424]
                %468 = vst [vmem:[%s432 + $0x44] sm:%s424] %v467
                %v469 = vld [vmem:[%s431 + $0xd8] sm:%s424]
                %470 = vst [vmem:[%s432 + $0x48] sm:%s424] %v469
                %v471 = vld [vmem:[%s431 + $0xe4] sm:%s424]
                %472 = vst [vmem:[%s432 + $0x4c] sm:%s424] %v471
                %v473 = vld [vmem:[%s431 + $0xf0] sm:%s424]
                %474 = vst [vmem:[%s432 + $0x50] sm:%s424] %v473
                %v475 = vld [vmem:[%s431 + $0xfc] sm:%s424]
                %476 = vst [vmem:[%s432 + $0x54] sm:%s424] %v475
                %v477 = vld [vmem:[%s431 + $0x108] sm:%s424]
                %478 = vst [vmem:[%s432 + $0x58] sm:%s424] %v477
                %v479 = vld [vmem:[%s431 + $0x114] sm:%s424]
                %480 = vst [vmem:[%s432 + $0x5c] sm:%s424] %v479
                %v481 = vld [vmem:[%s431 + $0x120] sm:%s424]
                %482 = vst [vmem:[%s432 + $0x60] sm:%s424] %v481
                %v483 = vld [vmem:[%s431 + $0x12c] sm:%s424]
                %484 = vst [vmem:[%s432 + $0x64] sm:%s424] %v483
                %v485 = vld [vmem:[%s431 + $0x138] sm:%s424]
                %486 = vst [vmem:[%s432 + $0x68] sm:%s424] %v485
                %v487 = vld [vmem:[%s431 + $0x144] sm:%s424]
                %488 = vst [vmem:[%s432 + $0x6c] sm:%s424] %v487
                %v489 = vld [vmem:[%s431 + $0x150] sm:%s424]
                %490 = vst [vmem:[%s432 + $0x70] sm:%s424] %v489
                %v491 = vld [vmem:[%s431 + $0x15c] sm:%s424]
                %492 = vst [vmem:[%s432 + $0x74] sm:%s424] %v491
                %v493 = vld [vmem:[%s431 + $0x168] sm:%s424]
                %494 = vst [vmem:[%s432 + $0x78] sm:%s424] %v493
                %v495 = vld [vmem:[%s431 + $0x174] sm:%s424]
                %496 = vst [vmem:[%s432 + $0x7c] sm:%s424] %v495
              $region86: #{nl_block_forward.4} parent=80 // loop_footer
                %s430 = sadd.s32 1, %s426
              $region87: #{nl_block_forward.4} parent=80 // loop_footer_branch
                %425 = sbr.rel target = $region83
              $region88: #{nl_block_forward.4} parent=80 // loop_exit
                _
            $region81: #{nl_block_forward.4} parent=72 // pred_fallthru
              _
          $region73: #{nl_block_forward.4} parent=68 // pred_fallthru
            _
          %581 = vnop
        $region69: #{nl_block_forward.4} parent=23 // pred_fallthru
          _
        // Predicated region
        $region107: #{nl_block_forward.4} parent=23 // pred_check
          %p582 = pneg %p99
        $region108: #{nl_block_forward.4} parent=23 // pred_check_branch
          %584 = sbr.rel (%p582) target = $region110
        $region109: #{nl_block_forward.4} parent=23 // pred_region
          %s585 = sand.u32 %s89, 1
          %s586 = sand.u32 %s89, 1
          %s587 = smul.addr %s586, 128
          %s588 = scalar_lea.vmem [#allocation4], %s587
          %s589 = smul.addr %s20, 96
          %s590 = sadd.s32 2, %s589
          %s591 = smul.addr %s590, 4
          %s592 = scalar_lea.vmem %s2, %s591
          // Predicated region
          $region111: #{nl_block_forward.4} parent=109 // pred_check
            _
          $region112: #{nl_block_forward.4} parent=109 // pred_check_branch
            %594 = sbr.rel (0) target = $region114
          $region113: #{nl_block_forward.4} parent=109 // pred_region
            // Predicated region
            $region115: #{nl_block_forward.4} parent=113 // pred_check
              _
            $region116: #{nl_block_forward.4} parent=113 // pred_check_branch
              %596 = sbr.rel target = $region118
            $region117: #{nl_block_forward.4} parent=113 // pred_region
              // Predicated region
              $region130: #{nl_block_forward.4} parent=117 // pred_check
                _
              $region131: #{nl_block_forward.4} parent=117 // pred_check_branch
                %674 = sbr.rel (0) target = $region133
              $region132: #{nl_block_forward.4} parent=117 // pred_region
                loop: start=0, step=1, limit=1
                $region134: #{nl_block_forward.4} parent=132 // loop_pre_header
                  _
                $region135: #{nl_block_forward.4} parent=132 // loop_header
                  %s676 = sphi 0, %s680
                  %p677 = scmp.ge.s32.totalorder %s676, 1
                  %s681 = sphi %s592, %s592
                  %s682 = sphi %s588, %s588
                $region136: #{nl_block_forward.4} parent=132 // loop_header_branch
                  %679 = sbr.rel (%p677) target = $region140
                $region137: #{nl_block_forward.4} parent=132 // loop_body
                  _
                $region138: #{nl_block_forward.4} parent=132 // loop_footer
                  %s680 = sadd.s32 1, %s676
                $region139: #{nl_block_forward.4} parent=132 // loop_footer_branch
                  %675 = sbr.rel target = $region135
                $region140: #{nl_block_forward.4} parent=132 // loop_exit
                  _
                %s684 = ssub.s32 16, 1
                loop: start=0, step=1, limit=1
                $region141: #{nl_block_forward.4} parent=132 // loop_pre_header
                  _
                $region142: #{nl_block_forward.4} parent=132 // loop_header
                  %s686 = sphi 0, %s690
                  %p687 = scmp.ge.s32.totalorder %s686, 1
                  %s691 = sphi %s592, %s592
                  %s692 = sphi %s588, %s588
                $region143: #{nl_block_forward.4} parent=132 // loop_header_branch
                  %689 = sbr.rel (%p687) target = $region147
                $region144: #{nl_block_forward.4} parent=132 // loop_body
                  %v693 = vld [vmem:[%s691] sm:%s684]
                  %694 = vst [vmem:[%s692] sm:%s684] %v693
                  %v695 = vld [vmem:[%s691 + $0xc] sm:%s684]
                  %696 = vst [vmem:[%s692 + $0x4] sm:%s684] %v695
                  %v697 = vld [vmem:[%s691 + $0x18] sm:%s684]
                  %698 = vst [vmem:[%s692 + $0x8] sm:%s684] %v697
                  %v699 = vld [vmem:[%s691 + $0x24] sm:%s684]
                  %700 = vst [vmem:[%s692 + $0xc] sm:%s684] %v699
                  %v701 = vld [vmem:[%s691 + $0x30] sm:%s684]
                  %702 = vst [vmem:[%s692 + $0x10] sm:%s684] %v701
                  %v703 = vld [vmem:[%s691 + $0x3c] sm:%s684]
                  %704 = vst [vmem:[%s692 + $0x14] sm:%s684] %v703
                  %v705 = vld [vmem:[%s691 + $0x48] sm:%s684]
                  %706 = vst [vmem:[%s692 + $0x18] sm:%s684] %v705
                  %v707 = vld [vmem:[%s691 + $0x54] sm:%s684]
                  %708 = vst [vmem:[%s692 + $0x1c] sm:%s684] %v707
                  %v709 = vld [vmem:[%s691 + $0x60] sm:%s684]
                  %710 = vst [vmem:[%s692 + $0x20] sm:%s684] %v709
                  %v711 = vld [vmem:[%s691 + $0x6c] sm:%s684]
                  %712 = vst [vmem:[%s692 + $0x24] sm:%s684] %v711
                  %v713 = vld [vmem:[%s691 + $0x78] sm:%s684]
                  %714 = vst [vmem:[%s692 + $0x28] sm:%s684] %v713
                  %v715 = vld [vmem:[%s691 + $0x84] sm:%s684]
                  %716 = vst [vmem:[%s692 + $0x2c] sm:%s684] %v715
                  %v717 = vld [vmem:[%s691 + $0x90] sm:%s684]
                  %718 = vst [vmem:[%s692 + $0x30] sm:%s684] %v717
                  %v719 = vld [vmem:[%s691 + $0x9c] sm:%s684]
                  %720 = vst [vmem:[%s692 + $0x34] sm:%s684] %v719
                  %v721 = vld [vmem:[%s691 + $0xa8] sm:%s684]
                  %722 = vst [vmem:[%s692 + $0x38] sm:%s684] %v721
                  %v723 = vld [vmem:[%s691 + $0xb4] sm:%s684]
                  %724 = vst [vmem:[%s692 + $0x3c] sm:%s684] %v723
                  %v725 = vld [vmem:[%s691 + $0xc0] sm:%s684]
                  %726 = vst [vmem:[%s692 + $0x40] sm:%s684] %v725
                  %v727 = vld [vmem:[%s691 + $0xcc] sm:%s684]
                  %728 = vst [vmem:[%s692 + $0x44] sm:%s684] %v727
                  %v729 = vld [vmem:[%s691 + $0xd8] sm:%s684]
                  %730 = vst [vmem:[%s692 + $0x48] sm:%s684] %v729
                  %v731 = vld [vmem:[%s691 + $0xe4] sm:%s684]
                  %732 = vst [vmem:[%s692 + $0x4c] sm:%s684] %v731
                  %v733 = vld [vmem:[%s691 + $0xf0] sm:%s684]
                  %734 = vst [vmem:[%s692 + $0x50] sm:%s684] %v733
                  %v735 = vld [vmem:[%s691 + $0xfc] sm:%s684]
                  %736 = vst [vmem:[%s692 + $0x54] sm:%s684] %v735
                  %v737 = vld [vmem:[%s691 + $0x108] sm:%s684]
                  %738 = vst [vmem:[%s692 + $0x58] sm:%s684] %v737
                  %v739 = vld [vmem:[%s691 + $0x114] sm:%s684]
                  %740 = vst [vmem:[%s692 + $0x5c] sm:%s684] %v739
                  %v741 = vld [vmem:[%s691 + $0x120] sm:%s684]
                  %742 = vst [vmem:[%s692 + $0x60] sm:%s684] %v741
                  %v743 = vld [vmem:[%s691 + $0x12c] sm:%s684]
                  %744 = vst [vmem:[%s692 + $0x64] sm:%s684] %v743
                  %v745 = vld [vmem:[%s691 + $0x138] sm:%s684]
                  %746 = vst [vmem:[%s692 + $0x68] sm:%s684] %v745
                  %v747 = vld [vmem:[%s691 + $0x144] sm:%s684]
                  %748 = vst [vmem:[%s692 + $0x6c] sm:%s684] %v747
                  %v749 = vld [vmem:[%s691 + $0x150] sm:%s684]
                  %750 = vst [vmem:[%s692 + $0x70] sm:%s684] %v749
                  %v751 = vld [vmem:[%s691 + $0x15c] sm:%s684]
                  %752 = vst [vmem:[%s692 + $0x74] sm:%s684] %v751
                  %v753 = vld [vmem:[%s691 + $0x168] sm:%s684]
                  %754 = vst [vmem:[%s692 + $0x78] sm:%s684] %v753
                  %v755 = vld [vmem:[%s691 + $0x174] sm:%s684]
                  %756 = vst [vmem:[%s692 + $0x7c] sm:%s684] %v755
                $region145: #{nl_block_forward.4} parent=132 // loop_footer
                  %s690 = sadd.s32 1, %s686
                $region146: #{nl_block_forward.4} parent=132 // loop_footer_branch
                  %685 = sbr.rel target = $region142
                $region147: #{nl_block_forward.4} parent=132 // loop_exit
                  _
              $region133: #{nl_block_forward.4} parent=117 // pred_fallthru
                _
            $region118: #{nl_block_forward.4} parent=113 // pred_fallthru
              _
            // Predicated region
            $region119: #{nl_block_forward.4} parent=113 // pred_check
              _
            $region120: #{nl_block_forward.4} parent=113 // pred_check_branch
              %598 = sbr.rel (0) target = $region122
            $region121: #{nl_block_forward.4} parent=113 // pred_region
              %s600 = ssub.s32 16, 1
              loop: start=0, step=1, limit=1
              $region123: #{nl_block_forward.4} parent=121 // loop_pre_header
                _
              $region124: #{nl_block_forward.4} parent=121 // loop_header
                %s602 = sphi 0, %s606
                %p603 = scmp.ge.s32.totalorder %s602, 1
                %s607 = sphi %s592, %s592
                %s608 = sphi %s588, %s588
              $region125: #{nl_block_forward.4} parent=121 // loop_header_branch
                %605 = sbr.rel (%p603) target = $region129
              $region126: #{nl_block_forward.4} parent=121 // loop_body
                %v609 = vld [vmem:[%s607] sm:%s600]
                %610 = vst [vmem:[%s608] sm:%s600] %v609
                %v611 = vld [vmem:[%s607 + $0xc] sm:%s600]
                %612 = vst [vmem:[%s608 + $0x4] sm:%s600] %v611
                %v613 = vld [vmem:[%s607 + $0x18] sm:%s600]
                %614 = vst [vmem:[%s608 + $0x8] sm:%s600] %v613
                %v615 = vld [vmem:[%s607 + $0x24] sm:%s600]
                %616 = vst [vmem:[%s608 + $0xc] sm:%s600] %v615
                %v617 = vld [vmem:[%s607 + $0x30] sm:%s600]
                %618 = vst [vmem:[%s608 + $0x10] sm:%s600] %v617
                %v619 = vld [vmem:[%s607 + $0x3c] sm:%s600]
                %620 = vst [vmem:[%s608 + $0x14] sm:%s600] %v619
                %v621 = vld [vmem:[%s607 + $0x48] sm:%s600]
                %622 = vst [vmem:[%s608 + $0x18] sm:%s600] %v621
                %v623 = vld [vmem:[%s607 + $0x54] sm:%s600]
                %624 = vst [vmem:[%s608 + $0x1c] sm:%s600] %v623
                %v625 = vld [vmem:[%s607 + $0x60] sm:%s600]
                %626 = vst [vmem:[%s608 + $0x20] sm:%s600] %v625
                %v627 = vld [vmem:[%s607 + $0x6c] sm:%s600]
                %628 = vst [vmem:[%s608 + $0x24] sm:%s600] %v627
                %v629 = vld [vmem:[%s607 + $0x78] sm:%s600]
                %630 = vst [vmem:[%s608 + $0x28] sm:%s600] %v629
                %v631 = vld [vmem:[%s607 + $0x84] sm:%s600]
                %632 = vst [vmem:[%s608 + $0x2c] sm:%s600] %v631
                %v633 = vld [vmem:[%s607 + $0x90] sm:%s600]
                %634 = vst [vmem:[%s608 + $0x30] sm:%s600] %v633
                %v635 = vld [vmem:[%s607 + $0x9c] sm:%s600]
                %636 = vst [vmem:[%s608 + $0x34] sm:%s600] %v635
                %v637 = vld [vmem:[%s607 + $0xa8] sm:%s600]
                %638 = vst [vmem:[%s608 + $0x38] sm:%s600] %v637
                %v639 = vld [vmem:[%s607 + $0xb4] sm:%s600]
                %640 = vst [vmem:[%s608 + $0x3c] sm:%s600] %v639
                %v641 = vld [vmem:[%s607 + $0xc0] sm:%s600]
                %642 = vst [vmem:[%s608 + $0x40] sm:%s600] %v641
                %v643 = vld [vmem:[%s607 + $0xcc] sm:%s600]
                %644 = vst [vmem:[%s608 + $0x44] sm:%s600] %v643
                %v645 = vld [vmem:[%s607 + $0xd8] sm:%s600]
                %646 = vst [vmem:[%s608 + $0x48] sm:%s600] %v645
                %v647 = vld [vmem:[%s607 + $0xe4] sm:%s600]
                %648 = vst [vmem:[%s608 + $0x4c] sm:%s600] %v647
                %v649 = vld [vmem:[%s607 + $0xf0] sm:%s600]
                %650 = vst [vmem:[%s608 + $0x50] sm:%s600] %v649
                %v651 = vld [vmem:[%s607 + $0xfc] sm:%s600]
                %652 = vst [vmem:[%s608 + $0x54] sm:%s600] %v651
                %v653 = vld [vmem:[%s607 + $0x108] sm:%s600]
                %654 = vst [vmem:[%s608 + $0x58] sm:%s600] %v653
                %v655 = vld [vmem:[%s607 + $0x114] sm:%s600]
                %656 = vst [vmem:[%s608 + $0x5c] sm:%s600] %v655
                %v657 = vld [vmem:[%s607 + $0x120] sm:%s600]
                %658 = vst [vmem:[%s608 + $0x60] sm:%s600] %v657
                %v659 = vld [vmem:[%s607 + $0x12c] sm:%s600]
                %660 = vst [vmem:[%s608 + $0x64] sm:%s600] %v659
                %v661 = vld [vmem:[%s607 + $0x138] sm:%s600]
                %662 = vst [vmem:[%s608 + $0x68] sm:%s600] %v661
                %v663 = vld [vmem:[%s607 + $0x144] sm:%s600]
                %664 = vst [vmem:[%s608 + $0x6c] sm:%s600] %v663
                %v665 = vld [vmem:[%s607 + $0x150] sm:%s600]
                %666 = vst [vmem:[%s608 + $0x70] sm:%s600] %v665
                %v667 = vld [vmem:[%s607 + $0x15c] sm:%s600]
                %668 = vst [vmem:[%s608 + $0x74] sm:%s600] %v667
                %v669 = vld [vmem:[%s607 + $0x168] sm:%s600]
                %670 = vst [vmem:[%s608 + $0x78] sm:%s600] %v669
                %v671 = vld [vmem:[%s607 + $0x174] sm:%s600]
                %672 = vst [vmem:[%s608 + $0x7c] sm:%s600] %v671
              $region127: #{nl_block_forward.4} parent=121 // loop_footer
                %s606 = sadd.s32 1, %s602
              $region128: #{nl_block_forward.4} parent=121 // loop_footer_branch
                %601 = sbr.rel target = $region124
              $region129: #{nl_block_forward.4} parent=121 // loop_exit
                _
            $region122: #{nl_block_forward.4} parent=113 // pred_fallthru
              _
          $region114: #{nl_block_forward.4} parent=109 // pred_fallthru
            _
          %757 = vnop
        $region110: #{nl_block_forward.4} parent=23 // pred_fallthru
          _
      $region24: #{nl_block_forward.4} parent=5 // pred_fallthru
        _
      %p758 = scmp.le.s32.totalorder 1, %s13
      %p759 = scmp.lt.s32.totalorder %s13, 3
      %p760 = pnand %p758, %p759
      %p761 = pneg %p760
      // Predicated region
      $region148: #{nl_block_forward.4} parent=5 // pred_check
        _
      $region149: #{nl_block_forward.4} parent=5 // pred_check_branch
        %763 = sbr.rel (%p760) target = $region151
      $region150: #{nl_block_forward.4} parent=5 // pred_region
        %s764 = ssub.s32 %s13, 1
        %s765 = sand.u32 %s40, 1
        %s766 = sand.u32 %s40, 1
        %s767 = smul.addr %s766, 128
        %s768 = scalar_lea.vmem [#allocation2], %s767
        // Predicated region
        $region152: #{nl_block_forward.4} parent=150 // pred_check
          %p769 = pneg %p53
        $region153: #{nl_block_forward.4} parent=150 // pred_check_branch
          %771 = sbr.rel (%p769) target = $region155
        $region154: #{nl_block_forward.4} parent=150 // pred_region
          _
        $region155: #{nl_block_forward.4} parent=150 // pred_fallthru
          _
        %s772 = sand.u32 %s66, 1
        %s773 = sand.u32 %s66, 1
        %s774 = smul.addr %s773, 128
        %s775 = scalar_lea.vmem [#allocation3], %s774
        // Predicated region
        $region156: #{nl_block_forward.4} parent=150 // pred_check
          %p776 = pneg %p79
        $region157: #{nl_block_forward.4} parent=150 // pred_check_branch
          %778 = sbr.rel (%p776) target = $region159
        $region158: #{nl_block_forward.4} parent=150 // pred_region
          _
        $region159: #{nl_block_forward.4} parent=150 // pred_fallthru
          _
        %s779 = sand.u32 %s92, 1
        %s780 = sand.u32 %s92, 1
        %s781 = smul.addr %s780, 128
        %s782 = scalar_lea.vmem [#allocation4], %s781
        // Predicated region
        $region160: #{nl_block_forward.4} parent=150 // pred_check
          %p783 = pneg %p105
        $region161: #{nl_block_forward.4} parent=150 // pred_check_branch
          %785 = sbr.rel (%p783) target = $region163
        $region162: #{nl_block_forward.4} parent=150 // pred_region
          _
        $region163: #{nl_block_forward.4} parent=150 // pred_fallthru
          _
        %s786 = sand.u32 %s40, 1
        %s787 = sand.u32 %s40, 1
        %s788 = smul.addr %s787, 128
        %s789 = scalar_lea.vmem [#allocation2], %s788
        %p790 = pneg %p53
        %p791 = pneg %p50
        %s792 = sand.u32 %s66, 1
        %s793 = sand.u32 %s66, 1
        %s794 = smul.addr %s793, 128
        %s795 = scalar_lea.vmem [#allocation3], %s794
        %p796 = pneg %p79
        %p797 = pneg %p76
        %s798 = sand.u32 %s92, 1
        %s799 = sand.u32 %s92, 1
        %s800 = smul.addr %s799, 128
        %s801 = scalar_lea.vmem [#allocation4], %s800
        %p802 = pneg %p105
        %p803 = pneg %p102
        %p804 = pneg %p126
        %p805 = pneg %p123
        %p806 = pneg %p147
        %p807 = pneg %p144
        %p808 = pneg %p175
        %p809 = pneg %p172
        %s810 = smul.u32 32, %s23
        %p811 = scmp.lt.s32.totalorder %s22, 1
        %s812 = scalar_select %p811, %s22, 1
        %p813 = scmp.lt.s32.totalorder %s810, 31
        %s814 = scalar_select %p813, %s810, 31
        %s815 = smul.addr %s812, 32
        %s816 = sadd.s32 %s814, %s815
        %s817 = smul.addr %s816, 8
        %s818 = scalar_lea.vmem %s5, %s817
        %p819 = pneg %p203
        %p820 = pneg %p200
        %p821 = scmp.lt.s32.totalorder %s22, 1
        %s822 = scalar_select %p821, %s22, 1
        %p823 = scmp.lt.s32.totalorder %s23, 0
        %s824 = scalar_select %p823, %s23, 0
        %s825 = sadd.s32 %s824, %s822
        %s826 = smul.addr %s825, 2
        %s827 = scalar_lea.vmem %s6, %s826
        %s828 = smul.u32 32, %s23
        %s829 = smul.u32 32, %s23
        %p830 = scmp.lt.s32.totalorder %s22, 1
        %s831 = scalar_select %p830, %s22, 1
        %p832 = scmp.lt.s32.totalorder %s829, 31
        %s833 = scalar_select %p832, %s829, 31
        %s834 = smul.addr %s831, 32
        %s835 = sadd.s32 %s833, %s834
        %s836 = smul.addr %s835, 8
        %s837 = scalar_lea.vmem %s5, %s836
        %s838 = smul.u32 32, %s23
        %p839 = scmp.lt.s32.totalorder %s22, 1
        %s840 = scalar_select %p839, %s22, 1
        %p841 = scmp.lt.s32.totalorder %s23, 0
        %s842 = scalar_select %p841, %s23, 0
        %s843 = sadd.s32 %s842, %s840
        %s844 = smul.addr %s843, 2
        %s845 = scalar_lea.vmem %s6, %s844
        %v847 = vld [vmem:[%s768] sm:$0xf]
        %v848 = vld [vmem:[%s768 + $0x4] sm:$0xf]
        %v849 = vld [vmem:[%s768 + $0x8] sm:$0xf]
        %v850 = vld [vmem:[%s768 + $0xc] sm:$0xf]
        %v851 = vld [vmem:[%s768 + $0x10] sm:$0xf]
        %v852 = vld [vmem:[%s768 + $0x14] sm:$0xf]
        %v853 = vld [vmem:[%s768 + $0x18] sm:$0xf]
        %v854 = vld [vmem:[%s768 + $0x1c] sm:$0xf]
        %v855 = vld [vmem:[%s768 + $0x20] sm:$0xf]
        %v856 = vld [vmem:[%s768 + $0x24] sm:$0xf]
        %v857 = vld [vmem:[%s768 + $0x28] sm:$0xf]
        %v858 = vld [vmem:[%s768 + $0x2c] sm:$0xf]
        %v859 = vld [vmem:[%s768 + $0x30] sm:$0xf]
        %v860 = vld [vmem:[%s768 + $0x34] sm:$0xf]
        %v861 = vld [vmem:[%s768 + $0x38] sm:$0xf]
        %v862 = vld [vmem:[%s768 + $0x3c] sm:$0xf]
        %v863 = vld [vmem:[%s768 + $0x40] sm:$0xf]
        %v864 = vld [vmem:[%s768 + $0x44] sm:$0xf]
        %v865 = vld [vmem:[%s768 + $0x48] sm:$0xf]
        %v866 = vld [vmem:[%s768 + $0x4c] sm:$0xf]
        %v867 = vld [vmem:[%s768 + $0x50] sm:$0xf]
        %v868 = vld [vmem:[%s768 + $0x54] sm:$0xf]
        %v869 = vld [vmem:[%s768 + $0x58] sm:$0xf]
        %v870 = vld [vmem:[%s768 + $0x5c] sm:$0xf]
        %v871 = vld [vmem:[%s768 + $0x60] sm:$0xf]
        %v872 = vld [vmem:[%s768 + $0x64] sm:$0xf]
        %v873 = vld [vmem:[%s768 + $0x68] sm:$0xf]
        %v874 = vld [vmem:[%s768 + $0x6c] sm:$0xf]
        %v875 = vld [vmem:[%s768 + $0x70] sm:$0xf]
        %v876 = vld [vmem:[%s768 + $0x74] sm:$0xf]
        %v877 = vld [vmem:[%s768 + $0x78] sm:$0xf]
        %v878 = vld [vmem:[%s768 + $0x7c] sm:$0xf]
        %v879 = vld [vmem:[%s775] sm:$0xf]
        %v880 = vld [vmem:[%s775 + $0x4] sm:$0xf]
        %v881 = vld [vmem:[%s775 + $0x8] sm:$0xf]
        %v882 = vld [vmem:[%s775 + $0xc] sm:$0xf]
        %v883 = vld [vmem:[%s775 + $0x10] sm:$0xf]
        %v884 = vld [vmem:[%s775 + $0x14] sm:$0xf]
        %v885 = vld [vmem:[%s775 + $0x18] sm:$0xf]
        %v886 = vld [vmem:[%s775 + $0x1c] sm:$0xf]
        %v887 = vld [vmem:[%s775 + $0x20] sm:$0xf]
        %v888 = vld [vmem:[%s775 + $0x24] sm:$0xf]
        %v889 = vld [vmem:[%s775 + $0x28] sm:$0xf]
        %v890 = vld [vmem:[%s775 + $0x2c] sm:$0xf]
        %v891 = vld [vmem:[%s775 + $0x30] sm:$0xf]
        %v892 = vld [vmem:[%s775 + $0x34] sm:$0xf]
        %v893 = vld [vmem:[%s775 + $0x38] sm:$0xf]
        %v894 = vld [vmem:[%s775 + $0x3c] sm:$0xf]
        %v895 = vld [vmem:[%s775 + $0x40] sm:$0xf]
        %v896 = vld [vmem:[%s775 + $0x44] sm:$0xf]
        %v897 = vld [vmem:[%s775 + $0x48] sm:$0xf]
        %v898 = vld [vmem:[%s775 + $0x4c] sm:$0xf]
        %v899 = vld [vmem:[%s775 + $0x50] sm:$0xf]
        %v900 = vld [vmem:[%s775 + $0x54] sm:$0xf]
        %v901 = vld [vmem:[%s775 + $0x58] sm:$0xf]
        %v902 = vld [vmem:[%s775 + $0x5c] sm:$0xf]
        %v903 = vld [vmem:[%s775 + $0x60] sm:$0xf]
        %v904 = vld [vmem:[%s775 + $0x64] sm:$0xf]
        %v905 = vld [vmem:[%s775 + $0x68] sm:$0xf]
        %v906 = vld [vmem:[%s775 + $0x6c] sm:$0xf]
        %v907 = vld [vmem:[%s775 + $0x70] sm:$0xf]
        %v908 = vld [vmem:[%s775 + $0x74] sm:$0xf]
        %v909 = vld [vmem:[%s775 + $0x78] sm:$0xf]
        %v910 = vld [vmem:[%s775 + $0x7c] sm:$0xf]
        %v911 = vld [vmem:[%s782] sm:$0xf]
        %v912 = vld [vmem:[%s782 + $0x4] sm:$0xf]
        %v913 = vld [vmem:[%s782 + $0x8] sm:$0xf]
        %v914 = vld [vmem:[%s782 + $0xc] sm:$0xf]
        %v915 = vld [vmem:[%s782 + $0x10] sm:$0xf]
        %v916 = vld [vmem:[%s782 + $0x14] sm:$0xf]
        %v917 = vld [vmem:[%s782 + $0x18] sm:$0xf]
        %v918 = vld [vmem:[%s782 + $0x1c] sm:$0xf]
        %v919 = vld [vmem:[%s782 + $0x20] sm:$0xf]
        %v920 = vld [vmem:[%s782 + $0x24] sm:$0xf]
        %v921 = vld [vmem:[%s782 + $0x28] sm:$0xf]
        %v922 = vld [vmem:[%s782 + $0x2c] sm:$0xf]
        %v923 = vld [vmem:[%s782 + $0x30] sm:$0xf]
        %v924 = vld [vmem:[%s782 + $0x34] sm:$0xf]
        %v925 = vld [vmem:[%s782 + $0x38] sm:$0xf]
        %v926 = vld [vmem:[%s782 + $0x3c] sm:$0xf]
        %v927 = vld [vmem:[%s782 + $0x40] sm:$0xf]
        %v928 = vld [vmem:[%s782 + $0x44] sm:$0xf]
        %v929 = vld [vmem:[%s782 + $0x48] sm:$0xf]
        %v930 = vld [vmem:[%s782 + $0x4c] sm:$0xf]
        %v931 = vld [vmem:[%s782 + $0x50] sm:$0xf]
        %v932 = vld [vmem:[%s782 + $0x54] sm:$0xf]
        %v933 = vld [vmem:[%s782 + $0x58] sm:$0xf]
        %v934 = vld [vmem:[%s782 + $0x5c] sm:$0xf]
        %v935 = vld [vmem:[%s782 + $0x60] sm:$0xf]
        %v936 = vld [vmem:[%s782 + $0x64] sm:$0xf]
        %v937 = vld [vmem:[%s782 + $0x68] sm:$0xf]
        %v938 = vld [vmem:[%s782 + $0x6c] sm:$0xf]
        %v939 = vld [vmem:[%s782 + $0x70] sm:$0xf]
        %v940 = vld [vmem:[%s782 + $0x74] sm:$0xf]
        %v941 = vld [vmem:[%s782 + $0x78] sm:$0xf]
        %v942 = vld [vmem:[%s782 + $0x7c] sm:$0xf]
        %v975 = vunpack.c.l.b16 %v847
        %v976 = vunpack.c.l.b16 %v848
        %v977 = vunpack.c.l.b16 %v849
        %v978 = vunpack.c.l.b16 %v850
        %v979 = vunpack.c.l.b16 %v851
        %v980 = vunpack.c.l.b16 %v852
        %v981 = vunpack.c.l.b16 %v853
        %v982 = vunpack.c.l.b16 %v854
        %v983 = vunpack.c.l.b16 %v855
        %v984 = vunpack.c.l.b16 %v856
        %v985 = vunpack.c.l.b16 %v857
        %v986 = vunpack.c.l.b16 %v858
        %v987 = vunpack.c.l.b16 %v859
        %v988 = vunpack.c.l.b16 %v860
        %v989 = vunpack.c.l.b16 %v861
        %v990 = vunpack.c.l.b16 %v862
        %v991 = vunpack.c.l.b16 %v863
        %v992 = vunpack.c.l.b16 %v864
        %v993 = vunpack.c.l.b16 %v865
        %v994 = vunpack.c.l.b16 %v866
        %v995 = vunpack.c.l.b16 %v867
        %v996 = vunpack.c.l.b16 %v868
        %v997 = vunpack.c.l.b16 %v869
        %v998 = vunpack.c.l.b16 %v870
        %v999 = vunpack.c.l.b16 %v871
        %v1000 = vunpack.c.l.b16 %v872
        %v1001 = vunpack.c.l.b16 %v873
        %v1002 = vunpack.c.l.b16 %v874
        %v1003 = vunpack.c.l.b16 %v875
        %v1004 = vunpack.c.l.b16 %v876
        %v1005 = vunpack.c.l.b16 %v877
        %v1006 = vunpack.c.l.b16 %v878
        %v1007 = vpack.c.b16 %v976, %v975
        %v1008 = vpack.c.b16 %v978, %v977
        %v1009 = vpack.c.b16 %v980, %v979
        %v1010 = vpack.c.b16 %v982, %v981
        %v1011 = vpack.c.b16 %v984, %v983
        %v1012 = vpack.c.b16 %v986, %v985
        %v1013 = vpack.c.b16 %v988, %v987
        %v1014 = vpack.c.b16 %v990, %v989
        %v1015 = vpack.c.b16 %v992, %v991
        %v1016 = vpack.c.b16 %v994, %v993
        %v1017 = vpack.c.b16 %v996, %v995
        %v1018 = vpack.c.b16 %v998, %v997
        %v1019 = vpack.c.b16 %v1000, %v999
        %v1020 = vpack.c.b16 %v1002, %v1001
        %v1021 = vpack.c.b16 %v1004, %v1003
        %v1022 = vpack.c.b16 %v1006, %v1005
        %v1071 = vunpack.c.l.b16 %v879
        %v1072 = vunpack.c.l.b16 %v880
        %v1073 = vunpack.c.l.b16 %v881
        %v1074 = vunpack.c.l.b16 %v882
        %v1075 = vunpack.c.l.b16 %v883
        %v1076 = vunpack.c.l.b16 %v884
        %v1077 = vunpack.c.l.b16 %v885
        %v1078 = vunpack.c.l.b16 %v886
        %v1079 = vunpack.c.l.b16 %v887
        %v1080 = vunpack.c.l.b16 %v888
        %v1081 = vunpack.c.l.b16 %v889
        %v1082 = vunpack.c.l.b16 %v890
        %v1083 = vunpack.c.l.b16 %v891
        %v1084 = vunpack.c.l.b16 %v892
        %v1085 = vunpack.c.l.b16 %v893
        %v1086 = vunpack.c.l.b16 %v894
        %v1087 = vunpack.c.l.b16 %v895
        %v1088 = vunpack.c.l.b16 %v896
        %v1089 = vunpack.c.l.b16 %v897
        %v1090 = vunpack.c.l.b16 %v898
        %v1091 = vunpack.c.l.b16 %v899
        %v1092 = vunpack.c.l.b16 %v900
        %v1093 = vunpack.c.l.b16 %v901
        %v1094 = vunpack.c.l.b16 %v902
        %v1095 = vunpack.c.l.b16 %v903
        %v1096 = vunpack.c.l.b16 %v904
        %v1097 = vunpack.c.l.b16 %v905
        %v1098 = vunpack.c.l.b16 %v906
        %v1099 = vunpack.c.l.b16 %v907
        %v1100 = vunpack.c.l.b16 %v908
        %v1101 = vunpack.c.l.b16 %v909
        %v1102 = vunpack.c.l.b16 %v910
        %v1103 = vpack.c.b16 %v1072, %v1071
        %v1104 = vpack.c.b16 %v1074, %v1073
        %v1105 = vpack.c.b16 %v1076, %v1075
        %v1106 = vpack.c.b16 %v1078, %v1077
        %v1107 = vpack.c.b16 %v1080, %v1079
        %v1108 = vpack.c.b16 %v1082, %v1081
        %v1109 = vpack.c.b16 %v1084, %v1083
        %v1110 = vpack.c.b16 %v1086, %v1085
        %v1111 = vpack.c.b16 %v1088, %v1087
        %v1112 = vpack.c.b16 %v1090, %v1089
        %v1113 = vpack.c.b16 %v1092, %v1091
        %v1114 = vpack.c.b16 %v1094, %v1093
        %v1115 = vpack.c.b16 %v1096, %v1095
        %v1116 = vpack.c.b16 %v1098, %v1097
        %v1117 = vpack.c.b16 %v1100, %v1099
        %v1118 = vpack.c.b16 %v1102, %v1101
        %1135 = vmatprep.subr.bf16.mxu0 0
        %1136 = vmatpush1.bf16.xpose.msra.mxu0 %v1110
        %1137 = vmatprep.subr.bf16.mxu0 0
        %1138 = vmatpush1.bf16.xpose.msra.mxu0 %v1109
        %1139 = vmatprep.subr.bf16.mxu0 0
        %1140 = vmatpush1.bf16.xpose.msra.mxu0 %v1108
        %1141 = vmatprep.subr.bf16.mxu0 0
        %1142 = vmatpush1.bf16.xpose.msra.mxu0 %v1107
        %1143 = vmatprep.subr.bf16.mxu0 0
        %1144 = vmatpush1.bf16.xpose.msra.mxu0 %v1106
        %1145 = vmatprep.subr.bf16.mxu0 0
        %1146 = vmatpush1.bf16.xpose.msra.mxu0 %v1105
        %1147 = vmatprep.subr.bf16.mxu0 0
        %1148 = vmatpush1.bf16.xpose.msra.mxu0 %v1104
        %1149 = vmatprep.subr.bf16.mxu0 0
        %1150 = vmatpush1.bf16.xpose.msra.mxu0 %v1103
        %1151 = vmatprep.subr.bf16.mxu0 0
        %1152 = vmatpush2.bf16.xpose.msra.mxu0 %v1118
        %1153 = vmatprep.subr.bf16.mxu0 0
        %1154 = vmatpush2.bf16.xpose.msra.mxu0 %v1117
        %1155 = vmatprep.subr.bf16.mxu0 0
        %1156 = vmatpush2.bf16.xpose.msra.mxu0 %v1116
        %1157 = vmatprep.subr.bf16.mxu0 0
        %1158 = vmatpush2.bf16.xpose.msra.mxu0 %v1115
        %1159 = vmatprep.subr.bf16.mxu0 0
        %1160 = vmatpush2.bf16.xpose.msra.mxu0 %v1114
        %1161 = vmatprep.subr.bf16.mxu0 0
        %1162 = vmatpush2.bf16.xpose.msra.mxu0 %v1113
        %1163 = vmatprep.subr.bf16.mxu0 0
        %1164 = vmatpush2.bf16.xpose.msra.mxu0 %v1112
        %1165 = vmatprep.subr.bf16.mxu0 0
        %1166 = vmatpush2.bf16.xpose.msra.mxu0 %v1111
        %1167 = vmatprep.mubr.bf16.mxu0 0
        %1168 = vmatmul.mubr.bf16.gmra.mxu0 %v1007
        %v1169 = vpop.f32.mrf.mxu0
        %v1170 = vadd.f32 0.0, %v1169
        %v1171 = vpop.f32.mrf.mxu0
        %v1172 = vadd.f32 0.0, %v1171
        %v1173 = vpop.f32.mrf.mxu0
        %v1174 = vadd.f32 0.0, %v1173
        %v1175 = vpop.f32.mrf.mxu0
        %v1176 = vadd.f32 0.0, %v1175
        %1177 = vmatprep.mubr.bf16.mxu0 0
        %1178 = vmatmul.mubr.bf16.gmra.mxu0 %v1008
        %v1179 = vpop.f32.mrf.mxu0
        %v1180 = vadd.f32 0.0, %v1179
        %v1181 = vpop.f32.mrf.mxu0
        %v1182 = vadd.f32 0.0, %v1181
        %v1183 = vpop.f32.mrf.mxu0
        %v1184 = vadd.f32 0.0, %v1183
        %v1185 = vpop.f32.mrf.mxu0
        %v1186 = vadd.f32 0.0, %v1185
        %1187 = vmatprep.mubr.bf16.mxu0 0
        %1188 = vmatmul.mubr.bf16.gmra.mxu0 %v1009
        %v1189 = vpop.f32.mrf.mxu0
        %v1190 = vadd.f32 0.0, %v1189
        %v1191 = vpop.f32.mrf.mxu0
        %v1192 = vadd.f32 0.0, %v1191
        %v1193 = vpop.f32.mrf.mxu0
        %v1194 = vadd.f32 0.0, %v1193
        %v1195 = vpop.f32.mrf.mxu0
        %v1196 = vadd.f32 0.0, %v1195
        %1197 = vmatprep.mubr.bf16.mxu0 0
        %1198 = vmatmul.mubr.bf16.gmra.mxu0 %v1010
        %v1199 = vpop.f32.mrf.mxu0
        %v1200 = vadd.f32 0.0, %v1199
        %v1201 = vpop.f32.mrf.mxu0
        %v1202 = vadd.f32 0.0, %v1201
        %v1203 = vpop.f32.mrf.mxu0
        %v1204 = vadd.f32 0.0, %v1203
        %v1205 = vpop.f32.mrf.mxu0
        %v1206 = vadd.f32 0.0, %v1205
        %1207 = vmatprep.mubr.bf16.mxu0 0
        %1208 = vmatmul.mubr.bf16.gmra.mxu0 %v1011
        %v1209 = vpop.f32.mrf.mxu0
        %v1210 = vadd.f32 0.0, %v1209
        %v1211 = vpop.f32.mrf.mxu0
        %v1212 = vadd.f32 0.0, %v1211
        %v1213 = vpop.f32.mrf.mxu0
        %v1214 = vadd.f32 0.0, %v1213
        %v1215 = vpop.f32.mrf.mxu0
        %v1216 = vadd.f32 0.0, %v1215
        %1217 = vmatprep.mubr.bf16.mxu0 0
        %1218 = vmatmul.mubr.bf16.gmra.mxu0 %v1012
        %v1219 = vpop.f32.mrf.mxu0
        %v1220 = vadd.f32 0.0, %v1219
        %v1221 = vpop.f32.mrf.mxu0
        %v1222 = vadd.f32 0.0, %v1221
        %v1223 = vpop.f32.mrf.mxu0
        %v1224 = vadd.f32 0.0, %v1223
        %v1225 = vpop.f32.mrf.mxu0
        %v1226 = vadd.f32 0.0, %v1225
        %1227 = vmatprep.mubr.bf16.mxu0 0
        %1228 = vmatmul.mubr.bf16.gmra.mxu0 %v1013
        %v1229 = vpop.f32.mrf.mxu0
        %v1230 = vadd.f32 0.0, %v1229
        %v1231 = vpop.f32.mrf.mxu0
        %v1232 = vadd.f32 0.0, %v1231
        %v1233 = vpop.f32.mrf.mxu0
        %v1234 = vadd.f32 0.0, %v1233
        %v1235 = vpop.f32.mrf.mxu0
        %v1236 = vadd.f32 0.0, %v1235
        %1237 = vmatprep.mubr.bf16.mxu0 0
        %1238 = vmatmul.mubr.bf16.gmra.mxu0 %v1014
        %v1239 = vpop.f32.mrf.mxu0
        %v1240 = vadd.f32 0.0, %v1239
        %v1241 = vpop.f32.mrf.mxu0
        %v1242 = vadd.f32 0.0, %v1241
        %v1243 = vpop.f32.mrf.mxu0
        %v1244 = vadd.f32 0.0, %v1243
        %v1245 = vpop.f32.mrf.mxu0
        %v1246 = vadd.f32 0.0, %v1245
        %1247 = vmatprep.mubr.bf16.mxu0 0
        %1248 = vmatmul.mubr.bf16.gmra.mxu0 %v1015
        %v1249 = vpop.f32.mrf.mxu0
        %v1250 = vadd.f32 0.0, %v1249
        %v1251 = vpop.f32.mrf.mxu0
        %v1252 = vadd.f32 0.0, %v1251
        %v1253 = vpop.f32.mrf.mxu0
        %v1254 = vadd.f32 0.0, %v1253
        %v1255 = vpop.f32.mrf.mxu0
        %v1256 = vadd.f32 0.0, %v1255
        %1257 = vmatprep.mubr.bf16.mxu0 0
        %1258 = vmatmul.mubr.bf16.gmra.mxu0 %v1016
        %v1259 = vpop.f32.mrf.mxu0
        %v1260 = vadd.f32 0.0, %v1259
        %v1261 = vpop.f32.mrf.mxu0
        %v1262 = vadd.f32 0.0, %v1261
        %v1263 = vpop.f32.mrf.mxu0
        %v1264 = vadd.f32 0.0, %v1263
        %v1265 = vpop.f32.mrf.mxu0
        %v1266 = vadd.f32 0.0, %v1265
        %1267 = vmatprep.mubr.bf16.mxu0 0
        %1268 = vmatmul.mubr.bf16.gmra.mxu0 %v1017
        %v1269 = vpop.f32.mrf.mxu0
        %v1270 = vadd.f32 0.0, %v1269
        %v1271 = vpop.f32.mrf.mxu0
        %v1272 = vadd.f32 0.0, %v1271
        %v1273 = vpop.f32.mrf.mxu0
        %v1274 = vadd.f32 0.0, %v1273
        %v1275 = vpop.f32.mrf.mxu0
        %v1276 = vadd.f32 0.0, %v1275
        %1277 = vmatprep.mubr.bf16.mxu0 0
        %1278 = vmatmul.mubr.bf16.gmra.mxu0 %v1018
        %v1279 = vpop.f32.mrf.mxu0
        %v1280 = vadd.f32 0.0, %v1279
        %v1281 = vpop.f32.mrf.mxu0
        %v1282 = vadd.f32 0.0, %v1281
        %v1283 = vpop.f32.mrf.mxu0
        %v1284 = vadd.f32 0.0, %v1283
        %v1285 = vpop.f32.mrf.mxu0
        %v1286 = vadd.f32 0.0, %v1285
        %1287 = vmatprep.mubr.bf16.mxu0 0
        %1288 = vmatmul.mubr.bf16.gmra.mxu0 %v1019
        %v1289 = vpop.f32.mrf.mxu0
        %v1290 = vadd.f32 0.0, %v1289
        %v1291 = vpop.f32.mrf.mxu0
        %v1292 = vadd.f32 0.0, %v1291
        %v1293 = vpop.f32.mrf.mxu0
        %v1294 = vadd.f32 0.0, %v1293
        %v1295 = vpop.f32.mrf.mxu0
        %v1296 = vadd.f32 0.0, %v1295
        %1297 = vmatprep.mubr.bf16.mxu0 0
        %1298 = vmatmul.mubr.bf16.gmra.mxu0 %v1020
        %v1299 = vpop.f32.mrf.mxu0
        %v1300 = vadd.f32 0.0, %v1299
        %v1301 = vpop.f32.mrf.mxu0
        %v1302 = vadd.f32 0.0, %v1301
        %v1303 = vpop.f32.mrf.mxu0
        %v1304 = vadd.f32 0.0, %v1303
        %v1305 = vpop.f32.mrf.mxu0
        %v1306 = vadd.f32 0.0, %v1305
        %1307 = vmatprep.mubr.bf16.mxu0 0
        %1308 = vmatmul.mubr.bf16.gmra.mxu0 %v1021
        %v1309 = vpop.f32.mrf.mxu0
        %v1310 = vadd.f32 0.0, %v1309
        %v1311 = vpop.f32.mrf.mxu0
        %v1312 = vadd.f32 0.0, %v1311
        %v1313 = vpop.f32.mrf.mxu0
        %v1314 = vadd.f32 0.0, %v1313
        %v1315 = vpop.f32.mrf.mxu0
        %v1316 = vadd.f32 0.0, %v1315
        %1317 = vmatprep.mubr.bf16.mxu0 0
        %1318 = vmatmul.mubr.bf16.gmra.mxu0 %v1022
        %v1319 = vpop.f32.mrf.mxu0
        %v1320 = vadd.f32 0.0, %v1319
        %v1321 = vpop.f32.mrf.mxu0
        %v1322 = vadd.f32 0.0, %v1321
        %v1323 = vpop.f32.mrf.mxu0
        %v1324 = vadd.f32 0.0, %v1323
        %v1325 = vpop.f32.mrf.mxu0
        %v1326 = vadd.f32 0.0, %v1325
        %1327 = vdwg.mxu0
        %v1328 = vmax.f32 %v1170, %v1172
        %1329 = vmax.xlane.f32.xlu0 %v1328
        %v1330 = vpop.xlane.xlu0 %1329
        %v1331 = vmax.f32 %v1174, %v1176
        %1332 = vmax.xlane.f32.xlu0 %v1331
        %v1333 = vpop.xlane.xlu0 %1332
        %v1334 = vmax.f32 %v1180, %v1182
        %1335 = vmax.xlane.f32.xlu0 %v1334
        %v1336 = vpop.xlane.xlu0 %1335
        %v1337 = vmax.f32 %v1184, %v1186
        %1338 = vmax.xlane.f32.xlu0 %v1337
        %v1339 = vpop.xlane.xlu0 %1338
        %v1340 = vmax.f32 %v1190, %v1192
        %1341 = vmax.xlane.f32.xlu0 %v1340
        %v1342 = vpop.xlane.xlu0 %1341
        %v1343 = vmax.f32 %v1194, %v1196
        %1344 = vmax.xlane.f32.xlu0 %v1343
        %v1345 = vpop.xlane.xlu0 %1344
        %v1346 = vmax.f32 %v1200, %v1202
        %1347 = vmax.xlane.f32.xlu0 %v1346
        %v1348 = vpop.xlane.xlu0 %1347
        %v1349 = vmax.f32 %v1204, %v1206
        %1350 = vmax.xlane.f32.xlu0 %v1349
        %v1351 = vpop.xlane.xlu0 %1350
        %v1352 = vmax.f32 %v1210, %v1212
        %1353 = vmax.xlane.f32.xlu0 %v1352
        %v1354 = vpop.xlane.xlu0 %1353
        %v1355 = vmax.f32 %v1214, %v1216
        %1356 = vmax.xlane.f32.xlu0 %v1355
        %v1357 = vpop.xlane.xlu0 %1356
        %v1358 = vmax.f32 %v1220, %v1222
        %1359 = vmax.xlane.f32.xlu0 %v1358
        %v1360 = vpop.xlane.xlu0 %1359
        %v1361 = vmax.f32 %v1224, %v1226
        %1362 = vmax.xlane.f32.xlu0 %v1361
        %v1363 = vpop.xlane.xlu0 %1362
        %v1364 = vmax.f32 %v1230, %v1232
        %1365 = vmax.xlane.f32.xlu0 %v1364
        %v1366 = vpop.xlane.xlu0 %1365
        %v1367 = vmax.f32 %v1234, %v1236
        %1368 = vmax.xlane.f32.xlu0 %v1367
        %v1369 = vpop.xlane.xlu0 %1368
        %v1370 = vmax.f32 %v1240, %v1242
        %1371 = vmax.xlane.f32.xlu0 %v1370
        %v1372 = vpop.xlane.xlu0 %1371
        %v1373 = vmax.f32 %v1244, %v1246
        %1374 = vmax.xlane.f32.xlu0 %v1373
        %v1375 = vpop.xlane.xlu0 %1374
        %v1376 = vmax.f32 %v1250, %v1252
        %1377 = vmax.xlane.f32.xlu0 %v1376
        %v1378 = vpop.xlane.xlu0 %1377
        %v1379 = vmax.f32 %v1254, %v1256
        %1380 = vmax.xlane.f32.xlu0 %v1379
        %v1381 = vpop.xlane.xlu0 %1380
        %v1382 = vmax.f32 %v1260, %v1262
        %1383 = vmax.xlane.f32.xlu0 %v1382
        %v1384 = vpop.xlane.xlu0 %1383
        %v1385 = vmax.f32 %v1264, %v1266
        %1386 = vmax.xlane.f32.xlu0 %v1385
        %v1387 = vpop.xlane.xlu0 %1386
        %v1388 = vmax.f32 %v1270, %v1272
        %1389 = vmax.xlane.f32.xlu0 %v1388
        %v1390 = vpop.xlane.xlu0 %1389
        %v1391 = vmax.f32 %v1274, %v1276
        %1392 = vmax.xlane.f32.xlu0 %v1391
        %v1393 = vpop.xlane.xlu0 %1392
        %v1394 = vmax.f32 %v1280, %v1282
        %1395 = vmax.xlane.f32.xlu0 %v1394
        %v1396 = vpop.xlane.xlu0 %1395
        %v1397 = vmax.f32 %v1284, %v1286
        %1398 = vmax.xlane.f32.xlu0 %v1397
        %v1399 = vpop.xlane.xlu0 %1398
        %v1400 = vmax.f32 %v1290, %v1292
        %1401 = vmax.xlane.f32.xlu0 %v1400
        %v1402 = vpop.xlane.xlu0 %1401
        %v1403 = vmax.f32 %v1294, %v1296
        %1404 = vmax.xlane.f32.xlu0 %v1403
        %v1405 = vpop.xlane.xlu0 %1404
        %v1406 = vmax.f32 %v1300, %v1302
        %1407 = vmax.xlane.f32.xlu0 %v1406
        %v1408 = vpop.xlane.xlu0 %1407
        %v1409 = vmax.f32 %v1304, %v1306
        %1410 = vmax.xlane.f32.xlu0 %v1409
        %v1411 = vpop.xlane.xlu0 %1410
        %v1412 = vmax.f32 %v1310, %v1312
        %1413 = vmax.xlane.f32.xlu0 %v1412
        %v1414 = vpop.xlane.xlu0 %1413
        %v1415 = vmax.f32 %v1314, %v1316
        %1416 = vmax.xlane.f32.xlu0 %v1415
        %v1417 = vpop.xlane.xlu0 %1416
        %v1418 = vmax.f32 %v1320, %v1322
        %1419 = vmax.xlane.f32.xlu0 %v1418
        %v1420 = vpop.xlane.xlu0 %1419
        %v1421 = vmax.f32 %v1324, %v1326
        %1422 = vmax.xlane.f32.xlu0 %v1421
        %v1423 = vpop.xlane.xlu0 %1422
        %v1424 = vsub.f32 %v1170, %v1330
        %v1425 = vsub.f32 %v1172, %v1330
        %v1426 = vsub.f32 %v1174, %v1333
        %v1427 = vsub.f32 %v1176, %v1333
        %v1428 = vsub.f32 %v1180, %v1336
        %v1429 = vsub.f32 %v1182, %v1336
        %v1430 = vsub.f32 %v1184, %v1339
        %v1431 = vsub.f32 %v1186, %v1339
        %v1432 = vsub.f32 %v1190, %v1342
        %v1433 = vsub.f32 %v1192, %v1342
        %v1434 = vsub.f32 %v1194, %v1345
        %v1435 = vsub.f32 %v1196, %v1345
        %v1436 = vsub.f32 %v1200, %v1348
        %v1437 = vsub.f32 %v1202, %v1348
        %v1438 = vsub.f32 %v1204, %v1351
        %v1439 = vsub.f32 %v1206, %v1351
        %v1440 = vsub.f32 %v1210, %v1354
        %v1441 = vsub.f32 %v1212, %v1354
        %v1442 = vsub.f32 %v1214, %v1357
        %v1443 = vsub.f32 %v1216, %v1357
        %v1444 = vsub.f32 %v1220, %v1360
        %v1445 = vsub.f32 %v1222, %v1360
        %v1446 = vsub.f32 %v1224, %v1363
        %v1447 = vsub.f32 %v1226, %v1363
        %v1448 = vsub.f32 %v1230, %v1366
        %v1449 = vsub.f32 %v1232, %v1366
        %v1450 = vsub.f32 %v1234, %v1369
        %v1451 = vsub.f32 %v1236, %v1369
        %v1452 = vsub.f32 %v1240, %v1372
        %v1453 = vsub.f32 %v1242, %v1372
        %v1454 = vsub.f32 %v1244, %v1375
        %v1455 = vsub.f32 %v1246, %v1375
        %v1456 = vsub.f32 %v1250, %v1378
        %v1457 = vsub.f32 %v1252, %v1378
        %v1458 = vsub.f32 %v1254, %v1381
        %v1459 = vsub.f32 %v1256, %v1381
        %v1460 = vsub.f32 %v1260, %v1384
        %v1461 = vsub.f32 %v1262, %v1384
        %v1462 = vsub.f32 %v1264, %v1387
        %v1463 = vsub.f32 %v1266, %v1387
        %v1464 = vsub.f32 %v1270, %v1390
        %v1465 = vsub.f32 %v1272, %v1390
        %v1466 = vsub.f32 %v1274, %v1393
        %v1467 = vsub.f32 %v1276, %v1393
        %v1468 = vsub.f32 %v1280, %v1396
        %v1469 = vsub.f32 %v1282, %v1396
        %v1470 = vsub.f32 %v1284, %v1399
        %v1471 = vsub.f32 %v1286, %v1399
        %v1472 = vsub.f32 %v1290, %v1402
        %v1473 = vsub.f32 %v1292, %v1402
        %v1474 = vsub.f32 %v1294, %v1405
        %v1475 = vsub.f32 %v1296, %v1405
        %v1476 = vsub.f32 %v1300, %v1408
        %v1477 = vsub.f32 %v1302, %v1408
        %v1478 = vsub.f32 %v1304, %v1411
        %v1479 = vsub.f32 %v1306, %v1411
        %v1480 = vsub.f32 %v1310, %v1414
        %v1481 = vsub.f32 %v1312, %v1414
        %v1482 = vsub.f32 %v1314, %v1417
        %v1483 = vsub.f32 %v1316, %v1417
        %v1484 = vsub.f32 %v1320, %v1420
        %v1485 = vsub.f32 %v1322, %v1420
        %v1486 = vsub.f32 %v1324, %v1423
        %v1487 = vsub.f32 %v1326, %v1423
        %v1488 = vmul.f32 %v1424, 1.442695
        %v1489 = vpow.pop %v1488
        %v1490 = vmul.f32 %v1425, 1.442695
        %v1491 = vpow.pop %v1490
        %v1492 = vmul.f32 %v1426, 1.442695
        %v1493 = vpow.pop %v1492
        %v1494 = vmul.f32 %v1427, 1.442695
        %v1495 = vpow.pop %v1494
        %v1496 = vmul.f32 %v1428, 1.442695
        %v1497 = vpow.pop %v1496
        %v1498 = vmul.f32 %v1429, 1.442695
        %v1499 = vpow.pop %v1498
        %v1500 = vmul.f32 %v1430, 1.442695
        %v1501 = vpow.pop %v1500
        %v1502 = vmul.f32 %v1431, 1.442695
        %v1503 = vpow.pop %v1502
        %v1504 = vmul.f32 %v1432, 1.442695
        %v1505 = vpow.pop %v1504
        %v1506 = vmul.f32 %v1433, 1.442695
        %v1507 = vpow.pop %v1506
        %v1508 = vmul.f32 %v1434, 1.442695
        %v1509 = vpow.pop %v1508
        %v1510 = vmul.f32 %v1435, 1.442695
        %v1511 = vpow.pop %v1510
        %v1512 = vmul.f32 %v1436, 1.442695
        %v1513 = vpow.pop %v1512
        %v1514 = vmul.f32 %v1437, 1.442695
        %v1515 = vpow.pop %v1514
        %v1516 = vmul.f32 %v1438, 1.442695
        %v1517 = vpow.pop %v1516
        %v1518 = vmul.f32 %v1439, 1.442695
        %v1519 = vpow.pop %v1518
        %v1520 = vmul.f32 %v1440, 1.442695
        %v1521 = vpow.pop %v1520
        %v1522 = vmul.f32 %v1441, 1.442695
        %v1523 = vpow.pop %v1522
        %v1524 = vmul.f32 %v1442, 1.442695
        %v1525 = vpow.pop %v1524
        %v1526 = vmul.f32 %v1443, 1.442695
        %v1527 = vpow.pop %v1526
        %v1528 = vmul.f32 %v1444, 1.442695
        %v1529 = vpow.pop %v1528
        %v1530 = vmul.f32 %v1445, 1.442695
        %v1531 = vpow.pop %v1530
        %v1532 = vmul.f32 %v1446, 1.442695
        %v1533 = vpow.pop %v1532
        %v1534 = vmul.f32 %v1447, 1.442695
        %v1535 = vpow.pop %v1534
        %v1536 = vmul.f32 %v1448, 1.442695
        %v1537 = vpow.pop %v1536
        %v1538 = vmul.f32 %v1449, 1.442695
        %v1539 = vpow.pop %v1538
        %v1540 = vmul.f32 %v1450, 1.442695
        %v1541 = vpow.pop %v1540
        %v1542 = vmul.f32 %v1451, 1.442695
        %v1543 = vpow.pop %v1542
        %v1544 = vmul.f32 %v1452, 1.442695
        %v1545 = vpow.pop %v1544
        %v1546 = vmul.f32 %v1453, 1.442695
        %v1547 = vpow.pop %v1546
        %v1548 = vmul.f32 %v1454, 1.442695
        %v1549 = vpow.pop %v1548
        %v1550 = vmul.f32 %v1455, 1.442695
        %v1551 = vpow.pop %v1550
        %v1552 = vmul.f32 %v1456, 1.442695
        %v1553 = vpow.pop %v1552
        %v1554 = vmul.f32 %v1457, 1.442695
        %v1555 = vpow.pop %v1554
        %v1556 = vmul.f32 %v1458, 1.442695
        %v1557 = vpow.pop %v1556
        %v1558 = vmul.f32 %v1459, 1.442695
        %v1559 = vpow.pop %v1558
        %v1560 = vmul.f32 %v1460, 1.442695
        %v1561 = vpow.pop %v1560
        %v1562 = vmul.f32 %v1461, 1.442695
        %v1563 = vpow.pop %v1562
        %v1564 = vmul.f32 %v1462, 1.442695
        %v1565 = vpow.pop %v1564
        %v1566 = vmul.f32 %v1463, 1.442695
        %v1567 = vpow.pop %v1566
        %v1568 = vmul.f32 %v1464, 1.442695
        %v1569 = vpow.pop %v1568
        %v1570 = vmul.f32 %v1465, 1.442695
        %v1571 = vpow.pop %v1570
        %v1572 = vmul.f32 %v1466, 1.442695
        %v1573 = vpow.pop %v1572
        %v1574 = vmul.f32 %v1467, 1.442695
        %v1575 = vpow.pop %v1574
        %v1576 = vmul.f32 %v1468, 1.442695
        %v1577 = vpow.pop %v1576
        %v1578 = vmul.f32 %v1469, 1.442695
        %v1579 = vpow.pop %v1578
        %v1580 = vmul.f32 %v1470, 1.442695
        %v1581 = vpow.pop %v1580
        %v1582 = vmul.f32 %v1471, 1.442695
        %v1583 = vpow.pop %v1582
        %v1584 = vmul.f32 %v1472, 1.442695
        %v1585 = vpow.pop %v1584
        %v1586 = vmul.f32 %v1473, 1.442695
        %v1587 = vpow.pop %v1586
        %v1588 = vmul.f32 %v1474, 1.442695
        %v1589 = vpow.pop %v1588
        %v1590 = vmul.f32 %v1475, 1.442695
        %v1591 = vpow.pop %v1590
        %v1592 = vmul.f32 %v1476, 1.442695
        %v1593 = vpow.pop %v1592
        %v1594 = vmul.f32 %v1477, 1.442695
        %v1595 = vpow.pop %v1594
        %v1596 = vmul.f32 %v1478, 1.442695
        %v1597 = vpow.pop %v1596
        %v1598 = vmul.f32 %v1479, 1.442695
        %v1599 = vpow.pop %v1598
        %v1600 = vmul.f32 %v1480, 1.442695
        %v1601 = vpow.pop %v1600
        %v1602 = vmul.f32 %v1481, 1.442695
        %v1603 = vpow.pop %v1602
        %v1604 = vmul.f32 %v1482, 1.442695
        %v1605 = vpow.pop %v1604
        %v1606 = vmul.f32 %v1483, 1.442695
        %v1607 = vpow.pop %v1606
        %v1608 = vmul.f32 %v1484, 1.442695
        %v1609 = vpow.pop %v1608
        %v1610 = vmul.f32 %v1485, 1.442695
        %v1611 = vpow.pop %v1610
        %v1612 = vmul.f32 %v1486, 1.442695
        %v1613 = vpow.pop %v1612
        %v1614 = vmul.f32 %v1487, 1.442695
        %v1615 = vpow.pop %v1614
        %v1616 = vadd.f32 %v1489, %v1491
        %1617 = vadd.xlane.f32.xlu0 %v1616
        %v1618 = vpop.xlane.xlu0 %1617
        %v1619 = vadd.f32 %v1493, %v1495
        %1620 = vadd.xlane.f32.xlu0 %v1619
        %v1621 = vpop.xlane.xlu0 %1620
        %v1622 = vadd.f32 %v1497, %v1499
        %1623 = vadd.xlane.f32.xlu0 %v1622
        %v1624 = vpop.xlane.xlu0 %1623
        %v1625 = vadd.f32 %v1501, %v1503
        %1626 = vadd.xlane.f32.xlu0 %v1625
        %v1627 = vpop.xlane.xlu0 %1626
        %v1628 = vadd.f32 %v1505, %v1507
        %1629 = vadd.xlane.f32.xlu0 %v1628
        %v1630 = vpop.xlane.xlu0 %1629
        %v1631 = vadd.f32 %v1509, %v1511
        %1632 = vadd.xlane.f32.xlu0 %v1631
        %v1633 = vpop.xlane.xlu0 %1632
        %v1634 = vadd.f32 %v1513, %v1515
        %1635 = vadd.xlane.f32.xlu0 %v1634
        %v1636 = vpop.xlane.xlu0 %1635
        %v1637 = vadd.f32 %v1517, %v1519
        %1638 = vadd.xlane.f32.xlu0 %v1637
        %v1639 = vpop.xlane.xlu0 %1638
        %v1640 = vadd.f32 %v1521, %v1523
        %1641 = vadd.xlane.f32.xlu0 %v1640
        %v1642 = vpop.xlane.xlu0 %1641
        %v1643 = vadd.f32 %v1525, %v1527
        %1644 = vadd.xlane.f32.xlu0 %v1643
        %v1645 = vpop.xlane.xlu0 %1644
        %v1646 = vadd.f32 %v1529, %v1531
        %1647 = vadd.xlane.f32.xlu0 %v1646
        %v1648 = vpop.xlane.xlu0 %1647
        %v1649 = vadd.f32 %v1533, %v1535
        %1650 = vadd.xlane.f32.xlu0 %v1649
        %v1651 = vpop.xlane.xlu0 %1650
        %v1652 = vadd.f32 %v1537, %v1539
        %1653 = vadd.xlane.f32.xlu0 %v1652
        %v1654 = vpop.xlane.xlu0 %1653
        %v1655 = vadd.f32 %v1541, %v1543
        %1656 = vadd.xlane.f32.xlu0 %v1655
        %v1657 = vpop.xlane.xlu0 %1656
        %v1658 = vadd.f32 %v1545, %v1547
        %1659 = vadd.xlane.f32.xlu0 %v1658
        %v1660 = vpop.xlane.xlu0 %1659
        %v1661 = vadd.f32 %v1549, %v1551
        %1662 = vadd.xlane.f32.xlu0 %v1661
        %v1663 = vpop.xlane.xlu0 %1662
        %v1664 = vadd.f32 %v1553, %v1555
        %1665 = vadd.xlane.f32.xlu0 %v1664
        %v1666 = vpop.xlane.xlu0 %1665
        %v1667 = vadd.f32 %v1557, %v1559
        %1668 = vadd.xlane.f32.xlu0 %v1667
        %v1669 = vpop.xlane.xlu0 %1668
        %v1670 = vadd.f32 %v1561, %v1563
        %1671 = vadd.xlane.f32.xlu0 %v1670
        %v1672 = vpop.xlane.xlu0 %1671
        %v1673 = vadd.f32 %v1565, %v1567
        %1674 = vadd.xlane.f32.xlu0 %v1673
        %v1675 = vpop.xlane.xlu0 %1674
        %v1676 = vadd.f32 %v1569, %v1571
        %1677 = vadd.xlane.f32.xlu0 %v1676
        %v1678 = vpop.xlane.xlu0 %1677
        %v1679 = vadd.f32 %v1573, %v1575
        %1680 = vadd.xlane.f32.xlu0 %v1679
        %v1681 = vpop.xlane.xlu0 %1680
        %v1682 = vadd.f32 %v1577, %v1579
        %1683 = vadd.xlane.f32.xlu0 %v1682
        %v1684 = vpop.xlane.xlu0 %1683
        %v1685 = vadd.f32 %v1581, %v1583
        %1686 = vadd.xlane.f32.xlu0 %v1685
        %v1687 = vpop.xlane.xlu0 %1686
        %v1688 = vadd.f32 %v1585, %v1587
        %1689 = vadd.xlane.f32.xlu0 %v1688
        %v1690 = vpop.xlane.xlu0 %1689
        %v1691 = vadd.f32 %v1589, %v1591
        %1692 = vadd.xlane.f32.xlu0 %v1691
        %v1693 = vpop.xlane.xlu0 %1692
        %v1694 = vadd.f32 %v1593, %v1595
        %1695 = vadd.xlane.f32.xlu0 %v1694
        %v1696 = vpop.xlane.xlu0 %1695
        %v1697 = vadd.f32 %v1597, %v1599
        %1698 = vadd.xlane.f32.xlu0 %v1697
        %v1699 = vpop.xlane.xlu0 %1698
        %v1700 = vadd.f32 %v1601, %v1603
        %1701 = vadd.xlane.f32.xlu0 %v1700
        %v1702 = vpop.xlane.xlu0 %1701
        %v1703 = vadd.f32 %v1605, %v1607
        %1704 = vadd.xlane.f32.xlu0 %v1703
        %v1705 = vpop.xlane.xlu0 %1704
        %v1706 = vadd.f32 %v1609, %v1611
        %1707 = vadd.xlane.f32.xlu0 %v1706
        %v1708 = vpop.xlane.xlu0 %1707
        %v1709 = vadd.f32 %v1613, %v1615
        %1710 = vadd.xlane.f32.xlu0 %v1709
        %v1711 = vpop.xlane.xlu0 %1710
        %v1712 = vrcp.pop %v1618
        %v1713 = vrcp.pop %v1621
        %v1714 = vrcp.pop %v1624
        %v1715 = vrcp.pop %v1627
        %v1716 = vrcp.pop %v1630
        %v1717 = vrcp.pop %v1633
        %v1718 = vrcp.pop %v1636
        %v1719 = vrcp.pop %v1639
        %v1720 = vrcp.pop %v1642
        %v1721 = vrcp.pop %v1645
        %v1722 = vrcp.pop %v1648
        %v1723 = vrcp.pop %v1651
        %v1724 = vrcp.pop %v1654
        %v1725 = vrcp.pop %v1657
        %v1726 = vrcp.pop %v1660
        %v1727 = vrcp.pop %v1663
        %v1728 = vrcp.pop %v1666
        %v1729 = vrcp.pop %v1669
        %v1730 = vrcp.pop %v1672
        %v1731 = vrcp.pop %v1675
        %v1732 = vrcp.pop %v1678
        %v1733 = vrcp.pop %v1681
        %v1734 = vrcp.pop %v1684
        %v1735 = vrcp.pop %v1687
        %v1736 = vrcp.pop %v1690
        %v1737 = vrcp.pop %v1693
        %v1738 = vrcp.pop %v1696
        %v1739 = vrcp.pop %v1699
        %v1740 = vrcp.pop %v1702
        %v1741 = vrcp.pop %v1705
        %v1742 = vrcp.pop %v1708
        %v1743 = vrcp.pop %v1711
        %v1744 = vpack.c.bf16 %v1493, %v1489
        %v1745 = vpack.c.bf16 %v1495, %v1491
        %v1746 = vpack.c.bf16 %v1501, %v1497
        %v1747 = vpack.c.bf16 %v1503, %v1499
        %v1748 = vpack.c.bf16 %v1509, %v1505
        %v1749 = vpack.c.bf16 %v1511, %v1507
        %v1750 = vpack.c.bf16 %v1517, %v1513
        %v1751 = vpack.c.bf16 %v1519, %v1515
        %v1752 = vpack.c.bf16 %v1525, %v1521
        %v1753 = vpack.c.bf16 %v1527, %v1523
        %v1754 = vpack.c.bf16 %v1533, %v1529
        %v1755 = vpack.c.bf16 %v1535, %v1531
        %v1756 = vpack.c.bf16 %v1541, %v1537
        %v1757 = vpack.c.bf16 %v1543, %v1539
        %v1758 = vpack.c.bf16 %v1549, %v1545
        %v1759 = vpack.c.bf16 %v1551, %v1547
        %v1760 = vpack.c.bf16 %v1557, %v1553
        %v1761 = vpack.c.bf16 %v1559, %v1555
        %v1762 = vpack.c.bf16 %v1565, %v1561
        %v1763 = vpack.c.bf16 %v1567, %v1563
        %v1764 = vpack.c.bf16 %v1573, %v1569
        %v1765 = vpack.c.bf16 %v1575, %v1571
        %v1766 = vpack.c.bf16 %v1581, %v1577
        %v1767 = vpack.c.bf16 %v1583, %v1579
        %v1768 = vpack.c.bf16 %v1589, %v1585
        %v1769 = vpack.c.bf16 %v1591, %v1587
        %v1770 = vpack.c.bf16 %v1597, %v1593
        %v1771 = vpack.c.bf16 %v1599, %v1595
        %v1772 = vpack.c.bf16 %v1605, %v1601
        %v1773 = vpack.c.bf16 %v1607, %v1603
        %v1774 = vpack.c.bf16 %v1613, %v1609
        %v1775 = vpack.c.bf16 %v1615, %v1611
        %v1808 = vunpack.c.l.b16 %v911
        %v1809 = vunpack.c.l.b16 %v912
        %v1810 = vunpack.c.l.b16 %v913
        %v1811 = vunpack.c.l.b16 %v914
        %v1812 = vunpack.c.l.b16 %v915
        %v1813 = vunpack.c.l.b16 %v916
        %v1814 = vunpack.c.l.b16 %v917
        %v1815 = vunpack.c.l.b16 %v918
        %v1816 = vunpack.c.l.b16 %v919
        %v1817 = vunpack.c.l.b16 %v920
        %v1818 = vunpack.c.l.b16 %v921
        %v1819 = vunpack.c.l.b16 %v922
        %v1820 = vunpack.c.l.b16 %v923
        %v1821 = vunpack.c.l.b16 %v924
        %v1822 = vunpack.c.l.b16 %v925
        %v1823 = vunpack.c.l.b16 %v926
        %v1824 = vunpack.c.l.b16 %v927
        %v1825 = vunpack.c.l.b16 %v928
        %v1826 = vunpack.c.l.b16 %v929
        %v1827 = vunpack.c.l.b16 %v930
        %v1828 = vunpack.c.l.b16 %v931
        %v1829 = vunpack.c.l.b16 %v932
        %v1830 = vunpack.c.l.b16 %v933
        %v1831 = vunpack.c.l.b16 %v934
        %v1832 = vunpack.c.l.b16 %v935
        %v1833 = vunpack.c.l.b16 %v936
        %v1834 = vunpack.c.l.b16 %v937
        %v1835 = vunpack.c.l.b16 %v938
        %v1836 = vunpack.c.l.b16 %v939
        %v1837 = vunpack.c.l.b16 %v940
        %v1838 = vunpack.c.l.b16 %v941
        %v1839 = vunpack.c.l.b16 %v942
        %v1840 = vpack.c.b16 %v1809, %v1808
        %v1841 = vpack.c.b16 %v1811, %v1810
        %v1842 = vpack.c.b16 %v1813, %v1812
        %v1843 = vpack.c.b16 %v1815, %v1814
        %v1844 = vpack.c.b16 %v1817, %v1816
        %v1845 = vpack.c.b16 %v1819, %v1818
        %v1846 = vpack.c.b16 %v1821, %v1820
        %v1847 = vpack.c.b16 %v1823, %v1822
        %v1848 = vpack.c.b16 %v1825, %v1824
        %v1849 = vpack.c.b16 %v1827, %v1826
        %v1850 = vpack.c.b16 %v1829, %v1828
        %v1851 = vpack.c.b16 %v1831, %v1830
        %v1852 = vpack.c.b16 %v1833, %v1832
        %v1853 = vpack.c.b16 %v1835, %v1834
        %v1854 = vpack.c.b16 %v1837, %v1836
        %v1855 = vpack.c.b16 %v1839, %v1838
        %1872 = vmatprep.subr.bf16.mxu0 0
        %1873 = vmatpush1.bf16.msra.mxu0 %v1847
        %1874 = vmatprep.subr.bf16.mxu0 0
        %1875 = vmatpush1.bf16.msra.mxu0 %v1846
        %1876 = vmatprep.subr.bf16.mxu0 0
        %1877 = vmatpush1.bf16.msra.mxu0 %v1845
        %1878 = vmatprep.subr.bf16.mxu0 0
        %1879 = vmatpush1.bf16.msra.mxu0 %v1844
        %1880 = vmatprep.subr.bf16.mxu0 0
        %1881 = vmatpush1.bf16.msra.mxu0 %v1843
        %1882 = vmatprep.subr.bf16.mxu0 0
        %1883 = vmatpush1.bf16.msra.mxu0 %v1842
        %1884 = vmatprep.subr.bf16.mxu0 0
        %1885 = vmatpush1.bf16.msra.mxu0 %v1841
        %1886 = vmatprep.subr.bf16.mxu0 0
        %1887 = vmatpush1.bf16.msra.mxu0 %v1840
        %1888 = vmatprep.subr.bf16.mxu0 0
        %1889 = vmatpush2.bf16.msra.mxu0 %v1855
        %1890 = vmatprep.subr.bf16.mxu0 0
        %1891 = vmatpush2.bf16.msra.mxu0 %v1854
        %1892 = vmatprep.subr.bf16.mxu0 0
        %1893 = vmatpush2.bf16.msra.mxu0 %v1853
        %1894 = vmatprep.subr.bf16.mxu0 0
        %1895 = vmatpush2.bf16.msra.mxu0 %v1852
        %1896 = vmatprep.subr.bf16.mxu0 0
        %1897 = vmatpush2.bf16.msra.mxu0 %v1851
        %1898 = vmatprep.subr.bf16.mxu0 0
        %1899 = vmatpush2.bf16.msra.mxu0 %v1850
        %1900 = vmatprep.subr.bf16.mxu0 0
        %1901 = vmatpush2.bf16.msra.mxu0 %v1849
        %1902 = vmatprep.subr.bf16.mxu0 0
        %1903 = vmatpush2.bf16.msra.mxu0 %v1848
        %1904 = vmatprep.mubr.bf16.mxu0 %v1745
        %1905 = vmatmul.mubr.bf16.gmra.mxu0 %v1744
        %v1906 = vpop.f32.mrf.mxu0
        %v1907 = vadd.f32 0.0, %v1906
        %v1908 = vpop.f32.mrf.mxu0
        %v1909 = vpop.f32.mrf.mxu0
        %v1910 = vadd.f32 0.0, %v1909
        %v1911 = vpop.f32.mrf.mxu0
        %1912 = vmatprep.mubr.bf16.mxu0 %v1747
        %1913 = vmatmul.mubr.bf16.gmra.mxu0 %v1746
        %v1914 = vpop.f32.mrf.mxu0
        %v1915 = vadd.f32 0.0, %v1914
        %v1916 = vpop.f32.mrf.mxu0
        %v1917 = vpop.f32.mrf.mxu0
        %v1918 = vadd.f32 0.0, %v1917
        %v1919 = vpop.f32.mrf.mxu0
        %1920 = vmatprep.mubr.bf16.mxu0 %v1749
        %1921 = vmatmul.mubr.bf16.gmra.mxu0 %v1748
        %v1922 = vpop.f32.mrf.mxu0
        %v1923 = vadd.f32 0.0, %v1922
        %v1924 = vpop.f32.mrf.mxu0
        %v1925 = vpop.f32.mrf.mxu0
        %v1926 = vadd.f32 0.0, %v1925
        %v1927 = vpop.f32.mrf.mxu0
        %1928 = vmatprep.mubr.bf16.mxu0 %v1751
        %1929 = vmatmul.mubr.bf16.gmra.mxu0 %v1750
        %v1930 = vpop.f32.mrf.mxu0
        %v1931 = vadd.f32 0.0, %v1930
        %v1932 = vpop.f32.mrf.mxu0
        %v1933 = vpop.f32.mrf.mxu0
        %v1934 = vadd.f32 0.0, %v1933
        %v1935 = vpop.f32.mrf.mxu0
        %1936 = vmatprep.mubr.bf16.mxu0 %v1753
        %1937 = vmatmul.mubr.bf16.gmra.mxu0 %v1752
        %v1938 = vpop.f32.mrf.mxu0
        %v1939 = vadd.f32 0.0, %v1938
        %v1940 = vpop.f32.mrf.mxu0
        %v1941 = vpop.f32.mrf.mxu0
        %v1942 = vadd.f32 0.0, %v1941
        %v1943 = vpop.f32.mrf.mxu0
        %1944 = vmatprep.mubr.bf16.mxu0 %v1755
        %1945 = vmatmul.mubr.bf16.gmra.mxu0 %v1754
        %v1946 = vpop.f32.mrf.mxu0
        %v1947 = vadd.f32 0.0, %v1946
        %v1948 = vpop.f32.mrf.mxu0
        %v1949 = vpop.f32.mrf.mxu0
        %v1950 = vadd.f32 0.0, %v1949
        %v1951 = vpop.f32.mrf.mxu0
        %1952 = vmatprep.mubr.bf16.mxu0 %v1757
        %1953 = vmatmul.mubr.bf16.gmra.mxu0 %v1756
        %v1954 = vpop.f32.mrf.mxu0
        %v1955 = vadd.f32 0.0, %v1954
        %v1956 = vpop.f32.mrf.mxu0
        %v1957 = vpop.f32.mrf.mxu0
        %v1958 = vadd.f32 0.0, %v1957
        %v1959 = vpop.f32.mrf.mxu0
        %1960 = vmatprep.mubr.bf16.mxu0 %v1759
        %1961 = vmatmul.mubr.bf16.gmra.mxu0 %v1758
        %v1962 = vpop.f32.mrf.mxu0
        %v1963 = vadd.f32 0.0, %v1962
        %v1964 = vpop.f32.mrf.mxu0
        %v1965 = vpop.f32.mrf.mxu0
        %v1966 = vadd.f32 0.0, %v1965
        %v1967 = vpop.f32.mrf.mxu0
        %1968 = vmatprep.mubr.bf16.mxu0 %v1761
        %1969 = vmatmul.mubr.bf16.gmra.mxu0 %v1760
        %v1970 = vpop.f32.mrf.mxu0
        %v1971 = vadd.f32 0.0, %v1970
        %v1972 = vpop.f32.mrf.mxu0
        %v1973 = vpop.f32.mrf.mxu0
        %v1974 = vadd.f32 0.0, %v1973
        %v1975 = vpop.f32.mrf.mxu0
        %1976 = vmatprep.mubr.bf16.mxu0 %v1763
        %1977 = vmatmul.mubr.bf16.gmra.mxu0 %v1762
        %v1978 = vpop.f32.mrf.mxu0
        %v1979 = vadd.f32 0.0, %v1978
        %v1980 = vpop.f32.mrf.mxu0
        %v1981 = vpop.f32.mrf.mxu0
        %v1982 = vadd.f32 0.0, %v1981
        %v1983 = vpop.f32.mrf.mxu0
        %1984 = vmatprep.mubr.bf16.mxu0 %v1765
        %1985 = vmatmul.mubr.bf16.gmra.mxu0 %v1764
        %v1986 = vpop.f32.mrf.mxu0
        %v1987 = vadd.f32 0.0, %v1986
        %v1988 = vpop.f32.mrf.mxu0
        %v1989 = vpop.f32.mrf.mxu0
        %v1990 = vadd.f32 0.0, %v1989
        %v1991 = vpop.f32.mrf.mxu0
        %1992 = vmatprep.mubr.bf16.mxu0 %v1767
        %1993 = vmatmul.mubr.bf16.gmra.mxu0 %v1766
        %v1994 = vpop.f32.mrf.mxu0
        %v1995 = vadd.f32 0.0, %v1994
        %v1996 = vpop.f32.mrf.mxu0
        %v1997 = vpop.f32.mrf.mxu0
        %v1998 = vadd.f32 0.0, %v1997
        %v1999 = vpop.f32.mrf.mxu0
        %2000 = vmatprep.mubr.bf16.mxu0 %v1769
        %2001 = vmatmul.mubr.bf16.gmra.mxu0 %v1768
        %v2002 = vpop.f32.mrf.mxu0
        %v2003 = vadd.f32 0.0, %v2002
        %v2004 = vpop.f32.mrf.mxu0
        %v2005 = vpop.f32.mrf.mxu0
        %v2006 = vadd.f32 0.0, %v2005
        %v2007 = vpop.f32.mrf.mxu0
        %2008 = vmatprep.mubr.bf16.mxu0 %v1771
        %2009 = vmatmul.mubr.bf16.gmra.mxu0 %v1770
        %v2010 = vpop.f32.mrf.mxu0
        %v2011 = vadd.f32 0.0, %v2010
        %v2012 = vpop.f32.mrf.mxu0
        %v2013 = vpop.f32.mrf.mxu0
        %v2014 = vadd.f32 0.0, %v2013
        %v2015 = vpop.f32.mrf.mxu0
        %2016 = vmatprep.mubr.bf16.mxu0 %v1773
        %2017 = vmatmul.mubr.bf16.gmra.mxu0 %v1772
        %v2018 = vpop.f32.mrf.mxu0
        %v2019 = vadd.f32 0.0, %v2018
        %v2020 = vpop.f32.mrf.mxu0
        %v2021 = vpop.f32.mrf.mxu0
        %v2022 = vadd.f32 0.0, %v2021
        %v2023 = vpop.f32.mrf.mxu0
        %2024 = vmatprep.mubr.bf16.mxu0 %v1775
        %2025 = vmatmul.mubr.bf16.gmra.mxu0 %v1774
        %v2026 = vpop.f32.mrf.mxu0
        %v2027 = vadd.f32 0.0, %v2026
        %v2028 = vpop.f32.mrf.mxu0
        %v2029 = vpop.f32.mrf.mxu0
        %v2030 = vadd.f32 0.0, %v2029
        %v2031 = vpop.f32.mrf.mxu0
        %2032 = vdwg.mxu0
        %v2033 = vmul.f32 %v1907, %v1712
        %v2034 = vmul.f32 %v1910, %v1713
        %v2035 = vmul.f32 %v1915, %v1714
        %v2036 = vmul.f32 %v1918, %v1715
        %v2037 = vmul.f32 %v1923, %v1716
        %v2038 = vmul.f32 %v1926, %v1717
        %v2039 = vmul.f32 %v1931, %v1718
        %v2040 = vmul.f32 %v1934, %v1719
        %v2041 = vmul.f32 %v1939, %v1720
        %v2042 = vmul.f32 %v1942, %v1721
        %v2043 = vmul.f32 %v1947, %v1722
        %v2044 = vmul.f32 %v1950, %v1723
        %v2045 = vmul.f32 %v1955, %v1724
        %v2046 = vmul.f32 %v1958, %v1725
        %v2047 = vmul.f32 %v1963, %v1726
        %v2048 = vmul.f32 %v1966, %v1727
        %v2049 = vmul.f32 %v1971, %v1728
        %v2050 = vmul.f32 %v1974, %v1729
        %v2051 = vmul.f32 %v1979, %v1730
        %v2052 = vmul.f32 %v1982, %v1731
        %v2053 = vmul.f32 %v1987, %v1732
        %v2054 = vmul.f32 %v1990, %v1733
        %v2055 = vmul.f32 %v1995, %v1734
        %v2056 = vmul.f32 %v1998, %v1735
        %v2057 = vmul.f32 %v2003, %v1736
        %v2058 = vmul.f32 %v2006, %v1737
        %v2059 = vmul.f32 %v2011, %v1738
        %v2060 = vmul.f32 %v2014, %v1739
        %v2061 = vmul.f32 %v2019, %v1740
        %v2062 = vmul.f32 %v2022, %v1741
        %v2063 = vmul.f32 %v2027, %v1742
        %v2064 = vmul.f32 %v2030, %v1743
        %v2065 = vpack.c.bf16 %v2034, %v2033
        %v2066 = vpack.c.bf16 %v2036, %v2035
        %v2067 = vpack.c.bf16 %v2038, %v2037
        %v2068 = vpack.c.bf16 %v2040, %v2039
        %v2069 = vpack.c.bf16 %v2042, %v2041
        %v2070 = vpack.c.bf16 %v2044, %v2043
        %v2071 = vpack.c.bf16 %v2046, %v2045
        %v2072 = vpack.c.bf16 %v2048, %v2047
        %v2073 = vpack.c.bf16 %v2050, %v2049
        %v2074 = vpack.c.bf16 %v2052, %v2051
        %v2075 = vpack.c.bf16 %v2054, %v2053
        %v2076 = vpack.c.bf16 %v2056, %v2055
        %v2077 = vpack.c.bf16 %v2058, %v2057
        %v2078 = vpack.c.bf16 %v2060, %v2059
        %v2079 = vpack.c.bf16 %v2062, %v2061
        %v2080 = vpack.c.bf16 %v2064, %v2063
        %v2081 = vld [vmem:[%s3] sm:$0xf]
        %v2082 = vld [vmem:[%s3 + $0x4] sm:$0xf]
        %v2083 = vld [vmem:[%s3 + $0x8] sm:$0xf]
        %v2084 = vld [vmem:[%s3 + $0xc] sm:$0xf]
        %v2085 = vld [vmem:[%s3 + $0x10] sm:$0xf]
        %v2086 = vld [vmem:[%s3 + $0x14] sm:$0xf]
        %v2087 = vld [vmem:[%s3 + $0x18] sm:$0xf]
        %v2088 = vld [vmem:[%s3 + $0x1c] sm:$0xf]
        %v2089 = vld [vmem:[%s3 + $0x20] sm:$0xf]
        %v2090 = vld [vmem:[%s3 + $0x24] sm:$0xf]
        %v2091 = vld [vmem:[%s3 + $0x28] sm:$0xf]
        %v2092 = vld [vmem:[%s3 + $0x2c] sm:$0xf]
        %v2093 = vld [vmem:[%s3 + $0x30] sm:$0xf]
        %v2094 = vld [vmem:[%s3 + $0x34] sm:$0xf]
        %v2095 = vld [vmem:[%s3 + $0x38] sm:$0xf]
        %v2096 = vld [vmem:[%s3 + $0x3c] sm:$0xf]
        %v2097 = vld [vmem:[%s4] sm:$0x1]
        %v2099 = vlaneseq
        %v2100 = vshrl.u32 %v2099, 7
        %v2101 = vsub.s32 0, %v2100
        %v2102 = vrot.slane %v2097, %v2101
        %v2120 = vunpack.c.l.b16 %v2081
        %v2121 = vunpack.c.l.b16 %v2082
        %v2122 = vunpack.c.l.b16 %v2083
        %v2123 = vunpack.c.l.b16 %v2084
        %v2124 = vunpack.c.l.b16 %v2085
        %v2125 = vunpack.c.l.b16 %v2086
        %v2126 = vunpack.c.l.b16 %v2087
        %v2127 = vunpack.c.l.b16 %v2088
        %v2128 = vunpack.c.l.b16 %v2089
        %v2129 = vunpack.c.l.b16 %v2090
        %v2130 = vunpack.c.l.b16 %v2091
        %v2131 = vunpack.c.l.b16 %v2092
        %v2132 = vunpack.c.l.b16 %v2093
        %v2133 = vunpack.c.l.b16 %v2094
        %v2134 = vunpack.c.l.b16 %v2095
        %v2135 = vunpack.c.l.b16 %v2096
        %v2136 = vpack.c.b16 %v2121, %v2120
        %v2137 = vpack.c.b16 %v2123, %v2122
        %v2138 = vpack.c.b16 %v2125, %v2124
        %v2139 = vpack.c.b16 %v2127, %v2126
        %v2140 = vpack.c.b16 %v2129, %v2128
        %v2141 = vpack.c.b16 %v2131, %v2130
        %v2142 = vpack.c.b16 %v2133, %v2132
        %v2143 = vpack.c.b16 %v2135, %v2134
        %2152 = vmatprep.subr.bf16.mxu0 0
        %2153 = vmatpush1.bf16.msra.mxu0 %v2143
        %2154 = vmatprep.subr.bf16.mxu0 0
        %2155 = vmatpush1.bf16.msra.mxu0 %v2142
        %2156 = vmatprep.subr.bf16.mxu0 0
        %2157 = vmatpush1.bf16.msra.mxu0 %v2141
        %2158 = vmatprep.subr.bf16.mxu0 0
        %2159 = vmatpush1.bf16.msra.mxu0 %v2140
        %2160 = vmatprep.subr.bf16.mxu0 0
        %2161 = vmatpush1.bf16.msra.mxu0 %v2139
        %2162 = vmatprep.subr.bf16.mxu0 0
        %2163 = vmatpush1.bf16.msra.mxu0 %v2138
        %2164 = vmatprep.subr.bf16.mxu0 0
        %2165 = vmatpush1.bf16.msra.mxu0 %v2137
        %2166 = vmatprep.subr.bf16.mxu0 0
        %2167 = vmatpush1.bf16.msra.mxu0 %v2136
        %2168 = vmatprep.subr.bf16.mxu0 0
        %2169 = vmatpush2.bf16.msra.mxu0 0
        %2170 = vmatprep.subr.bf16.mxu0 0
        %2171 = vmatpush2.bf16.msra.mxu0 0
        %2172 = vmatprep.subr.bf16.mxu0 0
        %2173 = vmatpush2.bf16.msra.mxu0 0
        %2174 = vmatprep.subr.bf16.mxu0 0
        %2175 = vmatpush2.bf16.msra.mxu0 0
        %2176 = vmatprep.subr.bf16.mxu0 0
        %2177 = vmatpush2.bf16.msra.mxu0 0
        %2178 = vmatprep.subr.bf16.mxu0 0
        %2179 = vmatpush2.bf16.msra.mxu0 0
        %2180 = vmatprep.subr.bf16.mxu0 0
        %2181 = vmatpush2.bf16.msra.mxu0 0
        %2182 = vmatprep.subr.bf16.mxu0 0
        %2183 = vmatpush2.bf16.msra.mxu0 0
        %2184 = vmatprep.mubr.bf16.mxu0 0
        %2185 = vmatmul.mubr.bf16.gmra.mxu0 %v2065
        %v2186 = vpop.f32.mrf.mxu0
        %v2187 = vadd.f32 %v2102, %v2186
        %v2188 = vpop.f32.mrf.mxu0
        %v2189 = vpop.f32.mrf.mxu0
        %v2190 = vadd.f32 %v2102, %v2189
        %v2191 = vpop.f32.mrf.mxu0
        %2192 = vmatprep.mubr.bf16.mxu0 0
        %2193 = vmatmul.mubr.bf16.gmra.mxu0 %v2066
        %v2194 = vpop.f32.mrf.mxu0
        %v2195 = vadd.f32 %v2102, %v2194
        %v2196 = vpop.f32.mrf.mxu0
        %v2197 = vpop.f32.mrf.mxu0
        %v2198 = vadd.f32 %v2102, %v2197
        %v2199 = vpop.f32.mrf.mxu0
        %2200 = vmatprep.mubr.bf16.mxu0 0
        %2201 = vmatmul.mubr.bf16.gmra.mxu0 %v2067
        %v2202 = vpop.f32.mrf.mxu0
        %v2203 = vadd.f32 %v2102, %v2202
        %v2204 = vpop.f32.mrf.mxu0
        %v2205 = vpop.f32.mrf.mxu0
        %v2206 = vadd.f32 %v2102, %v2205
        %v2207 = vpop.f32.mrf.mxu0
        %2208 = vmatprep.mubr.bf16.mxu0 0
        %2209 = vmatmul.mubr.bf16.gmra.mxu0 %v2068
        %v2210 = vpop.f32.mrf.mxu0
        %v2211 = vadd.f32 %v2102, %v2210
        %v2212 = vpop.f32.mrf.mxu0
        %v2213 = vpop.f32.mrf.mxu0
        %v2214 = vadd.f32 %v2102, %v2213
        %v2215 = vpop.f32.mrf.mxu0
        %2216 = vmatprep.mubr.bf16.mxu0 0
        %2217 = vmatmul.mubr.bf16.gmra.mxu0 %v2069
        %v2218 = vpop.f32.mrf.mxu0
        %v2219 = vadd.f32 %v2102, %v2218
        %v2220 = vpop.f32.mrf.mxu0
        %v2221 = vpop.f32.mrf.mxu0
        %v2222 = vadd.f32 %v2102, %v2221
        %v2223 = vpop.f32.mrf.mxu0
        %2224 = vmatprep.mubr.bf16.mxu0 0
        %2225 = vmatmul.mubr.bf16.gmra.mxu0 %v2070
        %v2226 = vpop.f32.mrf.mxu0
        %v2227 = vadd.f32 %v2102, %v2226
        %v2228 = vpop.f32.mrf.mxu0
        %v2229 = vpop.f32.mrf.mxu0
        %v2230 = vadd.f32 %v2102, %v2229
        %v2231 = vpop.f32.mrf.mxu0
        %2232 = vmatprep.mubr.bf16.mxu0 0
        %2233 = vmatmul.mubr.bf16.gmra.mxu0 %v2071
        %v2234 = vpop.f32.mrf.mxu0
        %v2235 = vadd.f32 %v2102, %v2234
        %v2236 = vpop.f32.mrf.mxu0
        %v2237 = vpop.f32.mrf.mxu0
        %v2238 = vadd.f32 %v2102, %v2237
        %v2239 = vpop.f32.mrf.mxu0
        %2240 = vmatprep.mubr.bf16.mxu0 0
        %2241 = vmatmul.mubr.bf16.gmra.mxu0 %v2072
        %v2242 = vpop.f32.mrf.mxu0
        %v2243 = vadd.f32 %v2102, %v2242
        %v2244 = vpop.f32.mrf.mxu0
        %v2245 = vpop.f32.mrf.mxu0
        %v2246 = vadd.f32 %v2102, %v2245
        %v2247 = vpop.f32.mrf.mxu0
        %2248 = vmatprep.mubr.bf16.mxu0 0
        %2249 = vmatmul.mubr.bf16.gmra.mxu0 %v2073
        %v2250 = vpop.f32.mrf.mxu0
        %v2251 = vadd.f32 %v2102, %v2250
        %v2252 = vpop.f32.mrf.mxu0
        %v2253 = vpop.f32.mrf.mxu0
        %v2254 = vadd.f32 %v2102, %v2253
        %v2255 = vpop.f32.mrf.mxu0
        %2256 = vmatprep.mubr.bf16.mxu0 0
        %2257 = vmatmul.mubr.bf16.gmra.mxu0 %v2074
        %v2258 = vpop.f32.mrf.mxu0
        %v2259 = vadd.f32 %v2102, %v2258
        %v2260 = vpop.f32.mrf.mxu0
        %v2261 = vpop.f32.mrf.mxu0
        %v2262 = vadd.f32 %v2102, %v2261
        %v2263 = vpop.f32.mrf.mxu0
        %2264 = vmatprep.mubr.bf16.mxu0 0
        %2265 = vmatmul.mubr.bf16.gmra.mxu0 %v2075
        %v2266 = vpop.f32.mrf.mxu0
        %v2267 = vadd.f32 %v2102, %v2266
        %v2268 = vpop.f32.mrf.mxu0
        %v2269 = vpop.f32.mrf.mxu0
        %v2270 = vadd.f32 %v2102, %v2269
        %v2271 = vpop.f32.mrf.mxu0
        %2272 = vmatprep.mubr.bf16.mxu0 0
        %2273 = vmatmul.mubr.bf16.gmra.mxu0 %v2076
        %v2274 = vpop.f32.mrf.mxu0
        %v2275 = vadd.f32 %v2102, %v2274
        %v2276 = vpop.f32.mrf.mxu0
        %v2277 = vpop.f32.mrf.mxu0
        %v2278 = vadd.f32 %v2102, %v2277
        %v2279 = vpop.f32.mrf.mxu0
        %2280 = vmatprep.mubr.bf16.mxu0 0
        %2281 = vmatmul.mubr.bf16.gmra.mxu0 %v2077
        %v2282 = vpop.f32.mrf.mxu0
        %v2283 = vadd.f32 %v2102, %v2282
        %v2284 = vpop.f32.mrf.mxu0
        %v2285 = vpop.f32.mrf.mxu0
        %v2286 = vadd.f32 %v2102, %v2285
        %v2287 = vpop.f32.mrf.mxu0
        %2288 = vmatprep.mubr.bf16.mxu0 0
        %2289 = vmatmul.mubr.bf16.gmra.mxu0 %v2078
        %v2290 = vpop.f32.mrf.mxu0
        %v2291 = vadd.f32 %v2102, %v2290
        %v2292 = vpop.f32.mrf.mxu0
        %v2293 = vpop.f32.mrf.mxu0
        %v2294 = vadd.f32 %v2102, %v2293
        %v2295 = vpop.f32.mrf.mxu0
        %2296 = vmatprep.mubr.bf16.mxu0 0
        %2297 = vmatmul.mubr.bf16.gmra.mxu0 %v2079
        %v2298 = vpop.f32.mrf.mxu0
        %v2299 = vadd.f32 %v2102, %v2298
        %v2300 = vpop.f32.mrf.mxu0
        %v2301 = vpop.f32.mrf.mxu0
        %v2302 = vadd.f32 %v2102, %v2301
        %v2303 = vpop.f32.mrf.mxu0
        %2304 = vmatprep.mubr.bf16.mxu0 0
        %2305 = vmatmul.mubr.bf16.gmra.mxu0 %v2080
        %v2306 = vpop.f32.mrf.mxu0
        %v2307 = vadd.f32 %v2102, %v2306
        %v2308 = vpop.f32.mrf.mxu0
        %v2309 = vpop.f32.mrf.mxu0
        %v2310 = vadd.f32 %v2102, %v2309
        %v2311 = vpop.f32.mrf.mxu0
        %2312 = vdwg.mxu0
        %2313 = vst [vmem:[%s837] sm:$0xff] %v2187
        %2314 = vst [vmem:[%s837 + $0x8] sm:$0xff] %v2190
        %2315 = vst [vmem:[%s837 + $0x10] sm:$0xff] %v2195
        %2316 = vst [vmem:[%s837 + $0x18] sm:$0xff] %v2198
        %2317 = vst [vmem:[%s837 + $0x20] sm:$0xff] %v2203
        %2318 = vst [vmem:[%s837 + $0x28] sm:$0xff] %v2206
        %2319 = vst [vmem:[%s837 + $0x30] sm:$0xff] %v2211
        %2320 = vst [vmem:[%s837 + $0x38] sm:$0xff] %v2214
        %2321 = vst [vmem:[%s837 + $0x40] sm:$0xff] %v2219
        %2322 = vst [vmem:[%s837 + $0x48] sm:$0xff] %v2222
        %2323 = vst [vmem:[%s837 + $0x50] sm:$0xff] %v2227
        %2324 = vst [vmem:[%s837 + $0x58] sm:$0xff] %v2230
        %2325 = vst [vmem:[%s837 + $0x60] sm:$0xff] %v2235
        %2326 = vst [vmem:[%s837 + $0x68] sm:$0xff] %v2238
        %2327 = vst [vmem:[%s837 + $0x70] sm:$0xff] %v2243
        %2328 = vst [vmem:[%s837 + $0x78] sm:$0xff] %v2246
        %2329 = vst [vmem:[%s837 + $0x80] sm:$0xff] %v2251
        %2330 = vst [vmem:[%s837 + $0x88] sm:$0xff] %v2254
        %2331 = vst [vmem:[%s837 + $0x90] sm:$0xff] %v2259
        %2332 = vst [vmem:[%s837 + $0x98] sm:$0xff] %v2262
        %2333 = vst [vmem:[%s837 + $0xa0] sm:$0xff] %v2267
        %2334 = vst [vmem:[%s837 + $0xa8] sm:$0xff] %v2270
        %2335 = vst [vmem:[%s837 + $0xb0] sm:$0xff] %v2275
        %2336 = vst [vmem:[%s837 + $0xb8] sm:$0xff] %v2278
        %2337 = vst [vmem:[%s837 + $0xc0] sm:$0xff] %v2283
        %2338 = vst [vmem:[%s837 + $0xc8] sm:$0xff] %v2286
        %2339 = vst [vmem:[%s837 + $0xd0] sm:$0xff] %v2291
        %2340 = vst [vmem:[%s837 + $0xd8] sm:$0xff] %v2294
        %2341 = vst [vmem:[%s837 + $0xe0] sm:$0xff] %v2299
        %2342 = vst [vmem:[%s837 + $0xe8] sm:$0xff] %v2302
        %2343 = vst [vmem:[%s837 + $0xf0] sm:$0xff] %v2307
        %2344 = vst [vmem:[%s837 + $0xf8] sm:$0xff] %v2310
        %v2345 = vadd.f32 %v2187, %v2190
        %v2346 = vadd.f32 %v2345, %v2195
        %v2347 = vadd.f32 %v2346, %v2198
        %v2348 = vadd.f32 %v2347, %v2203
        %v2349 = vadd.f32 %v2348, %v2206
        %v2350 = vadd.f32 %v2349, %v2211
        %v2351 = vadd.f32 %v2350, %v2214
        %v2352 = vadd.f32 %v2351, %v2219
        %v2353 = vadd.f32 %v2352, %v2222
        %v2354 = vadd.f32 %v2353, %v2227
        %v2355 = vadd.f32 %v2354, %v2230
        %v2356 = vadd.f32 %v2355, %v2235
        %v2357 = vadd.f32 %v2356, %v2238
        %v2358 = vadd.f32 %v2357, %v2243
        %v2359 = vadd.f32 %v2358, %v2246
        %v2360 = vadd.f32 %v2359, %v2251
        %v2361 = vadd.f32 %v2360, %v2254
        %v2362 = vadd.f32 %v2361, %v2259
        %v2363 = vadd.f32 %v2362, %v2262
        %v2364 = vadd.f32 %v2363, %v2267
        %v2365 = vadd.f32 %v2364, %v2270
        %v2366 = vadd.f32 %v2365, %v2275
        %v2367 = vadd.f32 %v2366, %v2278
        %v2368 = vadd.f32 %v2367, %v2283
        %v2369 = vadd.f32 %v2368, %v2286
        %v2370 = vadd.f32 %v2369, %v2291
        %v2371 = vadd.f32 %v2370, %v2294
        %v2372 = vadd.f32 %v2371, %v2299
        %v2373 = vadd.f32 %v2372, %v2302
        %v2374 = vadd.f32 %v2373, %v2307
        %v2375 = vadd.f32 %v2374, %v2310
        %v2376 = vrot.slane %v2375, 4
        %v2377 = vadd.f32 %v2375, %v2376
        %v2378 = vrot.slane %v2377, 2
        %v2379 = vadd.f32 %v2377, %v2378
        %v2380 = vrot.slane %v2379, 1
        %v2381 = vadd.f32 %v2379, %v2380
        %v2382 = vmul.f32 %v2187, %v2187
        %v2383 = vmul.f32 %v2190, %v2190
        %v2384 = vmul.f32 %v2195, %v2195
        %v2385 = vmul.f32 %v2198, %v2198
        %v2386 = vmul.f32 %v2203, %v2203
        %v2387 = vmul.f32 %v2206, %v2206
        %v2388 = vmul.f32 %v2211, %v2211
        %v2389 = vmul.f32 %v2214, %v2214
        %v2390 = vmul.f32 %v2219, %v2219
        %v2391 = vmul.f32 %v2222, %v2222
        %v2392 = vmul.f32 %v2227, %v2227
        %v2393 = vmul.f32 %v2230, %v2230
        %v2394 = vmul.f32 %v2235, %v2235
        %v2395 = vmul.f32 %v2238, %v2238
        %v2396 = vmul.f32 %v2243, %v2243
        %v2397 = vmul.f32 %v2246, %v2246
        %v2398 = vmul.f32 %v2251, %v2251
        %v2399 = vmul.f32 %v2254, %v2254
        %v2400 = vmul.f32 %v2259, %v2259
        %v2401 = vmul.f32 %v2262, %v2262
        %v2402 = vmul.f32 %v2267, %v2267
        %v2403 = vmul.f32 %v2270, %v2270
        %v2404 = vmul.f32 %v2275, %v2275
        %v2405 = vmul.f32 %v2278, %v2278
        %v2406 = vmul.f32 %v2283, %v2283
        %v2407 = vmul.f32 %v2286, %v2286
        %v2408 = vmul.f32 %v2291, %v2291
        %v2409 = vmul.f32 %v2294, %v2294
        %v2410 = vmul.f32 %v2299, %v2299
        %v2411 = vmul.f32 %v2302, %v2302
        %v2412 = vmul.f32 %v2307, %v2307
        %v2413 = vmul.f32 %v2310, %v2310
        %v2414 = vadd.f32 %v2382, %v2383
        %v2415 = vadd.f32 %v2414, %v2384
        %v2416 = vadd.f32 %v2415, %v2385
        %v2417 = vadd.f32 %v2416, %v2386
        %v2418 = vadd.f32 %v2417, %v2387
        %v2419 = vadd.f32 %v2418, %v2388
        %v2420 = vadd.f32 %v2419, %v2389
        %v2421 = vadd.f32 %v2420, %v2390
        %v2422 = vadd.f32 %v2421, %v2391
        %v2423 = vadd.f32 %v2422, %v2392
        %v2424 = vadd.f32 %v2423, %v2393
        %v2425 = vadd.f32 %v2424, %v2394
        %v2426 = vadd.f32 %v2425, %v2395
        %v2427 = vadd.f32 %v2426, %v2396
        %v2428 = vadd.f32 %v2427, %v2397
        %v2429 = vadd.f32 %v2428, %v2398
        %v2430 = vadd.f32 %v2429, %v2399
        %v2431 = vadd.f32 %v2430, %v2400
        %v2432 = vadd.f32 %v2431, %v2401
        %v2433 = vadd.f32 %v2432, %v2402
        %v2434 = vadd.f32 %v2433, %v2403
        %v2435 = vadd.f32 %v2434, %v2404
        %v2436 = vadd.f32 %v2435, %v2405
        %v2437 = vadd.f32 %v2436, %v2406
        %v2438 = vadd.f32 %v2437, %v2407
        %v2439 = vadd.f32 %v2438, %v2408
        %v2440 = vadd.f32 %v2439, %v2409
        %v2441 = vadd.f32 %v2440, %v2410
        %v2442 = vadd.f32 %v2441, %v2411
        %v2443 = vadd.f32 %v2442, %v2412
        %v2444 = vadd.f32 %v2443, %v2413
        %v2445 = vrot.slane %v2444, 4
        %v2446 = vadd.f32 %v2444, %v2445
        %v2447 = vrot.slane %v2446, 2
        %v2448 = vadd.f32 %v2446, %v2447
        %v2449 = vrot.slane %v2448, 1
        %v2450 = vadd.f32 %v2448, %v2449
        %vm2451 = vcmask 1040384
        %v2452 = vsel %vm2451, %v2381, %v2450
        %2453 = vst [vmem:[%s845] sm:$0x3] %v2452
        %s2454 = smul.u32 32, %s23
        %p2455 = scmp.lt.s32.totalorder %s22, 1
        %s2456 = scalar_select %p2455, %s22, 1
        %p2457 = scmp.lt.s32.totalorder %s2454, 31
        %s2458 = scalar_select %p2457, %s2454, 31
        %s2459 = smul.addr %s2456, 32
        %s2460 = sadd.s32 %s2458, %s2459
        %s2461 = smul.addr %s2460, 8
        %s2462 = scalar_lea.vmem %s5, %s2461
        %p2463 = scmp.lt.s32.totalorder %s22, 1
        %s2464 = scalar_select %p2463, %s22, 1
        %p2465 = scmp.lt.s32.totalorder %s23, 0
        %s2466 = scalar_select %p2465, %s23, 0
        %s2467 = sadd.s32 %s2466, %s2464
        %s2468 = smul.addr %s2467, 2
        %s2469 = scalar_lea.vmem %s6, %s2468
        // Predicated region
        $region164: #{nl_block_forward.4} parent=150 // pred_check
          %p2470 = pneg %p172
        $region165: #{nl_block_forward.4} parent=150 // pred_check_branch
          %2472 = sbr.rel (%p2470) target = $region167
        $region166: #{nl_block_forward.4} parent=150 // pred_region
          %s2473 = smul.u32 32, %s23
        $region167: #{nl_block_forward.4} parent=150 // pred_fallthru
          _
        // Predicated region
        $region168: #{nl_block_forward.4} parent=150 // pred_check
          %p2474 = pneg %p200
        $region169: #{nl_block_forward.4} parent=150 // pred_check_branch
          %2476 = sbr.rel (%p2474) target = $region171
        $region170: #{nl_block_forward.4} parent=150 // pred_region
          _
        $region171: #{nl_block_forward.4} parent=150 // pred_fallthru
          _
      $region151: #{nl_block_forward.4} parent=5 // pred_fallthru
        _
      %p2477 = scmp.le.s32.totalorder 2, %s13
      // Predicated region
      $region172: #{nl_block_forward.4} parent=5 // pred_check
        %p2478 = pneg %p2477
      $region173: #{nl_block_forward.4} parent=5 // pred_check_branch
        %2480 = sbr.rel (%p2478) target = $region175
      $region174: #{nl_block_forward.4} parent=5 // pred_region
        %s2481 = ssub.s32 %s13, 2
        // Predicated region
        $region176: #{nl_block_forward.4} parent=174 // pred_check
          %p2482 = pneg %p178
        $region177: #{nl_block_forward.4} parent=174 // pred_check_branch
          %2484 = sbr.rel (%p2482) target = $region179
        $region178: #{nl_block_forward.4} parent=174 // pred_region
          %s2485 = smul.u32 32, %s25
          %p2486 = scmp.lt.s32.totalorder %s24, 1
          %s2487 = scalar_select %p2486, %s24, 1
          %p2488 = scmp.lt.s32.totalorder %s2485, 31
          %s2489 = scalar_select %p2488, %s2485, 31
          %s2490 = smul.addr %s2487, 32
          %s2491 = sadd.s32 %s2489, %s2490
          %s2492 = smul.addr %s2491, 8
          %s2493 = scalar_lea.vmem %s5, %s2492
        $region179: #{nl_block_forward.4} parent=174 // pred_fallthru
          _
        // Predicated region
        $region180: #{nl_block_forward.4} parent=174 // pred_check
          %p2494 = pneg %p206
        $region181: #{nl_block_forward.4} parent=174 // pred_check_branch
          %2496 = sbr.rel (%p2494) target = $region183
        $region182: #{nl_block_forward.4} parent=174 // pred_region
          %p2497 = scmp.lt.s32.totalorder %s24, 1
          %s2498 = scalar_select %p2497, %s24, 1
          %p2499 = scmp.lt.s32.totalorder %s25, 0
          %s2500 = scalar_select %p2499, %s25, 0
          %s2501 = sadd.s32 %s2500, %s2498
          %s2502 = smul.addr %s2501, 2
          %s2503 = scalar_lea.vmem %s6, %s2502
        $region183: #{nl_block_forward.4} parent=174 // pred_fallthru
          _
      $region175: #{nl_block_forward.4} parent=5 // pred_fallthru
        _
    $region6: #{nl_block_forward.4} parent=1 // loop_footer
      %s17 = sadd.s32 1, %s13
    $region7: #{nl_block_forward.4} parent=1 // loop_footer_branch
      %12 = sbr.rel target = $region3
    $region8: #{nl_block_forward.4} parent=1 // loop_exit
      _

</llo_original>
